<compile_context>
chip_gen: v5e
topology: v5e:2x2
jax: 0.10.0
libtpu: 0.0.40
codegen_flags: <defaults>
</compile_context>

<pallas_src>
import functools

import jax
import jax.numpy as jnp
import numpy as np
from jax.experimental import pallas as pl
from jax.experimental.pallas import tpu as pltpu


def _round_up(v, m):
    return (v + m - 1) // m * m


def _res_block_kernel(x_ref, w_ref, g_ref, b_ref, out_ref,
                      xpad_ref, patches_ref, pooled_ref,
                      *, N, Cin_pad, Cout, H, W, eps, compute_dtype):
    """Fused conv3x3 + maxpool2x2 + train-mode BN + ReLU for the whole batch.

    x_ref       : (N, Cin_pad, H*W)        channel-major flat images (zero-padded channels)
    w_ref       : (Cout, 9*Cin_pad)        conv weight, K ordered (tap-major, cin-minor)
    g_ref/b_ref : (Cout, 1) f32            BN affine scale / shift
    out_ref     : (N, Cout, Hp*Wp) f32     lane-dense output
    xpad_ref    : VMEM (Cin_pad, H*W + 2*(W+1)) f32   flat zero-halo image
    patches_ref : VMEM (9*Cin_pad, N*H*W) compute_dtype   batched im2col operand
    pooled_ref  : VMEM (Cout, N*Hp*Wp) f32             unnormalized pooled staging
    """
    HW = H * W
    Hp, Wp = H // 2, W // 2
    HpWp = Hp * Wp
    PAD = W + 1  # flat zero halo on each side (covers dy = +-1 row shifts)

    # Zero only the halo columns once; the interior is overwritten per image.
    xpad_ref[:, :PAD] = jnp.zeros((Cin_pad, PAD), jnp.float32)
    xpad_ref[:, PAD + HW:] = jnp.zeros((Cin_pad, PAD), jnp.float32)

    # Loop-invariant masks (iotas/broadcasts are not CSE'd by JAX -> hoist).
    w_idx = jax.lax.broadcasted_iota(jnp.int32, (1, HW), 1) % W
    mask_l = w_idx >= 1          # valid lanes for a dx = -1 tap
    mask_r = w_idx < (W - 1)     # valid lanes for a dx = +1 tap

    # ---- Pass 1: im2col for all images into one (9*Cin_pad, N*HW) operand. --
    for n in range(N):                         # N small; statically unrolled
        # Write image n into the interior of the flat zero-halo buffer.
        xpad_ref[:, PAD:PAD + HW] = x_ref[n]   # (Cin_pad, HW)
        tap = 0
        for dy in (-1, 0, 1):
            for dx in (-1, 0, 1):
                start = PAD + dy * W + dx      # static flat offset
                t = xpad_ref[:, start:start + HW]          # (Cin_pad, HW)
                if dx == -1:                   # kill row wrap at w == 0
                    t = jnp.where(mask_l, t, 0.0)
                elif dx == 1:                  # kill row wrap at w == W-1
                    t = jnp.where(mask_r, t, 0.0)
                patches_ref[tap * Cin_pad:(tap + 1) * Cin_pad,
                            n * HW:(n + 1) * HW] = t.astype(compute_dtype)
                tap += 1

    # ---- Single batched K = 9*Cin_pad contraction on the MXU. ---------------
    conv = jnp.dot(w_ref[...], patches_ref[...],
                   preferred_element_type=jnp.float32)      # (Cout, N*HW) f32

    # ---- MaxPool2d(2, 2): adjacent lane pairs first, then row pairs. --------
    p = conv.reshape(Cout, N * H * Wp, 2).max(axis=-1)      # (Cout, N*H*Wp)
    p = p.reshape(Cout, N, Hp, 2, Wp).max(axis=3)           # (Cout, N, Hp, Wp)
    pooled_ref[...] = p.reshape(Cout, N * HpWp)             # stage in VMEM

    # ---- Pass 2: centered two-pass batch stats + folded BN parameters. ------
    count = float(N * HpWp)
    pooled = pooled_ref[...]                                 # (Cout, N*HpWp)
    mean = jnp.sum(pooled, axis=1, keepdims=True) * (1.0 / count)   # (Cout, 1)
    d = pooled - mean
    var = jnp.sum(d * d, axis=1, keepdims=True) * (1.0 / count)     # biased
    inv = jax.lax.rsqrt(var + eps)
    scale = g_ref[...] * inv                                 # (Cout, 1)
    shift = b_ref[...] - mean * scale                        # (Cout, 1)

    # ---- Pass 3: per-image folded BN + ReLU epilogue, lane-dense stores. ----
    for n in range(N):
        pn = pooled_ref[:, n * HpWp:(n + 1) * HpWp]          # (Cout, HpWp)
        out_ref[n] = jnp.maximum(pn * scale + shift, 0.0)


def residual_block_forward(x_nchw, w_oihw, gamma, beta, *, eps=1e-5,
                           compute_dtype=jnp.float32):
    """ResidualBlock.forward (res_block=None path).

    x_nchw : (N, Cin, H, W) float32, PyTorch NCHW layout.
    w_oihw : (Cout, Cin, 3, 3) conv weight in PyTorch layout (bias=False).
    gamma, beta : (Cout,) BatchNorm2d affine parameters.
    compute_dtype : jnp.bfloat16 on v6e/v7x for an MXU-native matmul (f32
        accumulation); default f32 matches PyTorch numerics.
    """
    N, Cin, H, W = x_nchw.shape
    Cout = w_oihw.shape[0]
    assert H % 2 == 0 and W % 2 == 0, "MaxPool2d(2,2) path assumes even H, W"
    assert W >= 2
    Hp, Wp = H // 2, W // 2
    HW, HpWp = H * W, Hp * Wp
    PAD = W + 1

    # Sublane alignment of the im2col K rows: 8 for f32, 16 for bf16 packing.
    sublane = 16 if jnp.dtype(compute_dtype) == jnp.dtype(jnp.bfloat16) else 8
    Cin_pad = _round_up(Cin, sublane)

    # NCHW -> (N, Cin_pad, H*W): free contiguous reshape + small channel pad.
    x_flat = x_nchw.reshape(N, Cin, HW).astype(jnp.float32)
    if Cin_pad != Cin:
        x_flat = jnp.pad(x_flat, ((0, 0), (0, Cin_pad - Cin), (0, 0)))

    # (Cout, Cin, 3, 3) -> (Cout, 9*Cin_pad), K ordered (tap-major, cin-minor)
    # to match the patch construction inside the kernel; padded K rows are 0.
    w_t = jnp.transpose(w_oihw, (0, 2, 3, 1))                # (Cout, 3, 3, Cin)
    if Cin_pad != Cin:
        w_t = jnp.pad(w_t, ((0, 0), (0, 0), (0, 0), (0, Cin_pad - Cin)))
    w_mat = w_t.reshape(Cout, 9 * Cin_pad).astype(compute_dtype)

    # Single padded (Cout, 1) tiles; broadcast along lanes without relayout.
    g = gamma.reshape(Cout, 1).astype(jnp.float32)
    b = beta.reshape(Cout, 1).astype(jnp.float32)

    kernel = functools.partial(
        _res_block_kernel, N=N, Cin_pad=Cin_pad, Cout=Cout, H=H, W=W, eps=eps,
        compute_dtype=compute_dtype)

    # VMEM budget estimate (inputs + output + scratches, (8,128)-tile padded).
    f32b = 4
    cdb = jnp.dtype(compute_dtype).itemsize
    est = 0
    est += N * _round_up(Cin_pad, 8) * _round_up(HW, 128) * f32b          # x
    est += _round_up(Cout, 8) * _round_up(9 * Cin_pad, 128) * cdb         # w
    est += 2 * _round_up(Cout, 8) * 128 * f32b                            # g, b
    est += N * _round_up(Cout, 8) * _round_up(HpWp, 128) * f32b           # out
    est += _round_up(Cin_pad, 8) * _round_up(HW + 2 * PAD, 128) * f32b    # xpad
    est += _round_up(9 * Cin_pad, 8) * _round_up(N * HW, 128) * cdb       # patches
    est += _round_up(Cout, 8) * _round_up(N * HpWp, 128) * f32b           # pooled
    vmem_limit = int(min(64 << 20, max(32 << 20, 2 * est + (2 << 20))))

    vmem = pl.BlockSpec(memory_space=pltpu.MemorySpace.VMEM)
    out = pl.pallas_call(
        kernel,
        out_shape=jax.ShapeDtypeStruct((N, Cout, HpWp), jnp.float32),
        in_specs=[vmem, vmem, vmem, vmem],
        out_specs=vmem,
        scratch_shapes=[
            pltpu.VMEM((Cin_pad, HW + 2 * PAD), jnp.float32),
            pltpu.VMEM((9 * Cin_pad, N * HW), compute_dtype),
            pltpu.VMEM((Cout, N * HpWp), jnp.float32),
        ],
        compiler_params=pltpu.CompilerParams(vmem_limit_bytes=vmem_limit),
    )(x_flat, w_mat, g, b)

    # Free contiguous reshape back to NCHW pooled layout.
    return out.reshape(N, Cout, Hp, Wp)


# Pure-JAX reference for validation (matches PyTorch forward semantics).
def _reference(x_nchw, w_oihw, gamma, beta, eps=1e-5):
    conv = jax.lax.conv_general_dilated(
        x_nchw, w_oihw, window_strides=(1, 1), padding=((1, 1), (1, 1)),
        dimension_numbers=("NCHW", "OIHW", "NCHW"))
    N, C, H, W = conv.shape
    pooled = conv.reshape(N, C, H // 2, 2, W // 2, 2).max(axis=(3, 5))
    mean = pooled.mean(axis=(0, 2, 3), keepdims=True)
    var = pooled.var(axis=(0, 2, 3), keepdims=True)   # biased, train-mode BN
    y = (pooled - mean) * jax.lax.rsqrt(var + eps) * gamma.reshape(1, C, 1, 1) \
        + beta.reshape(1, C, 1, 1)
    return jnp.maximum(y, 0.0)


if __name__ == "__main__":
    N, Cin, H, W = 2, 4, 16, 16
    Cout = 8

    key = jax.random.PRNGKey(0)
    kx, kw, kg, kb = jax.random.split(key, 4)
    x = jax.random.normal(kx, (N, Cin, H, W), dtype=jnp.float32)
    # Conv2d weight in PyTorch (Cout, Cin, KH, KW) layout; bias=False.
    w = jax.random.normal(kw, (Cout, Cin, 3, 3), dtype=jnp.float32) * 0.1
    # BatchNorm2d affine params (deterministic synthetic init).
    gamma = 1.0 + 0.1 * jax.random.normal(kg, (Cout,), dtype=jnp.float32)
    beta = 0.1 * jax.random.normal(kb, (Cout,), dtype=jnp.float32)

    out = jax.block_until_ready(residual_block_forward(x, w, gamma, beta))
    assert out.shape == (N, Cout, H // 2, W // 2)

    ref = jax.block_until_ready(_reference(x, w, gamma, beta))
    np.testing.assert_allclose(np.asarray(out), np.asarray(ref),
                               rtol=1e-4, atol=1e-4)

    print("KERNEL_OK")
</pallas_src>

<mosaic_0001>
module attributes {stable_mosaic.version = 11 : i64} {
  func.func @_res_block_kernel(%arg0: memref<2x8x256xf32, #tpu.memory_space<vmem>>, %arg1: memref<8x72xf32, #tpu.memory_space<vmem>>, %arg2: memref<8x1xf32, #tpu.memory_space<vmem>>, %arg3: memref<8x1xf32, #tpu.memory_space<vmem>>, %arg4: memref<2x8x64xf32, #tpu.memory_space<vmem>>, %arg5: memref<8x290xf32, #tpu.memory_space<vmem>>, %arg6: memref<72x512xf32, #tpu.memory_space<vmem>>, %arg7: memref<8x128xf32, #tpu.memory_space<vmem>>) attributes {dimension_semantics = [], scalar_prefetch = 0 : i64, scratch_operands = 3 : i64, tpu.core_type = #tpu.core_type<tc>} {
    %cst = arith.constant 0.000000e+00 : f32
    %0 = vector.broadcast %cst : f32 to vector<8x17xf32>
    %c0 = arith.constant 0 : index
    %c0_0 = arith.constant 0 : index
    %1 = vector.load %arg5[%c0, %c0_0] : memref<8x290xf32, #tpu.memory_space<vmem>>, vector<8x17xf32>
    tpu.vector_store %arg5[%c0, %c0_0], %0 {strides = array<i32>} : memref<8x290xf32, #tpu.memory_space<vmem>>, vector<8x17xf32>,
    %cst_1 = arith.constant 0.000000e+00 : f32
    %2 = vector.broadcast %cst_1 : f32 to vector<8x17xf32>
    %c0_2 = arith.constant 0 : index
    %c273 = arith.constant 273 : index
    %3 = vector.load %arg5[%c0_2, %c273] : memref<8x290xf32, #tpu.memory_space<vmem>>, vector<8x17xf32>
    tpu.vector_store %arg5[%c0_2, %c273], %2 {strides = array<i32>} : memref<8x290xf32, #tpu.memory_space<vmem>>, vector<8x17xf32>,
    %4 = tpu.iota {dimensions = array<i32: 1>} : vector<1x256xi32>
    %c16_i32 = arith.constant 16 : i32
    %c0_i32 = arith.constant 0 : i32
    %5 = arith.cmpi eq, %c16_i32, %c0_i32 : i32
    %c1_i32 = arith.constant 1 : i32
    %6 = arith.select %5, %c1_i32, %c16_i32 : i32
    %7 = vector.broadcast %6 : i32 to vector<1x256xi32>
    %8 = arith.remsi %4, %7 : vector<1x256xi32>
    %c0_i32_3 = arith.constant 0 : i32
    %9 = vector.broadcast %c0_i32_3 : i32 to vector<1x256xi32>
    %10 = arith.cmpi ne, %8, %9 : vector<1x256xi32>
    %c0_i32_4 = arith.constant 0 : i32
    %11 = vector.broadcast %c0_i32_4 : i32 to vector<1x256xi32>
    %12 = arith.cmpi slt, %8, %11 : vector<1x256xi32>
    %c0_i32_5 = arith.constant 0 : i32
    %13 = arith.cmpi slt, %6, %c0_i32_5 : i32
    %14 = vector.broadcast %13 : i1 to vector<1x256xi1>
    %15 = vector.broadcast %14 : vector<1x256xi1> to vector<1x256xi1>
    %16 = arith.xori %12, %15 : vector<1x256xi1>
    %17 = arith.andi %16, %10 : vector<1x256xi1>
    %18 = vector.broadcast %6 : i32 to vector<1x256xi32>
    %19 = arith.addi %8, %18 : vector<1x256xi32>
    %20 = arith.select %17, %19, %8 : vector<1x256xi1>, vector<1x256xi32>
    %c1_i32_6 = arith.constant 1 : i32
    %21 = vector.broadcast %c1_i32_6 : i32 to vector<1x256xi32>
    %22 = arith.cmpi sge, %20, %21 : vector<1x256xi32>
    %c15_i32 = arith.constant 15 : i32
    %23 = vector.broadcast %c15_i32 : i32 to vector<1x256xi32>
    %24 = arith.cmpi slt, %20, %23 : vector<1x256xi32>
    %c0_7 = arith.constant 0 : index
    %c0_8 = arith.constant 0 : index
    %c0_9 = arith.constant 0 : index
    %25 = vector.load %arg0[%c0_7, %c0_8, %c0_9] : memref<2x8x256xf32, #tpu.memory_space<vmem>>, vector<1x8x256xf32>
    %26 = vector.shape_cast %25 : vector<1x8x256xf32> to vector<8x256xf32>
    %c0_10 = arith.constant 0 : index
    %c17 = arith.constant 17 : index
    %27 = vector.load %arg5[%c0_10, %c17] : memref<8x290xf32, #tpu.memory_space<vmem>>, vector<8x256xf32>
    tpu.vector_store %arg5[%c0_10, %c17], %26 {strides = array<i32>} : memref<8x290xf32, #tpu.memory_space<vmem>>, vector<8x256xf32>,
    %c0_11 = arith.constant 0 : index
    %c0_12 = arith.constant 0 : index
    %28 = vector.load %arg5[%c0_11, %c0_12] : memref<8x290xf32, #tpu.memory_space<vmem>>, vector<8x256xf32>
    %cst_13 = arith.constant 0.000000e+00 : f32
    %29 = vector.shape_cast %22 : vector<1x256xi1> to vector<1x256xi1>
    %30 = vector.broadcast %29 : vector<1x256xi1> to vector<8x256xi1>
    %31 = vector.broadcast %cst_13 : f32 to vector<8x256xf32>
    %32 = arith.select %30, %28, %31 : vector<8x256xi1>, vector<8x256xf32>
    %c0_14 = arith.constant 0 : index
    %c0_15 = arith.constant 0 : index
    %33 = vector.load %arg6[%c0_14, %c0_15] : memref<72x512xf32, #tpu.memory_space<vmem>>, vector<8x256xf32>
    tpu.vector_store %arg6[%c0_14, %c0_15], %32 {strides = array<i32>} : memref<72x512xf32, #tpu.memory_space<vmem>>, vector<8x256xf32>,
    %c0_16 = arith.constant 0 : index
    %c1 = arith.constant 1 : index
    %34 = vector.load %arg5[%c0_16, %c1] : memref<8x290xf32, #tpu.memory_space<vmem>>, vector<8x256xf32>
    %c8 = arith.constant 8 : index
    %c0_17 = arith.constant 0 : index
    %35 = vector.load %arg6[%c8, %c0_17] : memref<72x512xf32, #tpu.memory_space<vmem>>, vector<8x256xf32>
    tpu.vector_store %arg6[%c8, %c0_17], %34 {strides = array<i32>} : memref<72x512xf32, #tpu.memory_space<vmem>>, vector<8x256xf32>,
    %c0_18 = arith.constant 0 : index
    %c2 = arith.constant 2 : index
    %36 = vector.load %arg5[%c0_18, %c2] : memref<8x290xf32, #tpu.memory_space<vmem>>, vector<8x256xf32>
    %cst_19 = arith.constant 0.000000e+00 : f32
    %37 = vector.shape_cast %24 : vector<1x256xi1> to vector<1x256xi1>
    %38 = vector.broadcast %37 : vector<1x256xi1> to vector<8x256xi1>
    %39 = vector.broadcast %cst_19 : f32 to vector<8x256xf32>
    %40 = arith.select %38, %36, %39 : vector<8x256xi1>, vector<8x256xf32>
    %c16 = arith.constant 16 : index
    %c0_20 = arith.constant 0 : index
    %41 = vector.load %arg6[%c16, %c0_20] : memref<72x512xf32, #tpu.memory_space<vmem>>, vector<8x256xf32>
    tpu.vector_store %arg6[%c16, %c0_20], %40 {strides = array<i32>} : memref<72x512xf32, #tpu.memory_space<vmem>>, vector<8x256xf32>,
    %c0_21 = arith.constant 0 : index
    %c16_22 = arith.constant 16 : index
    %42 = vector.load %arg5[%c0_21, %c16_22] : memref<8x290xf32, #tpu.memory_space<vmem>>, vector<8x256xf32>
    %cst_23 = arith.constant 0.000000e+00 : f32
    %43 = vector.shape_cast %22 : vector<1x256xi1> to vector<1x256xi1>
    %44 = vector.broadcast %43 : vector<1x256xi1> to vector<8x256xi1>
    %45 = vector.broadcast %cst_23 : f32 to vector<8x256xf32>
    %46 = arith.select %44, %42, %45 : vector<8x256xi1>, vector<8x256xf32>
    %c24 = arith.constant 24 : index
    %c0_24 = arith.constant 0 : index
    %47 = vector.load %arg6[%c24, %c0_24] : memref<72x512xf32, #tpu.memory_space<vmem>>, vector<8x256xf32>
    tpu.vector_store %arg6[%c24, %c0_24], %46 {strides = array<i32>} : memref<72x512xf32, #tpu.memory_space<vmem>>, vector<8x256xf32>,
    %c0_25 = arith.constant 0 : index
    %c17_26 = arith.constant 17 : index
    %48 = vector.load %arg5[%c0_25, %c17_26] : memref<8x290xf32, #tpu.memory_space<vmem>>, vector<8x256xf32>
    %c32 = arith.constant 32 : index
    %c0_27 = arith.constant 0 : index
    %49 = vector.load %arg6[%c32, %c0_27] : memref<72x512xf32, #tpu.memory_space<vmem>>, vector<8x256xf32>
    tpu.vector_store %arg6[%c32, %c0_27], %48 {strides = array<i32>} : memref<72x512xf32, #tpu.memory_space<vmem>>, vector<8x256xf32>,
    %c0_28 = arith.constant 0 : index
    %c18 = arith.constant 18 : index
    %50 = vector.load %arg5[%c0_28, %c18] : memref<8x290xf32, #tpu.memory_space<vmem>>, vector<8x256xf32>
    %cst_29 = arith.constant 0.000000e+00 : f32
    %51 = vector.shape_cast %24 : vector<1x256xi1> to vector<1x256xi1>
    %52 = vector.broadcast %51 : vector<1x256xi1> to vector<8x256xi1>
    %53 = vector.broadcast %cst_29 : f32 to vector<8x256xf32>
    %54 = arith.select %52, %50, %53 : vector<8x256xi1>, vector<8x256xf32>
    %c40 = arith.constant 40 : index
    %c0_30 = arith.constant 0 : index
    %55 = vector.load %arg6[%c40, %c0_30] : memref<72x512xf32, #tpu.memory_space<vmem>>, vector<8x256xf32>
    tpu.vector_store %arg6[%c40, %c0_30], %54 {strides = array<i32>} : memref<72x512xf32, #tpu.memory_space<vmem>>, vector<8x256xf32>,
    %c0_31 = arith.constant 0 : index
    %c32_32 = arith.constant 32 : index
    %56 = vector.load %arg5[%c0_31, %c32_32] : memref<8x290xf32, #tpu.memory_space<vmem>>, vector<8x256xf32>
    %cst_33 = arith.constant 0.000000e+00 : f32
    %57 = vector.shape_cast %22 : vector<1x256xi1> to vector<1x256xi1>
    %58 = vector.broadcast %57 : vector<1x256xi1> to vector<8x256xi1>
    %59 = vector.broadcast %cst_33 : f32 to vector<8x256xf32>
    %60 = arith.select %58, %56, %59 : vector<8x256xi1>, vector<8x256xf32>
    %c48 = arith.constant 48 : index
    %c0_34 = arith.constant 0 : index
    %61 = vector.load %arg6[%c48, %c0_34] : memref<72x512xf32, #tpu.memory_space<vmem>>, vector<8x256xf32>
    tpu.vector_store %arg6[%c48, %c0_34], %60 {strides = array<i32>} : memref<72x512xf32, #tpu.memory_space<vmem>>, vector<8x256xf32>,
    %c0_35 = arith.constant 0 : index
    %c33 = arith.constant 33 : index
    %62 = vector.load %arg5[%c0_35, %c33] : memref<8x290xf32, #tpu.memory_space<vmem>>, vector<8x256xf32>
    %c56 = arith.constant 56 : index
    %c0_36 = arith.constant 0 : index
    %63 = vector.load %arg6[%c56, %c0_36] : memref<72x512xf32, #tpu.memory_space<vmem>>, vector<8x256xf32>
    tpu.vector_store %arg6[%c56, %c0_36], %62 {strides = array<i32>} : memref<72x512xf32, #tpu.memory_space<vmem>>, vector<8x256xf32>,
    %c0_37 = arith.constant 0 : index
    %c34 = arith.constant 34 : index
    %64 = vector.load %arg5[%c0_37, %c34] : memref<8x290xf32, #tpu.memory_space<vmem>>, vector<8x256xf32>
    %cst_38 = arith.constant 0.000000e+00 : f32
    %65 = vector.shape_cast %24 : vector<1x256xi1> to vector<1x256xi1>
    %66 = vector.broadcast %65 : vector<1x256xi1> to vector<8x256xi1>
    %67 = vector.broadcast %cst_38 : f32 to vector<8x256xf32>
    %68 = arith.select %66, %64, %67 : vector<8x256xi1>, vector<8x256xf32>
    %c64 = arith.constant 64 : index
    %c0_39 = arith.constant 0 : index
    %69 = vector.load %arg6[%c64, %c0_39] : memref<72x512xf32, #tpu.memory_space<vmem>>, vector<8x256xf32>
    tpu.vector_store %arg6[%c64, %c0_39], %68 {strides = array<i32>} : memref<72x512xf32, #tpu.memory_space<vmem>>, vector<8x256xf32>,
    %c1_40 = arith.constant 1 : index
    %c0_41 = arith.constant 0 : index
    %c0_42 = arith.constant 0 : index
    %70 = vector.load %arg0[%c1_40, %c0_41, %c0_42] : memref<2x8x256xf32, #tpu.memory_space<vmem>>, vector<1x8x256xf32>
    %71 = vector.shape_cast %70 : vector<1x8x256xf32> to vector<8x256xf32>
    %c0_43 = arith.constant 0 : index
    %c17_44 = arith.constant 17 : index
    %72 = vector.load %arg5[%c0_43, %c17_44] : memref<8x290xf32, #tpu.memory_space<vmem>>, vector<8x256xf32>
    tpu.vector_store %arg5[%c0_43, %c17_44], %71 {strides = array<i32>} : memref<8x290xf32, #tpu.memory_space<vmem>>, vector<8x256xf32>,
    %c0_45 = arith.constant 0 : index
    %c0_46 = arith.constant 0 : index
    %73 = vector.load %arg5[%c0_45, %c0_46] : memref<8x290xf32, #tpu.memory_space<vmem>>, vector<8x256xf32>
    %cst_47 = arith.constant 0.000000e+00 : f32
    %74 = vector.shape_cast %22 : vector<1x256xi1> to vector<1x256xi1>
    %75 = vector.broadcast %74 : vector<1x256xi1> to vector<8x256xi1>
    %76 = vector.broadcast %cst_47 : f32 to vector<8x256xf32>
    %77 = arith.select %75, %73, %76 : vector<8x256xi1>, vector<8x256xf32>
    %c0_48 = arith.constant 0 : index
    %c256 = arith.constant 256 : index
    %78 = vector.load %arg6[%c0_48, %c256] : memref<72x512xf32, #tpu.memory_space<vmem>>, vector<8x256xf32>
    tpu.vector_store %arg6[%c0_48, %c256], %77 {strides = array<i32>} : memref<72x512xf32, #tpu.memory_space<vmem>>, vector<8x256xf32>,
    %c0_49 = arith.constant 0 : index
    %c1_50 = arith.constant 1 : index
    %79 = vector.load %arg5[%c0_49, %c1_50] : memref<8x290xf32, #tpu.memory_space<vmem>>, vector<8x256xf32>
    %c8_51 = arith.constant 8 : index
    %c256_52 = arith.constant 256 : index
    %80 = vector.load %arg6[%c8_51, %c256_52] : memref<72x512xf32, #tpu.memory_space<vmem>>, vector<8x256xf32>
    tpu.vector_store %arg6[%c8_51, %c256_52], %79 {strides = array<i32>} : memref<72x512xf32, #tpu.memory_space<vmem>>, vector<8x256xf32>,
    %c0_53 = arith.constant 0 : index
    %c2_54 = arith.constant 2 : index
    %81 = vector.load %arg5[%c0_53, %c2_54] : memref<8x290xf32, #tpu.memory_space<vmem>>, vector<8x256xf32>
    %cst_55 = arith.constant 0.000000e+00 : f32
    %82 = vector.shape_cast %24 : vector<1x256xi1> to vector<1x256xi1>
    %83 = vector.broadcast %82 : vector<1x256xi1> to vector<8x256xi1>
    %84 = vector.broadcast %cst_55 : f32 to vector<8x256xf32>
    %85 = arith.select %83, %81, %84 : vector<8x256xi1>, vector<8x256xf32>
    %c16_56 = arith.constant 16 : index
    %c256_57 = arith.constant 256 : index
    %86 = vector.load %arg6[%c16_56, %c256_57] : memref<72x512xf32, #tpu.memory_space<vmem>>, vector<8x256xf32>
    tpu.vector_store %arg6[%c16_56, %c256_57], %85 {strides = array<i32>} : memref<72x512xf32, #tpu.memory_space<vmem>>, vector<8x256xf32>,
    %c0_58 = arith.constant 0 : index
    %c16_59 = arith.constant 16 : index
    %87 = vector.load %arg5[%c0_58, %c16_59] : memref<8x290xf32, #tpu.memory_space<vmem>>, vector<8x256xf32>
    %cst_60 = arith.constant 0.000000e+00 : f32
    %88 = vector.shape_cast %22 : vector<1x256xi1> to vector<1x256xi1>
    %89 = vector.broadcast %88 : vector<1x256xi1> to vector<8x256xi1>
    %90 = vector.broadcast %cst_60 : f32 to vector<8x256xf32>
    %91 = arith.select %89, %87, %90 : vector<8x256xi1>, vector<8x256xf32>
    %c24_61 = arith.constant 24 : index
    %c256_62 = arith.constant 256 : index
    %92 = vector.load %arg6[%c24_61, %c256_62] : memref<72x512xf32, #tpu.memory_space<vmem>>, vector<8x256xf32>
    tpu.vector_store %arg6[%c24_61, %c256_62], %91 {strides = array<i32>} : memref<72x512xf32, #tpu.memory_space<vmem>>, vector<8x256xf32>,
    %c0_63 = arith.constant 0 : index
    %c17_64 = arith.constant 17 : index
    %93 = vector.load %arg5[%c0_63, %c17_64] : memref<8x290xf32, #tpu.memory_space<vmem>>, vector<8x256xf32>
    %c32_65 = arith.constant 32 : index
    %c256_66 = arith.constant 256 : index
    %94 = vector.load %arg6[%c32_65, %c256_66] : memref<72x512xf32, #tpu.memory_space<vmem>>, vector<8x256xf32>
    tpu.vector_store %arg6[%c32_65, %c256_66], %93 {strides = array<i32>} : memref<72x512xf32, #tpu.memory_space<vmem>>, vector<8x256xf32>,
    %c0_67 = arith.constant 0 : index
    %c18_68 = arith.constant 18 : index
    %95 = vector.load %arg5[%c0_67, %c18_68] : memref<8x290xf32, #tpu.memory_space<vmem>>, vector<8x256xf32>
    %cst_69 = arith.constant 0.000000e+00 : f32
    %96 = vector.shape_cast %24 : vector<1x256xi1> to vector<1x256xi1>
    %97 = vector.broadcast %96 : vector<1x256xi1> to vector<8x256xi1>
    %98 = vector.broadcast %cst_69 : f32 to vector<8x256xf32>
    %99 = arith.select %97, %95, %98 : vector<8x256xi1>, vector<8x256xf32>
    %c40_70 = arith.constant 40 : index
    %c256_71 = arith.constant 256 : index
    %100 = vector.load %arg6[%c40_70, %c256_71] : memref<72x512xf32, #tpu.memory_space<vmem>>, vector<8x256xf32>
    tpu.vector_store %arg6[%c40_70, %c256_71], %99 {strides = array<i32>} : memref<72x512xf32, #tpu.memory_space<vmem>>, vector<8x256xf32>,
    %c0_72 = arith.constant 0 : index
    %c32_73 = arith.constant 32 : index
    %101 = vector.load %arg5[%c0_72, %c32_73] : memref<8x290xf32, #tpu.memory_space<vmem>>, vector<8x256xf32>
    %cst_74 = arith.constant 0.000000e+00 : f32
    %102 = vector.shape_cast %22 : vector<1x256xi1> to vector<1x256xi1>
    %103 = vector.broadcast %102 : vector<1x256xi1> to vector<8x256xi1>
    %104 = vector.broadcast %cst_74 : f32 to vector<8x256xf32>
    %105 = arith.select %103, %101, %104 : vector<8x256xi1>, vector<8x256xf32>
    %c48_75 = arith.constant 48 : index
    %c256_76 = arith.constant 256 : index
    %106 = vector.load %arg6[%c48_75, %c256_76] : memref<72x512xf32, #tpu.memory_space<vmem>>, vector<8x256xf32>
    tpu.vector_store %arg6[%c48_75, %c256_76], %105 {strides = array<i32>} : memref<72x512xf32, #tpu.memory_space<vmem>>, vector<8x256xf32>,
    %c0_77 = arith.constant 0 : index
    %c33_78 = arith.constant 33 : index
    %107 = vector.load %arg5[%c0_77, %c33_78] : memref<8x290xf32, #tpu.memory_space<vmem>>, vector<8x256xf32>
    %c56_79 = arith.constant 56 : index
    %c256_80 = arith.constant 256 : index
    %108 = vector.load %arg6[%c56_79, %c256_80] : memref<72x512xf32, #tpu.memory_space<vmem>>, vector<8x256xf32>
    tpu.vector_store %arg6[%c56_79, %c256_80], %107 {strides = array<i32>} : memref<72x512xf32, #tpu.memory_space<vmem>>, vector<8x256xf32>,
    %c0_81 = arith.constant 0 : index
    %c34_82 = arith.constant 34 : index
    %109 = vector.load %arg5[%c0_81, %c34_82] : memref<8x290xf32, #tpu.memory_space<vmem>>, vector<8x256xf32>
    %cst_83 = arith.constant 0.000000e+00 : f32
    %110 = vector.shape_cast %24 : vector<1x256xi1> to vector<1x256xi1>
    %111 = vector.broadcast %110 : vector<1x256xi1> to vector<8x256xi1>
    %112 = vector.broadcast %cst_83 : f32 to vector<8x256xf32>
    %113 = arith.select %111, %109, %112 : vector<8x256xi1>, vector<8x256xf32>
    %c64_84 = arith.constant 64 : index
    %c256_85 = arith.constant 256 : index
    %114 = vector.load %arg6[%c64_84, %c256_85] : memref<72x512xf32, #tpu.memory_space<vmem>>, vector<8x256xf32>
    tpu.vector_store %arg6[%c64_84, %c256_85], %113 {strides = array<i32>} : memref<72x512xf32, #tpu.memory_space<vmem>>, vector<8x256xf32>,
    %c0_86 = arith.constant 0 : index
    %c0_87 = arith.constant 0 : index
    %115 = vector.load %arg1[%c0_86, %c0_87] : memref<8x72xf32, #tpu.memory_space<vmem>>, vector<8x72xf32>
    %c0_88 = arith.constant 0 : index
    %c0_89 = arith.constant 0 : index
    %116 = vector.load %arg6[%c0_88, %c0_89] : memref<72x512xf32, #tpu.memory_space<vmem>>, vector<72x512xf32>
    %cst_90 = arith.constant dense<0.000000e+00> : vector<8x512xf32>
    %117 = tpu.matmul %115, %116, %cst_90 {dimension_numbers = #tpu.dot_dimension_numbers<[1], [0], [0], [1], [0, 0, 1, 1], [], []>} : vector<8x72xf32>, vector<72x512xf32>, vector<8x512xf32> -> vector<8x512xf32>
    %118 = vector.shape_cast %117 : vector<8x512xf32> to vector<8x256x2xf32>
    %cst_91 = arith.constant dense<0xFF800000> : vector<8x256xf32>
    %119 = vector.multi_reduction <maximumf>, %118, %cst_91 [2] : vector<8x256x2xf32> to vector<8x256xf32>
    %120 = vector.shape_cast %119 : vector<8x256xf32> to vector<8x2x8x2x8xf32>
    %cst_92 = arith.constant dense<0xFF800000> : vector<8x2x8x8xf32>
    %121 = vector.multi_reduction <maximumf>, %120, %cst_92 [3] : vector<8x2x8x2x8xf32> to vector<8x2x8x8xf32>
    %122 = vector.shape_cast %121 : vector<8x2x8x8xf32> to vector<8x128xf32>
    %c0_93 = arith.constant 0 : index
    %c0_94 = arith.constant 0 : index
    %123 = vector.load %arg7[%c0_93, %c0_94] : memref<8x128xf32, #tpu.memory_space<vmem>>, vector<8x128xf32>
    tpu.vector_store %arg7[%c0_93, %c0_94], %122 {strides = array<i32>} : memref<8x128xf32, #tpu.memory_space<vmem>>, vector<8x128xf32>,
    %c0_95 = arith.constant 0 : index
    %c0_96 = arith.constant 0 : index
    %124 = vector.load %arg7[%c0_95, %c0_96] : memref<8x128xf32, #tpu.memory_space<vmem>>, vector<8x128xf32>
    %cst_97 = arith.constant dense<0.000000e+00> : vector<8xf32>
    %125 = vector.multi_reduction <add>, %124, %cst_97 [1] : vector<8x128xf32> to vector<8xf32>
    %126 = vector.shape_cast %125 : vector<8xf32> to vector<8x1xf32>
    %cst_98 = arith.constant 7.812500e-03 : f32
    %127 = vector.broadcast %cst_98 : f32 to vector<8x1xf32>
    %128 = arith.mulf %126, %127 : vector<8x1xf32>
    %129 = vector.broadcast %128 : vector<8x1xf32> to vector<8x128xf32>
    %130 = arith.subf %124, %129 : vector<8x128xf32>
    %131 = arith.mulf %130, %130 : vector<8x128xf32>
    %cst_99 = arith.constant dense<0.000000e+00> : vector<8xf32>
    %132 = vector.multi_reduction <add>, %131, %cst_99 [1] : vector<8x128xf32> to vector<8xf32>
    %133 = vector.shape_cast %132 : vector<8xf32> to vector<8x1xf32>
    %cst_100 = arith.constant 7.812500e-03 : f32
    %134 = vector.broadcast %cst_100 : f32 to vector<8x1xf32>
    %135 = arith.mulf %133, %134 : vector<8x1xf32>
    %cst_101 = arith.constant 9.99999974E-6 : f32
    %136 = vector.broadcast %cst_101 : f32 to vector<8x1xf32>
    %137 = arith.addf %135, %136 : vector<8x1xf32>
    %138 = math.rsqrt %137 : vector<8x1xf32>
    %c0_102 = arith.constant 0 : index
    %c0_103 = arith.constant 0 : index
    %139 = vector.load %arg2[%c0_102, %c0_103] : memref<8x1xf32, #tpu.memory_space<vmem>>, vector<8x1xf32>
    %140 = arith.mulf %139, %138 : vector<8x1xf32>
    %c0_104 = arith.constant 0 : index
    %c0_105 = arith.constant 0 : index
    %141 = vector.load %arg3[%c0_104, %c0_105] : memref<8x1xf32, #tpu.memory_space<vmem>>, vector<8x1xf32>
    %142 = arith.mulf %128, %140 : vector<8x1xf32>
    %143 = arith.subf %141, %142 : vector<8x1xf32>
    %c0_106 = arith.constant 0 : index
    %c0_107 = arith.constant 0 : index
    %144 = vector.load %arg7[%c0_106, %c0_107] : memref<8x128xf32, #tpu.memory_space<vmem>>, vector<8x64xf32>
    %145 = vector.broadcast %140 : vector<8x1xf32> to vector<8x64xf32>
    %146 = arith.mulf %144, %145 : vector<8x64xf32>
    %147 = vector.broadcast %143 : vector<8x1xf32> to vector<8x64xf32>
    %148 = arith.addf %146, %147 : vector<8x64xf32>
    %cst_108 = arith.constant 0.000000e+00 : f32
    %149 = vector.broadcast %cst_108 : f32 to vector<8x64xf32>
    %150 = arith.maximumf %148, %149 : vector<8x64xf32>
    %c0_109 = arith.constant 0 : index
    %c0_110 = arith.constant 0 : index
    %c0_111 = arith.constant 0 : index
    %151 = vector.load %arg4[%c0_109, %c0_110, %c0_111] : memref<2x8x64xf32, #tpu.memory_space<vmem>>, vector<1x8x64xf32>
    %152 = vector.shape_cast %151 : vector<1x8x64xf32> to vector<8x64xf32>
    %153 = vector.shape_cast %150 : vector<8x64xf32> to vector<1x8x64xf32>
    tpu.vector_store %arg4[%c0_109, %c0_110, %c0_111], %153 {strides = array<i32>} : memref<2x8x64xf32, #tpu.memory_space<vmem>>, vector<1x8x64xf32>,
    %c0_112 = arith.constant 0 : index
    %c64_113 = arith.constant 64 : index
    %154 = vector.load %arg7[%c0_112, %c64_113] : memref<8x128xf32, #tpu.memory_space<vmem>>, vector<8x64xf32>
    %155 = vector.broadcast %140 : vector<8x1xf32> to vector<8x64xf32>
    %156 = arith.mulf %154, %155 : vector<8x64xf32>
    %157 = vector.broadcast %143 : vector<8x1xf32> to vector<8x64xf32>
    %158 = arith.addf %156, %157 : vector<8x64xf32>
    %cst_114 = arith.constant 0.000000e+00 : f32
    %159 = vector.broadcast %cst_114 : f32 to vector<8x64xf32>
    %160 = arith.maximumf %158, %159 : vector<8x64xf32>
    %c1_115 = arith.constant 1 : index
    %c0_116 = arith.constant 0 : index
    %c0_117 = arith.constant 0 : index
    %161 = vector.load %arg4[%c1_115, %c0_116, %c0_117] : memref<2x8x64xf32, #tpu.memory_space<vmem>>, vector<1x8x64xf32>
    %162 = vector.shape_cast %161 : vector<1x8x64xf32> to vector<8x64xf32>
    %163 = vector.shape_cast %160 : vector<8x64xf32> to vector<1x8x64xf32>
    tpu.vector_store %arg4[%c1_115, %c0_116, %c0_117], %163 {strides = array<i32>} : memref<2x8x64xf32, #tpu.memory_space<vmem>>, vector<1x8x64xf32>,
    return
  }
}

</mosaic_0001>

<llo_original>
// kernel: tpu_custom_call.1
$region0: #{tpu_custom_call.1}
  #allocation0 [shape = 'u32[]', space=smem, size = 0x4, offset = 0x4, fixed_abs, tag = 'smem constant byte address 0x4 - core index']
  #allocation1 [shape = 'u32[72,128]{1,0:T(1,128)}', space=vmem, size = 0x9000, scoped, tag = 'internal scratch']
  #allocation2 [shape = 'f32[8,290]{1,0:T(8,128)}', space=vmem, size = 0x3000, scoped, tag = 'scratch operand']
  #allocation3 [shape = 'f32[72,512]{1,0:T(8,128)}', space=vmem, size = 0x24000, scoped, tag = 'scratch operand']
  #allocation4 [shape = 'f32[8,128]{1,0:T(8,128)}', space=vmem, size = 0x1000, scoped, tag = 'scratch operand']
  %s0 = inlined_call_operand.hbm [shape: f32[2,8,256], index: 0, kind: input, shape index: {}]
  %s1 = inlined_call_operand.vmem [shape: f32[8,72], index: 1, kind: input, shape index: {}]
  %s2 = inlined_call_operand.vmem [shape: f32[8,1], index: 2, kind: input, shape index: {}]
  %s3 = inlined_call_operand.vmem [shape: f32[8,1], index: 3, kind: input, shape index: {}]
  %s4 = inlined_call_operand.hbm [shape: f32[2,8,64], index: 4, kind: output, shape index: {}]
  %s5 = sld [smem:[#allocation0]]
  $region30: #{tpu_custom_call.1} parent=0
    _
  %s7 = ssub.s32 1, %s5
  %s8 = scalar_select 0, %s7, %s5
  $region1: #{tpu_custom_call.1} parent=0
    #allocation5 [shape = 'u8[16384]{0}', space=vmem, size = 0x4000, scoped, tag = 'input window, operand 0, single buffered']
    #allocation6 [shape = 's32[1]{0}', space=sflag, size = 0x4, scoped, tag = 'scoped memory for tpu_custom_call.1']
    #allocation7 [shape = 's32[1]{0}', space=sflag, size = 0x4, scoped, tag = 'scoped memory for tpu_custom_call.1']
    #allocation8 [shape = 'u8[8192]{0}', space=vmem, size = 0x2000, scoped, tag = 'output window, operand 0, single buffered']
    %9 = vsyncpa [#allocation6], 0
    %10 = vsyncpa [#allocation7], 0
    // Predicated region
    $region2: #{tpu_custom_call.1} parent=1 // pred_check
      _
    $region3: #{tpu_custom_call.1} parent=1 // pred_check_branch
      %12 = sbr.rel (0) target = $region5
    $region4: #{tpu_custom_call.1} parent=1 // pred_region
      %14 = vsyncadd [#allocation6], 0
      %s15 = sshll.u32 %s0, 4
      %s16 = int_to_ptr.hbm [resolvable:$true] %s15
      %s17 = sshll.u32 [#allocation5], 4
      %s18 = int_to_ptr.vmem [resolvable:$true] %s17
      %23 = dma.hbm_to_vmem [thread:$0]  %s16, 512, %s18, [#allocation6], 256, 256, 16
    $region5: #{tpu_custom_call.1} parent=1 // pred_fallthru
      _
    // Predicated region
    $region6: #{tpu_custom_call.1} parent=1 // pred_check
      _
    $region7: #{tpu_custom_call.1} parent=1 // pred_check_branch
      %25 = sbr.rel (0) target = $region9
    $region8: #{tpu_custom_call.1} parent=1 // pred_region
      _
    $region9: #{tpu_custom_call.1} parent=1 // pred_fallthru
      _
    // Predicated region
    $region10: #{tpu_custom_call.1} parent=1 // pred_check
      _
    $region11: #{tpu_custom_call.1} parent=1 // pred_check_branch
      %27 = sbr.rel (0) target = $region13
    $region12: #{tpu_custom_call.1} parent=1 // pred_region
      _
    $region13: #{tpu_custom_call.1} parent=1 // pred_fallthru
      _
    // Predicated region
    $region14: #{tpu_custom_call.1} parent=1 // pred_check
      _
    $region15: #{tpu_custom_call.1} parent=1 // pred_check_branch
      %29 = sbr.rel (0) target = $region17
    $region16: #{tpu_custom_call.1} parent=1 // pred_region
      _
    $region17: #{tpu_custom_call.1} parent=1 // pred_fallthru
      _
    // Predicated region
    $region18: #{tpu_custom_call.1} parent=1 // pred_check
      _
    $region19: #{tpu_custom_call.1} parent=1 // pred_check_branch
      %31 = sbr.rel (0) target = $region21
    $region20: #{tpu_custom_call.1} parent=1 // pred_region
      %33 = dma.done [#allocation6], 512
    $region21: #{tpu_custom_call.1} parent=1 // pred_fallthru
      _
    %vm34 = vcmask 138240
    %35 = vst.msk [vmem:[#allocation2] sm:$0xff] %vm34, 0.0
    %vm36 = vcmask 277640
    %37 = vst.msk [vmem:[#allocation2 + $0x10] sm:$0xff] %vm36, 0.0
    %v38 = vlaneseq
    %v39 = vand.u32 %v38, 127
    %v40 = vadd.s32 %v39, 128
    %vm41 = vcmp.lt.s32.totalorder %v39, 0
    %v42 = vsub.s32 0, %v39
    %v43 = vsel %vm41, %v42, %v39
    %v44 = vshrl.u32 %v43, 4
    %v45 = vand.u32 %v43, 15
    %v46 = vsub.s32 0, %v45
    %v47 = vsel %vm41, %v46, %v45
    %vm48 = vcmp.lt.s32.totalorder %v40, 0
    %v49 = vsub.s32 0, %v40
    %v50 = vsel %vm48, %v49, %v40
    %v51 = vshrl.u32 %v50, 4
    %v52 = vand.u32 %v50, 15
    %v53 = vsub.s32 0, %v52
    %v54 = vsel %vm48, %v53, %v52
    %vm55 = vcmp.ne.s32.totalorder %v47, 0
    %vm56 = vcmp.ne.s32.totalorder %v54, 0
    %vm57 = vcmp.lt.s32.totalorder %v47, 0
    %vm58 = vcmp.lt.s32.totalorder %v54, 0
    %vm59 = vmand %vm57, %vm55
    %vm60 = vmand %vm58, %vm56
    %v61 = vadd.s32 %v47, 16
    %v62 = vadd.s32 %v54, 16
    %v63 = vsel %vm59, %v61, %v47
    %v64 = vsel %vm60, %v62, %v54
    %vm65 = vcmp.ge.s32.totalorder %v63, 1
    %vm66 = vcmp.ge.s32.totalorder %v64, 1
    %vm67 = vcmp.lt.s32.totalorder %v63, 15
    %vm68 = vcmp.lt.s32.totalorder %v64, 15
    %v69 = vld [vmem:[#allocation5] sm:$0xff]
    %v70 = vld [vmem:[#allocation5 + $0x8] sm:$0xff]
    %73 = vrot.lane.b32.xlu0 %v69, 17
    %v74 = vpop.permute.xlu0 %73
    %75 = vrot.lane.b32.xlu0 %v70, 17
    %v76 = vpop.permute.xlu0 %75
    %v77 = vsel %vm34, %v74, %v76
    %vm81 = vcmask 1047688
    %82 = vst.msk [vmem:[#allocation2] sm:$0xff] %vm81, %v74
    %83 = vst [vmem:[#allocation2 + $0x8] sm:$0xff] %v77
    %84 = vst.msk [vmem:[#allocation2 + $0x10] sm:$0xff] %vm34, %v76
    %v85 = vld [vmem:[#allocation2] sm:$0xff]
    %v86 = vld [vmem:[#allocation2 + $0x8] sm:$0xff]
    %v87 = vsel %vm65, 1, 0
    %v88 = vsel %vm66, 1, 0
    %vm89 = vcmp.eq.s32.totalorder %v87, 1
    %vm90 = vcmp.eq.s32.totalorder %v88, 1
    %v91 = vsel %vm89, %v85, 0.0
    %v92 = vsel %vm90, %v86, 0.0
    %93 = vst [vmem:[#allocation3] sm:$0xff] %v91
    %94 = vst [vmem:[#allocation3 + $0x8] sm:$0xff] %v92
    %v95 = vld [vmem:[#allocation2] sm:$0xff]
    %v96 = vld [vmem:[#allocation2 + $0x8] sm:$0xff]
    %v97 = vld [vmem:[#allocation2 + $0x10] sm:$0xff]
    %101 = vrot.lane.b32.xlu0 %v95, 127
    %v102 = vpop.permute.xlu0 %101
    %103 = vrot.lane.b32.xlu0 %v96, 127
    %v104 = vpop.permute.xlu0 %103
    %105 = vrot.lane.b32.xlu0 %v97, 127
    %v106 = vpop.permute.xlu0 %105
    %vm107 = vcmask 1039360
    %v108 = vsel %vm107, %v102, %v104
    %v109 = vsel %vm107, %v104, %v106
    %112 = vst [vmem:[#allocation3 + $0x20] sm:$0xff] %v108
    %113 = vst [vmem:[#allocation3 + $0x28] sm:$0xff] %v109
    %v114 = vld [vmem:[#allocation2] sm:$0xff]
    %v115 = vld [vmem:[#allocation2 + $0x8] sm:$0xff]
    %v116 = vld [vmem:[#allocation2 + $0x10] sm:$0xff]
    %v117 = vsel %vm67, 1, 0
    %v118 = vsel %vm68, 1, 0
    %vm119 = vcmp.eq.s32.totalorder %v117, 1
    %vm120 = vcmp.eq.s32.totalorder %v118, 1
    %124 = vrot.lane.b32.xlu0 %v114, 126
    %v125 = vpop.permute.xlu0 %124
    %126 = vrot.lane.b32.xlu0 %v115, 126
    %v127 = vpop.permute.xlu0 %126
    %128 = vrot.lane.b32.xlu0 %v116, 126
    %v129 = vpop.permute.xlu0 %128
    %vm130 = vcmask 1031168
    %v131 = vsel %vm130, %v125, %v127
    %v132 = vsel %vm130, %v127, %v129
    %v135 = vsel %vm119, %v131, 0.0
    %v136 = vsel %vm120, %v132, 0.0
    %137 = vst [vmem:[#allocation3 + $0x40] sm:$0xff] %v135
    %138 = vst [vmem:[#allocation3 + $0x48] sm:$0xff] %v136
    %v139 = vld [vmem:[#allocation2] sm:$0xff]
    %v140 = vld [vmem:[#allocation2 + $0x8] sm:$0xff]
    %v141 = vld [vmem:[#allocation2 + $0x10] sm:$0xff]
    %145 = vrot.lane.b32.xlu0 %v139, 112
    %v146 = vpop.permute.xlu0 %145
    %147 = vrot.lane.b32.xlu0 %v140, 112
    %v148 = vpop.permute.xlu0 %147
    %149 = vrot.lane.b32.xlu0 %v141, 112
    %v150 = vpop.permute.xlu0 %149
    %vm151 = vcmask 916480
    %v152 = vsel %vm151, %v146, %v148
    %v153 = vsel %vm151, %v148, %v150
    %v156 = vsel %vm89, %v152, 0.0
    %v157 = vsel %vm90, %v153, 0.0
    %158 = vst [vmem:[#allocation3 + $0x60] sm:$0xff] %v156
    %159 = vst [vmem:[#allocation3 + $0x68] sm:$0xff] %v157
    %v160 = vld [vmem:[#allocation2] sm:$0xff]
    %v161 = vld [vmem:[#allocation2 + $0x8] sm:$0xff]
    %v162 = vld [vmem:[#allocation2 + $0x10] sm:$0xff]
    %166 = vrot.lane.b32.xlu0 %v160, 111
    %v167 = vpop.permute.xlu0 %166
    %168 = vrot.lane.b32.xlu0 %v161, 111
    %v169 = vpop.permute.xlu0 %168
    %170 = vrot.lane.b32.xlu0 %v162, 111
    %v171 = vpop.permute.xlu0 %170
    %vm172 = vcmask 908288
    %v173 = vsel %vm172, %v167, %v169
    %v174 = vsel %vm172, %v169, %v171
    %177 = vst [vmem:[#allocation3 + $0x80] sm:$0xff] %v173
    %178 = vst [vmem:[#allocation3 + $0x88] sm:$0xff] %v174
    %v179 = vld [vmem:[#allocation2] sm:$0xff]
    %v180 = vld [vmem:[#allocation2 + $0x8] sm:$0xff]
    %v181 = vld [vmem:[#allocation2 + $0x10] sm:$0xff]
    %185 = vrot.lane.b32.xlu0 %v179, 110
    %v186 = vpop.permute.xlu0 %185
    %187 = vrot.lane.b32.xlu0 %v180, 110
    %v188 = vpop.permute.xlu0 %187
    %189 = vrot.lane.b32.xlu0 %v181, 110
    %v190 = vpop.permute.xlu0 %189
    %vm191 = vcmask 900096
    %v192 = vsel %vm191, %v186, %v188
    %v193 = vsel %vm191, %v188, %v190
    %v196 = vsel %vm119, %v192, 0.0
    %v197 = vsel %vm120, %v193, 0.0
    %198 = vst [vmem:[#allocation3 + $0xa0] sm:$0xff] %v196
    %199 = vst [vmem:[#allocation3 + $0xa8] sm:$0xff] %v197
    %v200 = vld [vmem:[#allocation2] sm:$0xff]
    %v201 = vld [vmem:[#allocation2 + $0x8] sm:$0xff]
    %v202 = vld [vmem:[#allocation2 + $0x10] sm:$0xff]
    %206 = vrot.lane.b32.xlu0 %v200, 96
    %v207 = vpop.permute.xlu0 %206
    %208 = vrot.lane.b32.xlu0 %v201, 96
    %v209 = vpop.permute.xlu0 %208
    %210 = vrot.lane.b32.xlu0 %v202, 96
    %v211 = vpop.permute.xlu0 %210
    %vm212 = vcmask 785408
    %v213 = vsel %vm212, %v207, %v209
    %v214 = vsel %vm212, %v209, %v211
    %v217 = vsel %vm89, %v213, 0.0
    %v218 = vsel %vm90, %v214, 0.0
    %219 = vst [vmem:[#allocation3 + $0xc0] sm:$0xff] %v217
    %220 = vst [vmem:[#allocation3 + $0xc8] sm:$0xff] %v218
    %v221 = vld [vmem:[#allocation2] sm:$0xff]
    %v222 = vld [vmem:[#allocation2 + $0x8] sm:$0xff]
    %v223 = vld [vmem:[#allocation2 + $0x10] sm:$0xff]
    %227 = vrot.lane.b32.xlu0 %v221, 95
    %v228 = vpop.permute.xlu0 %227
    %229 = vrot.lane.b32.xlu0 %v222, 95
    %v230 = vpop.permute.xlu0 %229
    %231 = vrot.lane.b32.xlu0 %v223, 95
    %v232 = vpop.permute.xlu0 %231
    %vm233 = vcmask 777216
    %v234 = vsel %vm233, %v228, %v230
    %v235 = vsel %vm233, %v230, %v232
    %238 = vst [vmem:[#allocation3 + $0xe0] sm:$0xff] %v234
    %239 = vst [vmem:[#allocation3 + $0xe8] sm:$0xff] %v235
    %v240 = vld [vmem:[#allocation2] sm:$0xff]
    %v241 = vld [vmem:[#allocation2 + $0x8] sm:$0xff]
    %v242 = vld [vmem:[#allocation2 + $0x10] sm:$0xff]
    %246 = vrot.lane.b32.xlu0 %v240, 94
    %v247 = vpop.permute.xlu0 %246
    %248 = vrot.lane.b32.xlu0 %v241, 94
    %v249 = vpop.permute.xlu0 %248
    %250 = vrot.lane.b32.xlu0 %v242, 94
    %v251 = vpop.permute.xlu0 %250
    %vm252 = vcmask 769024
    %v253 = vsel %vm252, %v247, %v249
    %v254 = vsel %vm252, %v249, %v251
    %v257 = vsel %vm119, %v253, 0.0
    %v258 = vsel %vm120, %v254, 0.0
    %259 = vst [vmem:[#allocation3 + $0x100] sm:$0xff] %v257
    %260 = vst [vmem:[#allocation3 + $0x108] sm:$0xff] %v258
    %s261 = scalar_lea.vmem [#allocation5], 16
    %v262 = vld [vmem:[%s261] sm:$0xff]
    %v263 = vld [vmem:[%s261 + $0x8] sm:$0xff]
    %266 = vrot.lane.b32.xlu0 %v262, 17
    %v267 = vpop.permute.xlu0 %266
    %268 = vrot.lane.b32.xlu0 %v263, 17
    %v269 = vpop.permute.xlu0 %268
    %v270 = vsel %vm34, %v267, %v269
    %274 = vst.msk [vmem:[#allocation2] sm:$0xff] %vm81, %v267
    %275 = vst [vmem:[#allocation2 + $0x8] sm:$0xff] %v270
    %276 = vst.msk [vmem:[#allocation2 + $0x10] sm:$0xff] %vm34, %v269
    %v277 = vld [vmem:[#allocation2] sm:$0xff]
    %v278 = vld [vmem:[#allocation2 + $0x8] sm:$0xff]
    %v279 = vsel %vm89, %v277, 0.0
    %v280 = vsel %vm90, %v278, 0.0
    %281 = vst [vmem:[#allocation3 + $0x10] sm:$0xff] %v279
    %282 = vst [vmem:[#allocation3 + $0x18] sm:$0xff] %v280
    %v283 = vld [vmem:[#allocation2] sm:$0xff]
    %v284 = vld [vmem:[#allocation2 + $0x8] sm:$0xff]
    %v285 = vld [vmem:[#allocation2 + $0x10] sm:$0xff]
    %289 = vrot.lane.b32.xlu0 %v283, 127
    %v290 = vpop.permute.xlu0 %289
    %291 = vrot.lane.b32.xlu0 %v284, 127
    %v292 = vpop.permute.xlu0 %291
    %293 = vrot.lane.b32.xlu0 %v285, 127
    %v294 = vpop.permute.xlu0 %293
    %v295 = vsel %vm107, %v290, %v292
    %v296 = vsel %vm107, %v292, %v294
    %299 = vst [vmem:[#allocation3 + $0x30] sm:$0xff] %v295
    %300 = vst [vmem:[#allocation3 + $0x38] sm:$0xff] %v296
    %v301 = vld [vmem:[#allocation2] sm:$0xff]
    %v302 = vld [vmem:[#allocation2 + $0x8] sm:$0xff]
    %v303 = vld [vmem:[#allocation2 + $0x10] sm:$0xff]
    %307 = vrot.lane.b32.xlu0 %v301, 126
    %v308 = vpop.permute.xlu0 %307
    %309 = vrot.lane.b32.xlu0 %v302, 126
    %v310 = vpop.permute.xlu0 %309
    %311 = vrot.lane.b32.xlu0 %v303, 126
    %v312 = vpop.permute.xlu0 %311
    %v313 = vsel %vm130, %v308, %v310
    %v314 = vsel %vm130, %v310, %v312
    %v317 = vsel %vm119, %v313, 0.0
    %v318 = vsel %vm120, %v314, 0.0
    %319 = vst [vmem:[#allocation3 + $0x50] sm:$0xff] %v317
    %320 = vst [vmem:[#allocation3 + $0x58] sm:$0xff] %v318
    %v321 = vld [vmem:[#allocation2] sm:$0xff]
    %v322 = vld [vmem:[#allocation2 + $0x8] sm:$0xff]
    %v323 = vld [vmem:[#allocation2 + $0x10] sm:$0xff]
    %327 = vrot.lane.b32.xlu0 %v321, 112
    %v328 = vpop.permute.xlu0 %327
    %329 = vrot.lane.b32.xlu0 %v322, 112
    %v330 = vpop.permute.xlu0 %329
    %331 = vrot.lane.b32.xlu0 %v323, 112
    %v332 = vpop.permute.xlu0 %331
    %v333 = vsel %vm151, %v328, %v330
    %v334 = vsel %vm151, %v330, %v332
    %v337 = vsel %vm89, %v333, 0.0
    %v338 = vsel %vm90, %v334, 0.0
    %339 = vst [vmem:[#allocation3 + $0x70] sm:$0xff] %v337
    %340 = vst [vmem:[#allocation3 + $0x78] sm:$0xff] %v338
    %v341 = vld [vmem:[#allocation2] sm:$0xff]
    %v342 = vld [vmem:[#allocation2 + $0x8] sm:$0xff]
    %v343 = vld [vmem:[#allocation2 + $0x10] sm:$0xff]
    %347 = vrot.lane.b32.xlu0 %v341, 111
    %v348 = vpop.permute.xlu0 %347
    %349 = vrot.lane.b32.xlu0 %v342, 111
    %v350 = vpop.permute.xlu0 %349
    %351 = vrot.lane.b32.xlu0 %v343, 111
    %v352 = vpop.permute.xlu0 %351
    %v353 = vsel %vm172, %v348, %v350
    %v354 = vsel %vm172, %v350, %v352
    %357 = vst [vmem:[#allocation3 + $0x90] sm:$0xff] %v353
    %358 = vst [vmem:[#allocation3 + $0x98] sm:$0xff] %v354
    %v359 = vld [vmem:[#allocation2] sm:$0xff]
    %v360 = vld [vmem:[#allocation2 + $0x8] sm:$0xff]
    %v361 = vld [vmem:[#allocation2 + $0x10] sm:$0xff]
    %365 = vrot.lane.b32.xlu0 %v359, 110
    %v366 = vpop.permute.xlu0 %365
    %367 = vrot.lane.b32.xlu0 %v360, 110
    %v368 = vpop.permute.xlu0 %367
    %369 = vrot.lane.b32.xlu0 %v361, 110
    %v370 = vpop.permute.xlu0 %369
    %v371 = vsel %vm191, %v366, %v368
    %v372 = vsel %vm191, %v368, %v370
    %v375 = vsel %vm119, %v371, 0.0
    %v376 = vsel %vm120, %v372, 0.0
    %377 = vst [vmem:[#allocation3 + $0xb0] sm:$0xff] %v375
    %378 = vst [vmem:[#allocation3 + $0xb8] sm:$0xff] %v376
    %v379 = vld [vmem:[#allocation2] sm:$0xff]
    %v380 = vld [vmem:[#allocation2 + $0x8] sm:$0xff]
    %v381 = vld [vmem:[#allocation2 + $0x10] sm:$0xff]
    %385 = vrot.lane.b32.xlu0 %v379, 96
    %v386 = vpop.permute.xlu0 %385
    %387 = vrot.lane.b32.xlu0 %v380, 96
    %v388 = vpop.permute.xlu0 %387
    %389 = vrot.lane.b32.xlu0 %v381, 96
    %v390 = vpop.permute.xlu0 %389
    %v391 = vsel %vm212, %v386, %v388
    %v392 = vsel %vm212, %v388, %v390
    %v395 = vsel %vm89, %v391, 0.0
    %v396 = vsel %vm90, %v392, 0.0
    %397 = vst [vmem:[#allocation3 + $0xd0] sm:$0xff] %v395
    %398 = vst [vmem:[#allocation3 + $0xd8] sm:$0xff] %v396
    %v399 = vld [vmem:[#allocation2] sm:$0xff]
    %v400 = vld [vmem:[#allocation2 + $0x8] sm:$0xff]
    %v401 = vld [vmem:[#allocation2 + $0x10] sm:$0xff]
    %405 = vrot.lane.b32.xlu0 %v399, 95
    %v406 = vpop.permute.xlu0 %405
    %407 = vrot.lane.b32.xlu0 %v400, 95
    %v408 = vpop.permute.xlu0 %407
    %409 = vrot.lane.b32.xlu0 %v401, 95
    %v410 = vpop.permute.xlu0 %409
    %v411 = vsel %vm233, %v406, %v408
    %v412 = vsel %vm233, %v408, %v410
    %415 = vst [vmem:[#allocation3 + $0xf0] sm:$0xff] %v411
    %416 = vst [vmem:[#allocation3 + $0xf8] sm:$0xff] %v412
    %v417 = vld [vmem:[#allocation2] sm:$0xff]
    %v418 = vld [vmem:[#allocation2 + $0x8] sm:$0xff]
    %v419 = vld [vmem:[#allocation2 + $0x10] sm:$0xff]
    %423 = vrot.lane.b32.xlu0 %v417, 94
    %v424 = vpop.permute.xlu0 %423
    %425 = vrot.lane.b32.xlu0 %v418, 94
    %v426 = vpop.permute.xlu0 %425
    %427 = vrot.lane.b32.xlu0 %v419, 94
    %v428 = vpop.permute.xlu0 %427
    %v429 = vsel %vm252, %v424, %v426
    %v430 = vsel %vm252, %v426, %v428
    %v433 = vsel %vm119, %v429, 0.0
    %v434 = vsel %vm120, %v430, 0.0
    %435 = vst [vmem:[#allocation3 + $0x110] sm:$0xff] %v433
    %436 = vst [vmem:[#allocation3 + $0x118] sm:$0xff] %v434
    %v437 = vld [vmem:[%s1] sm:$0xff]
    %v438 = vld [vmem:[#allocation3] sm:$0xff]
    %v439 = vld [vmem:[#allocation3 + $0x8] sm:$0xff]
    %v440 = vld [vmem:[#allocation3 + $0x10] sm:$0xff]
    %v441 = vld [vmem:[#allocation3 + $0x18] sm:$0xff]
    %v442 = vld [vmem:[#allocation3 + $0x20] sm:$0xff]
    %v443 = vld [vmem:[#allocation3 + $0x28] sm:$0xff]
    %v444 = vld [vmem:[#allocation3 + $0x30] sm:$0xff]
    %v445 = vld [vmem:[#allocation3 + $0x38] sm:$0xff]
    %v446 = vld [vmem:[#allocation3 + $0x40] sm:$0xff]
    %v447 = vld [vmem:[#allocation3 + $0x48] sm:$0xff]
    %v448 = vld [vmem:[#allocation3 + $0x50] sm:$0xff]
    %v449 = vld [vmem:[#allocation3 + $0x58] sm:$0xff]
    %v450 = vld [vmem:[#allocation3 + $0x60] sm:$0xff]
    %v451 = vld [vmem:[#allocation3 + $0x68] sm:$0xff]
    %v452 = vld [vmem:[#allocation3 + $0x70] sm:$0xff]
    %v453 = vld [vmem:[#allocation3 + $0x78] sm:$0xff]
    %v454 = vld [vmem:[#allocation3 + $0x80] sm:$0xff]
    %v455 = vld [vmem:[#allocation3 + $0x88] sm:$0xff]
    %v456 = vld [vmem:[#allocation3 + $0x90] sm:$0xff]
    %v457 = vld [vmem:[#allocation3 + $0x98] sm:$0xff]
    %v458 = vld [vmem:[#allocation3 + $0xa0] sm:$0xff]
    %v459 = vld [vmem:[#allocation3 + $0xa8] sm:$0xff]
    %v460 = vld [vmem:[#allocation3 + $0xb0] sm:$0xff]
    %v461 = vld [vmem:[#allocation3 + $0xb8] sm:$0xff]
    %v462 = vld [vmem:[#allocation3 + $0xc0] sm:$0xff]
    %v463 = vld [vmem:[#allocation3 + $0xc8] sm:$0xff]
    %v464 = vld [vmem:[#allocation3 + $0xd0] sm:$0xff]
    %v465 = vld [vmem:[#allocation3 + $0xd8] sm:$0xff]
    %v466 = vld [vmem:[#allocation3 + $0xe0] sm:$0xff]
    %v467 = vld [vmem:[#allocation3 + $0xe8] sm:$0xff]
    %v468 = vld [vmem:[#allocation3 + $0xf0] sm:$0xff]
    %v469 = vld [vmem:[#allocation3 + $0xf8] sm:$0xff]
    %v470 = vld [vmem:[#allocation3 + $0x100] sm:$0xff]
    %v471 = vld [vmem:[#allocation3 + $0x108] sm:$0xff]
    %v472 = vld [vmem:[#allocation3 + $0x110] sm:$0xff]
    %v473 = vld [vmem:[#allocation3 + $0x118] sm:$0xff]
    %vm474 = vcmask 588800
    %v476 = vsel %vm474, %v437, 0
    %478 = vmatpush.msra.mxu0 0.0
    %479 = vmatpush.msra.mxu0 0.0
    %480 = vmatpush.msra.mxu0 0.0
    %481 = vmatpush.msra.mxu0 0.0
    %482 = vmatpush.msra.mxu0 0.0
    %483 = vmatpush.msra.mxu0 0.0
    %484 = vmatpush.msra.mxu0 0.0
    %485 = vmatpush.msra.mxu0 %v470
    %486 = vmatpush.msra.mxu0 %v466
    %487 = vmatpush.msra.mxu0 %v462
    %488 = vmatpush.msra.mxu0 %v458
    %489 = vmatpush.msra.mxu0 %v454
    %490 = vmatpush.msra.mxu0 %v450
    %491 = vmatpush.msra.mxu0 %v446
    %492 = vmatpush.msra.mxu0 %v442
    %493 = vmatpush.msra.mxu0 %v438
    %494 = vmatmul.f32.gmra.mxu0 %v476
    %v495 = vpop.f32.mrf.mxu0
    %v496 = vadd.f32 0.0, %v495
    %497 = vdwg.mxu0
    %498 = vmatpush.msra.mxu0 0.0
    %499 = vmatpush.msra.mxu0 0.0
    %500 = vmatpush.msra.mxu0 0.0
    %501 = vmatpush.msra.mxu0 0.0
    %502 = vmatpush.msra.mxu0 0.0
    %503 = vmatpush.msra.mxu0 0.0
    %504 = vmatpush.msra.mxu0 0.0
    %505 = vmatpush.msra.mxu0 %v471
    %506 = vmatpush.msra.mxu0 %v467
    %507 = vmatpush.msra.mxu0 %v463
    %508 = vmatpush.msra.mxu0 %v459
    %509 = vmatpush.msra.mxu0 %v455
    %510 = vmatpush.msra.mxu0 %v451
    %511 = vmatpush.msra.mxu0 %v447
    %512 = vmatpush.msra.mxu0 %v443
    %513 = vmatpush.msra.mxu0 %v439
    %514 = vmatmul.f32.gmra.mxu0 %v476
    %v515 = vpop.f32.mrf.mxu0
    %v516 = vadd.f32 0.0, %v515
    %517 = vdwg.mxu0
    %518 = vmatpush.msra.mxu0 0.0
    %519 = vmatpush.msra.mxu0 0.0
    %520 = vmatpush.msra.mxu0 0.0
    %521 = vmatpush.msra.mxu0 0.0
    %522 = vmatpush.msra.mxu0 0.0
    %523 = vmatpush.msra.mxu0 0.0
    %524 = vmatpush.msra.mxu0 0.0
    %525 = vmatpush.msra.mxu0 %v472
    %526 = vmatpush.msra.mxu0 %v468
    %527 = vmatpush.msra.mxu0 %v464
    %528 = vmatpush.msra.mxu0 %v460
    %529 = vmatpush.msra.mxu0 %v456
    %530 = vmatpush.msra.mxu0 %v452
    %531 = vmatpush.msra.mxu0 %v448
    %532 = vmatpush.msra.mxu0 %v444
    %533 = vmatpush.msra.mxu0 %v440
    %534 = vmatmul.f32.gmra.mxu0 %v476
    %v535 = vpop.f32.mrf.mxu0
    %v536 = vadd.f32 0.0, %v535
    %537 = vdwg.mxu0
    %538 = vmatpush.msra.mxu0 0.0
    %539 = vmatpush.msra.mxu0 0.0
    %540 = vmatpush.msra.mxu0 0.0
    %541 = vmatpush.msra.mxu0 0.0
    %542 = vmatpush.msra.mxu0 0.0
    %543 = vmatpush.msra.mxu0 0.0
    %544 = vmatpush.msra.mxu0 0.0
    %545 = vmatpush.msra.mxu0 %v473
    %546 = vmatpush.msra.mxu0 %v469
    %547 = vmatpush.msra.mxu0 %v465
    %548 = vmatpush.msra.mxu0 %v461
    %549 = vmatpush.msra.mxu0 %v457
    %550 = vmatpush.msra.mxu0 %v453
    %551 = vmatpush.msra.mxu0 %v449
    %552 = vmatpush.msra.mxu0 %v445
    %553 = vmatpush.msra.mxu0 %v441
    %554 = vmatmul.f32.gmra.mxu0 %v476
    %v555 = vpop.f32.mrf.mxu0
    %v556 = vadd.f32 0.0, %v555
    %557 = vdwg.mxu0
    %559 = vrot.lane.b32.xlu0 %v496, 126
    %v560 = vpop.permute.xlu0 %559
    %562 = vrot.lane.b32.xlu0 %v496, 124
    %v563 = vpop.permute.xlu0 %562
    %565 = vrot.lane.b32.xlu0 %v496, 122
    %v566 = vpop.permute.xlu0 %565
    %568 = vrot.lane.b32.xlu0 %v496, 120
    %v569 = vpop.permute.xlu0 %568
    %571 = vrot.lane.b32.xlu0 %v496, 118
    %v572 = vpop.permute.xlu0 %571
    %574 = vrot.lane.b32.xlu0 %v496, 116
    %v575 = vpop.permute.xlu0 %574
    %577 = vrot.lane.b32.xlu0 %v496, 114
    %v578 = vpop.permute.xlu0 %577
    %580 = vrot.lane.b32.xlu0 %v496, 112
    %v581 = vpop.permute.xlu0 %580
    %583 = vrot.lane.b32.xlu0 %v496, 110
    %v584 = vpop.permute.xlu0 %583
    %586 = vrot.lane.b32.xlu0 %v496, 108
    %v587 = vpop.permute.xlu0 %586
    %589 = vrot.lane.b32.xlu0 %v496, 106
    %v590 = vpop.permute.xlu0 %589
    %592 = vrot.lane.b32.xlu0 %v496, 104
    %v593 = vpop.permute.xlu0 %592
    %595 = vrot.lane.b32.xlu0 %v496, 102
    %v596 = vpop.permute.xlu0 %595
    %598 = vrot.lane.b32.xlu0 %v496, 100
    %v599 = vpop.permute.xlu0 %598
    %601 = vrot.lane.b32.xlu0 %v496, 98
    %v602 = vpop.permute.xlu0 %601
    %604 = vrot.lane.b32.xlu0 %v496, 96
    %v605 = vpop.permute.xlu0 %604
    %607 = vrot.lane.b32.xlu0 %v496, 94
    %v608 = vpop.permute.xlu0 %607
    %610 = vrot.lane.b32.xlu0 %v496, 92
    %v611 = vpop.permute.xlu0 %610
    %613 = vrot.lane.b32.xlu0 %v496, 90
    %v614 = vpop.permute.xlu0 %613
    %616 = vrot.lane.b32.xlu0 %v496, 88
    %v617 = vpop.permute.xlu0 %616
    %619 = vrot.lane.b32.xlu0 %v496, 86
    %v620 = vpop.permute.xlu0 %619
    %622 = vrot.lane.b32.xlu0 %v496, 84
    %v623 = vpop.permute.xlu0 %622
    %625 = vrot.lane.b32.xlu0 %v496, 82
    %v626 = vpop.permute.xlu0 %625
    %628 = vrot.lane.b32.xlu0 %v496, 80
    %v629 = vpop.permute.xlu0 %628
    %631 = vrot.lane.b32.xlu0 %v496, 78
    %v632 = vpop.permute.xlu0 %631
    %634 = vrot.lane.b32.xlu0 %v496, 76
    %v635 = vpop.permute.xlu0 %634
    %637 = vrot.lane.b32.xlu0 %v496, 74
    %v638 = vpop.permute.xlu0 %637
    %640 = vrot.lane.b32.xlu0 %v496, 72
    %v641 = vpop.permute.xlu0 %640
    %643 = vrot.lane.b32.xlu0 %v496, 70
    %v644 = vpop.permute.xlu0 %643
    %646 = vrot.lane.b32.xlu0 %v496, 68
    %v647 = vpop.permute.xlu0 %646
    %649 = vrot.lane.b32.xlu0 %v496, 66
    %v650 = vpop.permute.xlu0 %649
    %652 = vrot.lane.b32.xlu0 %v496, 64
    %v653 = vpop.permute.xlu0 %652
    %655 = vrot.lane.b32.xlu0 %v496, 62
    %v656 = vpop.permute.xlu0 %655
    %658 = vrot.lane.b32.xlu0 %v496, 60
    %v659 = vpop.permute.xlu0 %658
    %661 = vrot.lane.b32.xlu0 %v496, 58
    %v662 = vpop.permute.xlu0 %661
    %664 = vrot.lane.b32.xlu0 %v496, 56
    %v665 = vpop.permute.xlu0 %664
    %667 = vrot.lane.b32.xlu0 %v496, 54
    %v668 = vpop.permute.xlu0 %667
    %670 = vrot.lane.b32.xlu0 %v496, 52
    %v671 = vpop.permute.xlu0 %670
    %673 = vrot.lane.b32.xlu0 %v496, 50
    %v674 = vpop.permute.xlu0 %673
    %676 = vrot.lane.b32.xlu0 %v496, 48
    %v677 = vpop.permute.xlu0 %676
    %679 = vrot.lane.b32.xlu0 %v496, 46
    %v680 = vpop.permute.xlu0 %679
    %682 = vrot.lane.b32.xlu0 %v496, 44
    %v683 = vpop.permute.xlu0 %682
    %685 = vrot.lane.b32.xlu0 %v496, 42
    %v686 = vpop.permute.xlu0 %685
    %688 = vrot.lane.b32.xlu0 %v496, 40
    %v689 = vpop.permute.xlu0 %688
    %691 = vrot.lane.b32.xlu0 %v496, 38
    %v692 = vpop.permute.xlu0 %691
    %694 = vrot.lane.b32.xlu0 %v496, 36
    %v695 = vpop.permute.xlu0 %694
    %697 = vrot.lane.b32.xlu0 %v496, 34
    %v698 = vpop.permute.xlu0 %697
    %700 = vrot.lane.b32.xlu0 %v496, 32
    %v701 = vpop.permute.xlu0 %700
    %703 = vrot.lane.b32.xlu0 %v496, 30
    %v704 = vpop.permute.xlu0 %703
    %706 = vrot.lane.b32.xlu0 %v496, 28
    %v707 = vpop.permute.xlu0 %706
    %709 = vrot.lane.b32.xlu0 %v496, 26
    %v710 = vpop.permute.xlu0 %709
    %712 = vrot.lane.b32.xlu0 %v496, 24
    %v713 = vpop.permute.xlu0 %712
    %715 = vrot.lane.b32.xlu0 %v496, 22
    %v716 = vpop.permute.xlu0 %715
    %718 = vrot.lane.b32.xlu0 %v496, 20
    %v719 = vpop.permute.xlu0 %718
    %721 = vrot.lane.b32.xlu0 %v496, 18
    %v722 = vpop.permute.xlu0 %721
    %724 = vrot.lane.b32.xlu0 %v496, 16
    %v725 = vpop.permute.xlu0 %724
    %727 = vrot.lane.b32.xlu0 %v496, 14
    %v728 = vpop.permute.xlu0 %727
    %730 = vrot.lane.b32.xlu0 %v496, 12
    %v731 = vpop.permute.xlu0 %730
    %733 = vrot.lane.b32.xlu0 %v496, 10
    %v734 = vpop.permute.xlu0 %733
    %736 = vrot.lane.b32.xlu0 %v496, 8
    %v737 = vpop.permute.xlu0 %736
    %739 = vrot.lane.b32.xlu0 %v496, 6
    %v740 = vpop.permute.xlu0 %739
    %742 = vrot.lane.b32.xlu0 %v496, 4
    %v743 = vpop.permute.xlu0 %742
    %745 = vrot.lane.b32.xlu0 %v496, 2
    %v746 = vpop.permute.xlu0 %745
    %749 = vrot.lane.b32.xlu0 %v516, 126
    %v750 = vpop.permute.xlu0 %749
    %752 = vrot.lane.b32.xlu0 %v516, 124
    %v753 = vpop.permute.xlu0 %752
    %755 = vrot.lane.b32.xlu0 %v516, 122
    %v756 = vpop.permute.xlu0 %755
    %758 = vrot.lane.b32.xlu0 %v516, 120
    %v759 = vpop.permute.xlu0 %758
    %761 = vrot.lane.b32.xlu0 %v516, 118
    %v762 = vpop.permute.xlu0 %761
    %764 = vrot.lane.b32.xlu0 %v516, 116
    %v765 = vpop.permute.xlu0 %764
    %767 = vrot.lane.b32.xlu0 %v516, 114
    %v768 = vpop.permute.xlu0 %767
    %770 = vrot.lane.b32.xlu0 %v516, 112
    %v771 = vpop.permute.xlu0 %770
    %773 = vrot.lane.b32.xlu0 %v516, 110
    %v774 = vpop.permute.xlu0 %773
    %776 = vrot.lane.b32.xlu0 %v516, 108
    %v777 = vpop.permute.xlu0 %776
    %779 = vrot.lane.b32.xlu0 %v516, 106
    %v780 = vpop.permute.xlu0 %779
    %782 = vrot.lane.b32.xlu0 %v516, 104
    %v783 = vpop.permute.xlu0 %782
    %785 = vrot.lane.b32.xlu0 %v516, 102
    %v786 = vpop.permute.xlu0 %785
    %788 = vrot.lane.b32.xlu0 %v516, 100
    %v789 = vpop.permute.xlu0 %788
    %791 = vrot.lane.b32.xlu0 %v516, 98
    %v792 = vpop.permute.xlu0 %791
    %794 = vrot.lane.b32.xlu0 %v516, 96
    %v795 = vpop.permute.xlu0 %794
    %797 = vrot.lane.b32.xlu0 %v516, 94
    %v798 = vpop.permute.xlu0 %797
    %800 = vrot.lane.b32.xlu0 %v516, 92
    %v801 = vpop.permute.xlu0 %800
    %803 = vrot.lane.b32.xlu0 %v516, 90
    %v804 = vpop.permute.xlu0 %803
    %806 = vrot.lane.b32.xlu0 %v516, 88
    %v807 = vpop.permute.xlu0 %806
    %809 = vrot.lane.b32.xlu0 %v516, 86
    %v810 = vpop.permute.xlu0 %809
    %812 = vrot.lane.b32.xlu0 %v516, 84
    %v813 = vpop.permute.xlu0 %812
    %815 = vrot.lane.b32.xlu0 %v516, 82
    %v816 = vpop.permute.xlu0 %815
    %818 = vrot.lane.b32.xlu0 %v516, 80
    %v819 = vpop.permute.xlu0 %818
    %821 = vrot.lane.b32.xlu0 %v516, 78
    %v822 = vpop.permute.xlu0 %821
    %824 = vrot.lane.b32.xlu0 %v516, 76
    %v825 = vpop.permute.xlu0 %824
    %827 = vrot.lane.b32.xlu0 %v516, 74
    %v828 = vpop.permute.xlu0 %827
    %830 = vrot.lane.b32.xlu0 %v516, 72
    %v831 = vpop.permute.xlu0 %830
    %833 = vrot.lane.b32.xlu0 %v516, 70
    %v834 = vpop.permute.xlu0 %833
    %836 = vrot.lane.b32.xlu0 %v516, 68
    %v837 = vpop.permute.xlu0 %836
    %839 = vrot.lane.b32.xlu0 %v516, 66
    %v840 = vpop.permute.xlu0 %839
    %842 = vrot.lane.b32.xlu0 %v516, 64
    %v843 = vpop.permute.xlu0 %842
    %845 = vrot.lane.b32.xlu0 %v516, 62
    %v846 = vpop.permute.xlu0 %845
    %848 = vrot.lane.b32.xlu0 %v516, 60
    %v849 = vpop.permute.xlu0 %848
    %851 = vrot.lane.b32.xlu0 %v516, 58
    %v852 = vpop.permute.xlu0 %851
    %854 = vrot.lane.b32.xlu0 %v516, 56
    %v855 = vpop.permute.xlu0 %854
    %857 = vrot.lane.b32.xlu0 %v516, 54
    %v858 = vpop.permute.xlu0 %857
    %860 = vrot.lane.b32.xlu0 %v516, 52
    %v861 = vpop.permute.xlu0 %860
    %863 = vrot.lane.b32.xlu0 %v516, 50
    %v864 = vpop.permute.xlu0 %863
    %866 = vrot.lane.b32.xlu0 %v516, 48
    %v867 = vpop.permute.xlu0 %866
    %869 = vrot.lane.b32.xlu0 %v516, 46
    %v870 = vpop.permute.xlu0 %869
    %872 = vrot.lane.b32.xlu0 %v516, 44
    %v873 = vpop.permute.xlu0 %872
    %875 = vrot.lane.b32.xlu0 %v516, 42
    %v876 = vpop.permute.xlu0 %875
    %878 = vrot.lane.b32.xlu0 %v516, 40
    %v879 = vpop.permute.xlu0 %878
    %881 = vrot.lane.b32.xlu0 %v516, 38
    %v882 = vpop.permute.xlu0 %881
    %884 = vrot.lane.b32.xlu0 %v516, 36
    %v885 = vpop.permute.xlu0 %884
    %887 = vrot.lane.b32.xlu0 %v516, 34
    %v888 = vpop.permute.xlu0 %887
    %890 = vrot.lane.b32.xlu0 %v516, 32
    %v891 = vpop.permute.xlu0 %890
    %893 = vrot.lane.b32.xlu0 %v516, 30
    %v894 = vpop.permute.xlu0 %893
    %896 = vrot.lane.b32.xlu0 %v516, 28
    %v897 = vpop.permute.xlu0 %896
    %899 = vrot.lane.b32.xlu0 %v516, 26
    %v900 = vpop.permute.xlu0 %899
    %902 = vrot.lane.b32.xlu0 %v516, 24
    %v903 = vpop.permute.xlu0 %902
    %905 = vrot.lane.b32.xlu0 %v516, 22
    %v906 = vpop.permute.xlu0 %905
    %908 = vrot.lane.b32.xlu0 %v516, 20
    %v909 = vpop.permute.xlu0 %908
    %911 = vrot.lane.b32.xlu0 %v516, 18
    %v912 = vpop.permute.xlu0 %911
    %914 = vrot.lane.b32.xlu0 %v516, 16
    %v915 = vpop.permute.xlu0 %914
    %917 = vrot.lane.b32.xlu0 %v516, 14
    %v918 = vpop.permute.xlu0 %917
    %920 = vrot.lane.b32.xlu0 %v516, 12
    %v921 = vpop.permute.xlu0 %920
    %923 = vrot.lane.b32.xlu0 %v516, 10
    %v924 = vpop.permute.xlu0 %923
    %926 = vrot.lane.b32.xlu0 %v516, 8
    %v927 = vpop.permute.xlu0 %926
    %929 = vrot.lane.b32.xlu0 %v516, 6
    %v930 = vpop.permute.xlu0 %929
    %932 = vrot.lane.b32.xlu0 %v516, 4
    %v933 = vpop.permute.xlu0 %932
    %935 = vrot.lane.b32.xlu0 %v516, 2
    %v936 = vpop.permute.xlu0 %935
    %939 = vrot.lane.b32.xlu0 %v536, 126
    %v940 = vpop.permute.xlu0 %939
    %942 = vrot.lane.b32.xlu0 %v536, 124
    %v943 = vpop.permute.xlu0 %942
    %945 = vrot.lane.b32.xlu0 %v536, 122
    %v946 = vpop.permute.xlu0 %945
    %948 = vrot.lane.b32.xlu0 %v536, 120
    %v949 = vpop.permute.xlu0 %948
    %951 = vrot.lane.b32.xlu0 %v536, 118
    %v952 = vpop.permute.xlu0 %951
    %954 = vrot.lane.b32.xlu0 %v536, 116
    %v955 = vpop.permute.xlu0 %954
    %957 = vrot.lane.b32.xlu0 %v536, 114
    %v958 = vpop.permute.xlu0 %957
    %960 = vrot.lane.b32.xlu0 %v536, 112
    %v961 = vpop.permute.xlu0 %960
    %963 = vrot.lane.b32.xlu0 %v536, 110
    %v964 = vpop.permute.xlu0 %963
    %966 = vrot.lane.b32.xlu0 %v536, 108
    %v967 = vpop.permute.xlu0 %966
    %969 = vrot.lane.b32.xlu0 %v536, 106
    %v970 = vpop.permute.xlu0 %969
    %972 = vrot.lane.b32.xlu0 %v536, 104
    %v973 = vpop.permute.xlu0 %972
    %975 = vrot.lane.b32.xlu0 %v536, 102
    %v976 = vpop.permute.xlu0 %975
    %978 = vrot.lane.b32.xlu0 %v536, 100
    %v979 = vpop.permute.xlu0 %978
    %981 = vrot.lane.b32.xlu0 %v536, 98
    %v982 = vpop.permute.xlu0 %981
    %984 = vrot.lane.b32.xlu0 %v536, 96
    %v985 = vpop.permute.xlu0 %984
    %987 = vrot.lane.b32.xlu0 %v536, 94
    %v988 = vpop.permute.xlu0 %987
    %990 = vrot.lane.b32.xlu0 %v536, 92
    %v991 = vpop.permute.xlu0 %990
    %993 = vrot.lane.b32.xlu0 %v536, 90
    %v994 = vpop.permute.xlu0 %993
    %996 = vrot.lane.b32.xlu0 %v536, 88
    %v997 = vpop.permute.xlu0 %996
    %999 = vrot.lane.b32.xlu0 %v536, 86
    %v1000 = vpop.permute.xlu0 %999
    %1002 = vrot.lane.b32.xlu0 %v536, 84
    %v1003 = vpop.permute.xlu0 %1002
    %1005 = vrot.lane.b32.xlu0 %v536, 82
    %v1006 = vpop.permute.xlu0 %1005
    %1008 = vrot.lane.b32.xlu0 %v536, 80
    %v1009 = vpop.permute.xlu0 %1008
    %1011 = vrot.lane.b32.xlu0 %v536, 78
    %v1012 = vpop.permute.xlu0 %1011
    %1014 = vrot.lane.b32.xlu0 %v536, 76
    %v1015 = vpop.permute.xlu0 %1014
    %1017 = vrot.lane.b32.xlu0 %v536, 74
    %v1018 = vpop.permute.xlu0 %1017
    %1020 = vrot.lane.b32.xlu0 %v536, 72
    %v1021 = vpop.permute.xlu0 %1020
    %1023 = vrot.lane.b32.xlu0 %v536, 70
    %v1024 = vpop.permute.xlu0 %1023
    %1026 = vrot.lane.b32.xlu0 %v536, 68
    %v1027 = vpop.permute.xlu0 %1026
    %1029 = vrot.lane.b32.xlu0 %v536, 66
    %v1030 = vpop.permute.xlu0 %1029
    %1032 = vrot.lane.b32.xlu0 %v536, 64
    %v1033 = vpop.permute.xlu0 %1032
    %1035 = vrot.lane.b32.xlu0 %v536, 62
    %v1036 = vpop.permute.xlu0 %1035
    %1038 = vrot.lane.b32.xlu0 %v536, 60
    %v1039 = vpop.permute.xlu0 %1038
    %1041 = vrot.lane.b32.xlu0 %v536, 58
    %v1042 = vpop.permute.xlu0 %1041
    %1044 = vrot.lane.b32.xlu0 %v536, 56
    %v1045 = vpop.permute.xlu0 %1044
    %1047 = vrot.lane.b32.xlu0 %v536, 54
    %v1048 = vpop.permute.xlu0 %1047
    %1050 = vrot.lane.b32.xlu0 %v536, 52
    %v1051 = vpop.permute.xlu0 %1050
    %1053 = vrot.lane.b32.xlu0 %v536, 50
    %v1054 = vpop.permute.xlu0 %1053
    %1056 = vrot.lane.b32.xlu0 %v536, 48
    %v1057 = vpop.permute.xlu0 %1056
    %1059 = vrot.lane.b32.xlu0 %v536, 46
    %v1060 = vpop.permute.xlu0 %1059
    %1062 = vrot.lane.b32.xlu0 %v536, 44
    %v1063 = vpop.permute.xlu0 %1062
    %1065 = vrot.lane.b32.xlu0 %v536, 42
    %v1066 = vpop.permute.xlu0 %1065
    %1068 = vrot.lane.b32.xlu0 %v536, 40
    %v1069 = vpop.permute.xlu0 %1068
    %1071 = vrot.lane.b32.xlu0 %v536, 38
    %v1072 = vpop.permute.xlu0 %1071
    %1074 = vrot.lane.b32.xlu0 %v536, 36
    %v1075 = vpop.permute.xlu0 %1074
    %1077 = vrot.lane.b32.xlu0 %v536, 34
    %v1078 = vpop.permute.xlu0 %1077
    %1080 = vrot.lane.b32.xlu0 %v536, 32
    %v1081 = vpop.permute.xlu0 %1080
    %1083 = vrot.lane.b32.xlu0 %v536, 30
    %v1084 = vpop.permute.xlu0 %1083
    %1086 = vrot.lane.b32.xlu0 %v536, 28
    %v1087 = vpop.permute.xlu0 %1086
    %1089 = vrot.lane.b32.xlu0 %v536, 26
    %v1090 = vpop.permute.xlu0 %1089
    %1092 = vrot.lane.b32.xlu0 %v536, 24
    %v1093 = vpop.permute.xlu0 %1092
    %1095 = vrot.lane.b32.xlu0 %v536, 22
    %v1096 = vpop.permute.xlu0 %1095
    %1098 = vrot.lane.b32.xlu0 %v536, 20
    %v1099 = vpop.permute.xlu0 %1098
    %1101 = vrot.lane.b32.xlu0 %v536, 18
    %v1102 = vpop.permute.xlu0 %1101
    %1104 = vrot.lane.b32.xlu0 %v536, 16
    %v1105 = vpop.permute.xlu0 %1104
    %1107 = vrot.lane.b32.xlu0 %v536, 14
    %v1108 = vpop.permute.xlu0 %1107
    %1110 = vrot.lane.b32.xlu0 %v536, 12
    %v1111 = vpop.permute.xlu0 %1110
    %1113 = vrot.lane.b32.xlu0 %v536, 10
    %v1114 = vpop.permute.xlu0 %1113
    %1116 = vrot.lane.b32.xlu0 %v536, 8
    %v1117 = vpop.permute.xlu0 %1116
    %1119 = vrot.lane.b32.xlu0 %v536, 6
    %v1120 = vpop.permute.xlu0 %1119
    %1122 = vrot.lane.b32.xlu0 %v536, 4
    %v1123 = vpop.permute.xlu0 %1122
    %1125 = vrot.lane.b32.xlu0 %v536, 2
    %v1126 = vpop.permute.xlu0 %1125
    %1129 = vrot.lane.b32.xlu0 %v556, 126
    %v1130 = vpop.permute.xlu0 %1129
    %1132 = vrot.lane.b32.xlu0 %v556, 124
    %v1133 = vpop.permute.xlu0 %1132
    %1135 = vrot.lane.b32.xlu0 %v556, 122
    %v1136 = vpop.permute.xlu0 %1135
    %1138 = vrot.lane.b32.xlu0 %v556, 120
    %v1139 = vpop.permute.xlu0 %1138
    %1141 = vrot.lane.b32.xlu0 %v556, 118
    %v1142 = vpop.permute.xlu0 %1141
    %1144 = vrot.lane.b32.xlu0 %v556, 116
    %v1145 = vpop.permute.xlu0 %1144
    %1147 = vrot.lane.b32.xlu0 %v556, 114
    %v1148 = vpop.permute.xlu0 %1147
    %1150 = vrot.lane.b32.xlu0 %v556, 112
    %v1151 = vpop.permute.xlu0 %1150
    %1153 = vrot.lane.b32.xlu0 %v556, 110
    %v1154 = vpop.permute.xlu0 %1153
    %1156 = vrot.lane.b32.xlu0 %v556, 108
    %v1157 = vpop.permute.xlu0 %1156
    %1159 = vrot.lane.b32.xlu0 %v556, 106
    %v1160 = vpop.permute.xlu0 %1159
    %1162 = vrot.lane.b32.xlu0 %v556, 104
    %v1163 = vpop.permute.xlu0 %1162
    %1165 = vrot.lane.b32.xlu0 %v556, 102
    %v1166 = vpop.permute.xlu0 %1165
    %1168 = vrot.lane.b32.xlu0 %v556, 100
    %v1169 = vpop.permute.xlu0 %1168
    %1171 = vrot.lane.b32.xlu0 %v556, 98
    %v1172 = vpop.permute.xlu0 %1171
    %1174 = vrot.lane.b32.xlu0 %v556, 96
    %v1175 = vpop.permute.xlu0 %1174
    %1177 = vrot.lane.b32.xlu0 %v556, 94
    %v1178 = vpop.permute.xlu0 %1177
    %1180 = vrot.lane.b32.xlu0 %v556, 92
    %v1181 = vpop.permute.xlu0 %1180
    %1183 = vrot.lane.b32.xlu0 %v556, 90
    %v1184 = vpop.permute.xlu0 %1183
    %1186 = vrot.lane.b32.xlu0 %v556, 88
    %v1187 = vpop.permute.xlu0 %1186
    %1189 = vrot.lane.b32.xlu0 %v556, 86
    %v1190 = vpop.permute.xlu0 %1189
    %1192 = vrot.lane.b32.xlu0 %v556, 84
    %v1193 = vpop.permute.xlu0 %1192
    %1195 = vrot.lane.b32.xlu0 %v556, 82
    %v1196 = vpop.permute.xlu0 %1195
    %1198 = vrot.lane.b32.xlu0 %v556, 80
    %v1199 = vpop.permute.xlu0 %1198
    %1201 = vrot.lane.b32.xlu0 %v556, 78
    %v1202 = vpop.permute.xlu0 %1201
    %1204 = vrot.lane.b32.xlu0 %v556, 76
    %v1205 = vpop.permute.xlu0 %1204
    %1207 = vrot.lane.b32.xlu0 %v556, 74
    %v1208 = vpop.permute.xlu0 %1207
    %1210 = vrot.lane.b32.xlu0 %v556, 72
    %v1211 = vpop.permute.xlu0 %1210
    %1213 = vrot.lane.b32.xlu0 %v556, 70
    %v1214 = vpop.permute.xlu0 %1213
    %1216 = vrot.lane.b32.xlu0 %v556, 68
    %v1217 = vpop.permute.xlu0 %1216
    %1219 = vrot.lane.b32.xlu0 %v556, 66
    %v1220 = vpop.permute.xlu0 %1219
    %1222 = vrot.lane.b32.xlu0 %v556, 64
    %v1223 = vpop.permute.xlu0 %1222
    %1225 = vrot.lane.b32.xlu0 %v556, 62
    %v1226 = vpop.permute.xlu0 %1225
    %1228 = vrot.lane.b32.xlu0 %v556, 60
    %v1229 = vpop.permute.xlu0 %1228
    %1231 = vrot.lane.b32.xlu0 %v556, 58
    %v1232 = vpop.permute.xlu0 %1231
    %1234 = vrot.lane.b32.xlu0 %v556, 56
    %v1235 = vpop.permute.xlu0 %1234
    %1237 = vrot.lane.b32.xlu0 %v556, 54
    %v1238 = vpop.permute.xlu0 %1237
    %1240 = vrot.lane.b32.xlu0 %v556, 52
    %v1241 = vpop.permute.xlu0 %1240
    %1243 = vrot.lane.b32.xlu0 %v556, 50
    %v1244 = vpop.permute.xlu0 %1243
    %1246 = vrot.lane.b32.xlu0 %v556, 48
    %v1247 = vpop.permute.xlu0 %1246
    %1249 = vrot.lane.b32.xlu0 %v556, 46
    %v1250 = vpop.permute.xlu0 %1249
    %1252 = vrot.lane.b32.xlu0 %v556, 44
    %v1253 = vpop.permute.xlu0 %1252
    %1255 = vrot.lane.b32.xlu0 %v556, 42
    %v1256 = vpop.permute.xlu0 %1255
    %1258 = vrot.lane.b32.xlu0 %v556, 40
    %v1259 = vpop.permute.xlu0 %1258
    %1261 = vrot.lane.b32.xlu0 %v556, 38
    %v1262 = vpop.permute.xlu0 %1261
    %1264 = vrot.lane.b32.xlu0 %v556, 36
    %v1265 = vpop.permute.xlu0 %1264
    %1267 = vrot.lane.b32.xlu0 %v556, 34
    %v1268 = vpop.permute.xlu0 %1267
    %1270 = vrot.lane.b32.xlu0 %v556, 32
    %v1271 = vpop.permute.xlu0 %1270
    %1273 = vrot.lane.b32.xlu0 %v556, 30
    %v1274 = vpop.permute.xlu0 %1273
    %1276 = vrot.lane.b32.xlu0 %v556, 28
    %v1277 = vpop.permute.xlu0 %1276
    %1279 = vrot.lane.b32.xlu0 %v556, 26
    %v1280 = vpop.permute.xlu0 %1279
    %1282 = vrot.lane.b32.xlu0 %v556, 24
    %v1283 = vpop.permute.xlu0 %1282
    %1285 = vrot.lane.b32.xlu0 %v556, 22
    %v1286 = vpop.permute.xlu0 %1285
    %1288 = vrot.lane.b32.xlu0 %v556, 20
    %v1289 = vpop.permute.xlu0 %1288
    %1291 = vrot.lane.b32.xlu0 %v556, 18
    %v1292 = vpop.permute.xlu0 %1291
    %1294 = vrot.lane.b32.xlu0 %v556, 16
    %v1295 = vpop.permute.xlu0 %1294
    %1297 = vrot.lane.b32.xlu0 %v556, 14
    %v1298 = vpop.permute.xlu0 %1297
    %1300 = vrot.lane.b32.xlu0 %v556, 12
    %v1301 = vpop.permute.xlu0 %1300
    %1303 = vrot.lane.b32.xlu0 %v556, 10
    %v1304 = vpop.permute.xlu0 %1303
    %1306 = vrot.lane.b32.xlu0 %v556, 8
    %v1307 = vpop.permute.xlu0 %1306
    %1309 = vrot.lane.b32.xlu0 %v556, 6
    %v1310 = vpop.permute.xlu0 %1309
    %1312 = vrot.lane.b32.xlu0 %v556, 4
    %v1313 = vpop.permute.xlu0 %1312
    %1315 = vrot.lane.b32.xlu0 %v556, 2
    %v1316 = vpop.permute.xlu0 %1315
    %v1318 = vrot.slane %v563, 4
    %vm1319 = vcmask 1047556
    %v1320 = vsel %vm1319, %v1318, %v496
    %v1321 = vrot.slane %v496, 4
    %v1322 = vsel %vm1319, %v563, %v1321
    %v1324 = vunpack.c.l.s4 1983009808
    %v1325 = vunpack.c.0.s8 %v1324
    %v1326 = vperm.slane %v1320, %v1325
    %v1328 = vunpack.c.l.s4 1983009808
    %v1329 = vunpack.c.0.s8 %v1328
    %v1330 = vperm.slane %v1322, %v1329
    %v1331 = vrot.slane %v566, 4
    %v1332 = vsel %vm1319, %v1331, %v560
    %v1333 = vrot.slane %v560, 4
    %v1334 = vsel %vm1319, %v566, %v1333
    %v1336 = vunpack.c.l.s4 1983009808
    %v1337 = vunpack.c.0.s8 %v1336
    %v1338 = vperm.slane %v1332, %v1337
    %v1340 = vunpack.c.l.s4 1983009808
    %v1341 = vunpack.c.0.s8 %v1340
    %v1342 = vperm.slane %v1334, %v1341
    %v1343 = vrot.slane %v575, 4
    %v1344 = vsel %vm1319, %v1343, %v569
    %v1345 = vrot.slane %v569, 4
    %v1346 = vsel %vm1319, %v575, %v1345
    %v1348 = vunpack.c.l.s4 1983009808
    %v1349 = vunpack.c.0.s8 %v1348
    %v1350 = vperm.slane %v1344, %v1349
    %v1352 = vunpack.c.l.s4 1983009808
    %v1353 = vunpack.c.0.s8 %v1352
    %v1354 = vperm.slane %v1346, %v1353
    %v1355 = vrot.slane %v578, 4
    %v1356 = vsel %vm1319, %v1355, %v572
    %v1357 = vrot.slane %v572, 4
    %v1358 = vsel %vm1319, %v578, %v1357
    %v1360 = vunpack.c.l.s4 1983009808
    %v1361 = vunpack.c.0.s8 %v1360
    %v1362 = vperm.slane %v1356, %v1361
    %v1364 = vunpack.c.l.s4 1983009808
    %v1365 = vunpack.c.0.s8 %v1364
    %v1366 = vperm.slane %v1358, %v1365
    %v1367 = vrot.slane %v1338, 4
    %v1368 = vsel %vm1319, %v1367, %v1326
    %v1369 = vrot.slane %v1326, 4
    %v1370 = vsel %vm1319, %v1338, %v1369
    %v1372 = vunpack.c.l.s4 1934713408
    %v1373 = vunpack.c.0.s8 %v1372
    %v1374 = vperm.slane %v1368, %v1373
    %v1376 = vunpack.c.l.s4 1934713408
    %v1377 = vunpack.c.0.s8 %v1376
    %v1378 = vperm.slane %v1370, %v1377
    %v1379 = vrot.slane %v1342, 4
    %v1380 = vsel %vm1319, %v1379, %v1330
    %v1381 = vrot.slane %v1330, 4
    %v1382 = vsel %vm1319, %v1342, %v1381
    %v1384 = vunpack.c.l.s4 1934713408
    %v1385 = vunpack.c.0.s8 %v1384
    %v1386 = vperm.slane %v1380, %v1385
    %v1388 = vunpack.c.l.s4 1934713408
    %v1389 = vunpack.c.0.s8 %v1388
    %v1390 = vperm.slane %v1382, %v1389
    %v1391 = vrot.slane %v1362, 4
    %v1392 = vsel %vm1319, %v1391, %v1350
    %v1393 = vrot.slane %v1350, 4
    %v1394 = vsel %vm1319, %v1362, %v1393
    %v1396 = vunpack.c.l.s4 1934713408
    %v1397 = vunpack.c.0.s8 %v1396
    %v1398 = vperm.slane %v1392, %v1397
    %v1400 = vunpack.c.l.s4 1934713408
    %v1401 = vunpack.c.0.s8 %v1400
    %v1402 = vperm.slane %v1394, %v1401
    %v1403 = vrot.slane %v1366, 4
    %v1404 = vsel %vm1319, %v1403, %v1354
    %v1405 = vrot.slane %v1354, 4
    %v1406 = vsel %vm1319, %v1366, %v1405
    %v1408 = vunpack.c.l.s4 1934713408
    %v1409 = vunpack.c.0.s8 %v1408
    %v1410 = vperm.slane %v1404, %v1409
    %v1412 = vunpack.c.l.s4 1934713408
    %v1413 = vunpack.c.0.s8 %v1412
    %v1414 = vperm.slane %v1406, %v1413
    %v1415 = vrot.slane %v1398, 4
    %v1416 = vsel %vm1319, %v1415, %v1374
    %v1417 = vrot.slane %v1374, 4
    %v1418 = vsel %vm1319, %v1398, %v1417
    %v1419 = vrot.slane %v1402, 4
    %v1420 = vsel %vm1319, %v1419, %v1378
    %v1421 = vrot.slane %v1378, 4
    %v1422 = vsel %vm1319, %v1402, %v1421
    %v1423 = vrot.slane %v1410, 4
    %v1424 = vsel %vm1319, %v1423, %v1386
    %v1425 = vrot.slane %v1386, 4
    %v1426 = vsel %vm1319, %v1410, %v1425
    %v1427 = vrot.slane %v1414, 4
    %v1428 = vsel %vm1319, %v1427, %v1390
    %v1429 = vrot.slane %v1390, 4
    %v1430 = vsel %vm1319, %v1414, %v1429
    %v1431 = vrot.slane %v587, 4
    %v1432 = vsel %vm1319, %v1431, %v581
    %v1433 = vrot.slane %v581, 4
    %v1434 = vsel %vm1319, %v587, %v1433
    %v1436 = vunpack.c.l.s4 1983009808
    %v1437 = vunpack.c.0.s8 %v1436
    %v1438 = vperm.slane %v1432, %v1437
    %v1440 = vunpack.c.l.s4 1983009808
    %v1441 = vunpack.c.0.s8 %v1440
    %v1442 = vperm.slane %v1434, %v1441
    %v1443 = vrot.slane %v590, 4
    %v1444 = vsel %vm1319, %v1443, %v584
    %v1445 = vrot.slane %v584, 4
    %v1446 = vsel %vm1319, %v590, %v1445
    %v1448 = vunpack.c.l.s4 1983009808
    %v1449 = vunpack.c.0.s8 %v1448
    %v1450 = vperm.slane %v1444, %v1449
    %v1452 = vunpack.c.l.s4 1983009808
    %v1453 = vunpack.c.0.s8 %v1452
    %v1454 = vperm.slane %v1446, %v1453
    %v1455 = vrot.slane %v599, 4
    %v1456 = vsel %vm1319, %v1455, %v593
    %v1457 = vrot.slane %v593, 4
    %v1458 = vsel %vm1319, %v599, %v1457
    %v1460 = vunpack.c.l.s4 1983009808
    %v1461 = vunpack.c.0.s8 %v1460
    %v1462 = vperm.slane %v1456, %v1461
    %v1464 = vunpack.c.l.s4 1983009808
    %v1465 = vunpack.c.0.s8 %v1464
    %v1466 = vperm.slane %v1458, %v1465
    %v1467 = vrot.slane %v602, 4
    %v1468 = vsel %vm1319, %v1467, %v596
    %v1469 = vrot.slane %v596, 4
    %v1470 = vsel %vm1319, %v602, %v1469
    %v1472 = vunpack.c.l.s4 1983009808
    %v1473 = vunpack.c.0.s8 %v1472
    %v1474 = vperm.slane %v1468, %v1473
    %v1476 = vunpack.c.l.s4 1983009808
    %v1477 = vunpack.c.0.s8 %v1476
    %v1478 = vperm.slane %v1470, %v1477
    %v1479 = vrot.slane %v1450, 4
    %v1480 = vsel %vm1319, %v1479, %v1438
    %v1481 = vrot.slane %v1438, 4
    %v1482 = vsel %vm1319, %v1450, %v1481
    %v1484 = vunpack.c.l.s4 1934713408
    %v1485 = vunpack.c.0.s8 %v1484
    %v1486 = vperm.slane %v1480, %v1485
    %v1488 = vunpack.c.l.s4 1934713408
    %v1489 = vunpack.c.0.s8 %v1488
    %v1490 = vperm.slane %v1482, %v1489
    %v1491 = vrot.slane %v1454, 4
    %v1492 = vsel %vm1319, %v1491, %v1442
    %v1493 = vrot.slane %v1442, 4
    %v1494 = vsel %vm1319, %v1454, %v1493
    %v1496 = vunpack.c.l.s4 1934713408
    %v1497 = vunpack.c.0.s8 %v1496
    %v1498 = vperm.slane %v1492, %v1497
    %v1500 = vunpack.c.l.s4 1934713408
    %v1501 = vunpack.c.0.s8 %v1500
    %v1502 = vperm.slane %v1494, %v1501
    %v1503 = vrot.slane %v1474, 4
    %v1504 = vsel %vm1319, %v1503, %v1462
    %v1505 = vrot.slane %v1462, 4
    %v1506 = vsel %vm1319, %v1474, %v1505
    %v1508 = vunpack.c.l.s4 1934713408
    %v1509 = vunpack.c.0.s8 %v1508
    %v1510 = vperm.slane %v1504, %v1509
    %v1512 = vunpack.c.l.s4 1934713408
    %v1513 = vunpack.c.0.s8 %v1512
    %v1514 = vperm.slane %v1506, %v1513
    %v1515 = vrot.slane %v1478, 4
    %v1516 = vsel %vm1319, %v1515, %v1466
    %v1517 = vrot.slane %v1466, 4
    %v1518 = vsel %vm1319, %v1478, %v1517
    %v1520 = vunpack.c.l.s4 1934713408
    %v1521 = vunpack.c.0.s8 %v1520
    %v1522 = vperm.slane %v1516, %v1521
    %v1524 = vunpack.c.l.s4 1934713408
    %v1525 = vunpack.c.0.s8 %v1524
    %v1526 = vperm.slane %v1518, %v1525
    %v1527 = vrot.slane %v1510, 4
    %v1528 = vsel %vm1319, %v1527, %v1486
    %v1529 = vrot.slane %v1486, 4
    %v1530 = vsel %vm1319, %v1510, %v1529
    %v1531 = vrot.slane %v1514, 4
    %v1532 = vsel %vm1319, %v1531, %v1490
    %v1533 = vrot.slane %v1490, 4
    %v1534 = vsel %vm1319, %v1514, %v1533
    %v1535 = vrot.slane %v1522, 4
    %v1536 = vsel %vm1319, %v1535, %v1498
    %v1537 = vrot.slane %v1498, 4
    %v1538 = vsel %vm1319, %v1522, %v1537
    %v1539 = vrot.slane %v1526, 4
    %v1540 = vsel %vm1319, %v1539, %v1502
    %v1541 = vrot.slane %v1502, 4
    %v1542 = vsel %vm1319, %v1526, %v1541
    %v1543 = vrot.slane %v611, 4
    %v1544 = vsel %vm1319, %v1543, %v605
    %v1545 = vrot.slane %v605, 4
    %v1546 = vsel %vm1319, %v611, %v1545
    %v1548 = vunpack.c.l.s4 1983009808
    %v1549 = vunpack.c.0.s8 %v1548
    %v1550 = vperm.slane %v1544, %v1549
    %v1552 = vunpack.c.l.s4 1983009808
    %v1553 = vunpack.c.0.s8 %v1552
    %v1554 = vperm.slane %v1546, %v1553
    %v1555 = vrot.slane %v614, 4
    %v1556 = vsel %vm1319, %v1555, %v608
    %v1557 = vrot.slane %v608, 4
    %v1558 = vsel %vm1319, %v614, %v1557
    %v1560 = vunpack.c.l.s4 1983009808
    %v1561 = vunpack.c.0.s8 %v1560
    %v1562 = vperm.slane %v1556, %v1561
    %v1564 = vunpack.c.l.s4 1983009808
    %v1565 = vunpack.c.0.s8 %v1564
    %v1566 = vperm.slane %v1558, %v1565
    %v1567 = vrot.slane %v623, 4
    %v1568 = vsel %vm1319, %v1567, %v617
    %v1569 = vrot.slane %v617, 4
    %v1570 = vsel %vm1319, %v623, %v1569
    %v1572 = vunpack.c.l.s4 1983009808
    %v1573 = vunpack.c.0.s8 %v1572
    %v1574 = vperm.slane %v1568, %v1573
    %v1576 = vunpack.c.l.s4 1983009808
    %v1577 = vunpack.c.0.s8 %v1576
    %v1578 = vperm.slane %v1570, %v1577
    %v1579 = vrot.slane %v626, 4
    %v1580 = vsel %vm1319, %v1579, %v620
    %v1581 = vrot.slane %v620, 4
    %v1582 = vsel %vm1319, %v626, %v1581
    %v1584 = vunpack.c.l.s4 1983009808
    %v1585 = vunpack.c.0.s8 %v1584
    %v1586 = vperm.slane %v1580, %v1585
    %v1588 = vunpack.c.l.s4 1983009808
    %v1589 = vunpack.c.0.s8 %v1588
    %v1590 = vperm.slane %v1582, %v1589
    %v1591 = vrot.slane %v1562, 4
    %v1592 = vsel %vm1319, %v1591, %v1550
    %v1593 = vrot.slane %v1550, 4
    %v1594 = vsel %vm1319, %v1562, %v1593
    %v1596 = vunpack.c.l.s4 1934713408
    %v1597 = vunpack.c.0.s8 %v1596
    %v1598 = vperm.slane %v1592, %v1597
    %v1600 = vunpack.c.l.s4 1934713408
    %v1601 = vunpack.c.0.s8 %v1600
    %v1602 = vperm.slane %v1594, %v1601
    %v1603 = vrot.slane %v1566, 4
    %v1604 = vsel %vm1319, %v1603, %v1554
    %v1605 = vrot.slane %v1554, 4
    %v1606 = vsel %vm1319, %v1566, %v1605
    %v1608 = vunpack.c.l.s4 1934713408
    %v1609 = vunpack.c.0.s8 %v1608
    %v1610 = vperm.slane %v1604, %v1609
    %v1612 = vunpack.c.l.s4 1934713408
    %v1613 = vunpack.c.0.s8 %v1612
    %v1614 = vperm.slane %v1606, %v1613
    %v1615 = vrot.slane %v1586, 4
    %v1616 = vsel %vm1319, %v1615, %v1574
    %v1617 = vrot.slane %v1574, 4
    %v1618 = vsel %vm1319, %v1586, %v1617
    %v1620 = vunpack.c.l.s4 1934713408
    %v1621 = vunpack.c.0.s8 %v1620
    %v1622 = vperm.slane %v1616, %v1621
    %v1624 = vunpack.c.l.s4 1934713408
    %v1625 = vunpack.c.0.s8 %v1624
    %v1626 = vperm.slane %v1618, %v1625
    %v1627 = vrot.slane %v1590, 4
    %v1628 = vsel %vm1319, %v1627, %v1578
    %v1629 = vrot.slane %v1578, 4
    %v1630 = vsel %vm1319, %v1590, %v1629
    %v1632 = vunpack.c.l.s4 1934713408
    %v1633 = vunpack.c.0.s8 %v1632
    %v1634 = vperm.slane %v1628, %v1633
    %v1636 = vunpack.c.l.s4 1934713408
    %v1637 = vunpack.c.0.s8 %v1636
    %v1638 = vperm.slane %v1630, %v1637
    %v1639 = vrot.slane %v1622, 4
    %v1640 = vsel %vm1319, %v1639, %v1598
    %v1641 = vrot.slane %v1598, 4
    %v1642 = vsel %vm1319, %v1622, %v1641
    %v1643 = vrot.slane %v1626, 4
    %v1644 = vsel %vm1319, %v1643, %v1602
    %v1645 = vrot.slane %v1602, 4
    %v1646 = vsel %vm1319, %v1626, %v1645
    %v1647 = vrot.slane %v1634, 4
    %v1648 = vsel %vm1319, %v1647, %v1610
    %v1649 = vrot.slane %v1610, 4
    %v1650 = vsel %vm1319, %v1634, %v1649
    %v1651 = vrot.slane %v1638, 4
    %v1652 = vsel %vm1319, %v1651, %v1614
    %v1653 = vrot.slane %v1614, 4
    %v1654 = vsel %vm1319, %v1638, %v1653
    %v1655 = vrot.slane %v635, 4
    %v1656 = vsel %vm1319, %v1655, %v629
    %v1657 = vrot.slane %v629, 4
    %v1658 = vsel %vm1319, %v635, %v1657
    %v1660 = vunpack.c.l.s4 1983009808
    %v1661 = vunpack.c.0.s8 %v1660
    %v1662 = vperm.slane %v1656, %v1661
    %v1664 = vunpack.c.l.s4 1983009808
    %v1665 = vunpack.c.0.s8 %v1664
    %v1666 = vperm.slane %v1658, %v1665
    %v1667 = vrot.slane %v638, 4
    %v1668 = vsel %vm1319, %v1667, %v632
    %v1669 = vrot.slane %v632, 4
    %v1670 = vsel %vm1319, %v638, %v1669
    %v1672 = vunpack.c.l.s4 1983009808
    %v1673 = vunpack.c.0.s8 %v1672
    %v1674 = vperm.slane %v1668, %v1673
    %v1676 = vunpack.c.l.s4 1983009808
    %v1677 = vunpack.c.0.s8 %v1676
    %v1678 = vperm.slane %v1670, %v1677
    %v1679 = vrot.slane %v647, 4
    %v1680 = vsel %vm1319, %v1679, %v641
    %v1681 = vrot.slane %v641, 4
    %v1682 = vsel %vm1319, %v647, %v1681
    %v1684 = vunpack.c.l.s4 1983009808
    %v1685 = vunpack.c.0.s8 %v1684
    %v1686 = vperm.slane %v1680, %v1685
    %v1688 = vunpack.c.l.s4 1983009808
    %v1689 = vunpack.c.0.s8 %v1688
    %v1690 = vperm.slane %v1682, %v1689
    %v1691 = vrot.slane %v650, 4
    %v1692 = vsel %vm1319, %v1691, %v644
    %v1693 = vrot.slane %v644, 4
    %v1694 = vsel %vm1319, %v650, %v1693
    %v1696 = vunpack.c.l.s4 1983009808
    %v1697 = vunpack.c.0.s8 %v1696
    %v1698 = vperm.slane %v1692, %v1697
    %v1700 = vunpack.c.l.s4 1983009808
    %v1701 = vunpack.c.0.s8 %v1700
    %v1702 = vperm.slane %v1694, %v1701
    %v1703 = vrot.slane %v1674, 4
    %v1704 = vsel %vm1319, %v1703, %v1662
    %v1705 = vrot.slane %v1662, 4
    %v1706 = vsel %vm1319, %v1674, %v1705
    %v1708 = vunpack.c.l.s4 1934713408
    %v1709 = vunpack.c.0.s8 %v1708
    %v1710 = vperm.slane %v1704, %v1709
    %v1712 = vunpack.c.l.s4 1934713408
    %v1713 = vunpack.c.0.s8 %v1712
    %v1714 = vperm.slane %v1706, %v1713
    %v1715 = vrot.slane %v1678, 4
    %v1716 = vsel %vm1319, %v1715, %v1666
    %v1717 = vrot.slane %v1666, 4
    %v1718 = vsel %vm1319, %v1678, %v1717
    %v1720 = vunpack.c.l.s4 1934713408
    %v1721 = vunpack.c.0.s8 %v1720
    %v1722 = vperm.slane %v1716, %v1721
    %v1724 = vunpack.c.l.s4 1934713408
    %v1725 = vunpack.c.0.s8 %v1724
    %v1726 = vperm.slane %v1718, %v1725
    %v1727 = vrot.slane %v1698, 4
    %v1728 = vsel %vm1319, %v1727, %v1686
    %v1729 = vrot.slane %v1686, 4
    %v1730 = vsel %vm1319, %v1698, %v1729
    %v1732 = vunpack.c.l.s4 1934713408
    %v1733 = vunpack.c.0.s8 %v1732
    %v1734 = vperm.slane %v1728, %v1733
    %v1736 = vunpack.c.l.s4 1934713408
    %v1737 = vunpack.c.0.s8 %v1736
    %v1738 = vperm.slane %v1730, %v1737
    %v1739 = vrot.slane %v1702, 4
    %v1740 = vsel %vm1319, %v1739, %v1690
    %v1741 = vrot.slane %v1690, 4
    %v1742 = vsel %vm1319, %v1702, %v1741
    %v1744 = vunpack.c.l.s4 1934713408
    %v1745 = vunpack.c.0.s8 %v1744
    %v1746 = vperm.slane %v1740, %v1745
    %v1748 = vunpack.c.l.s4 1934713408
    %v1749 = vunpack.c.0.s8 %v1748
    %v1750 = vperm.slane %v1742, %v1749
    %v1751 = vrot.slane %v1734, 4
    %v1752 = vsel %vm1319, %v1751, %v1710
    %v1753 = vrot.slane %v1710, 4
    %v1754 = vsel %vm1319, %v1734, %v1753
    %v1755 = vrot.slane %v1738, 4
    %v1756 = vsel %vm1319, %v1755, %v1714
    %v1757 = vrot.slane %v1714, 4
    %v1758 = vsel %vm1319, %v1738, %v1757
    %v1759 = vrot.slane %v1746, 4
    %v1760 = vsel %vm1319, %v1759, %v1722
    %v1761 = vrot.slane %v1722, 4
    %v1762 = vsel %vm1319, %v1746, %v1761
    %v1763 = vrot.slane %v1750, 4
    %v1764 = vsel %vm1319, %v1763, %v1726
    %v1765 = vrot.slane %v1726, 4
    %v1766 = vsel %vm1319, %v1750, %v1765
    %v1767 = vrot.slane %v659, 4
    %v1768 = vsel %vm1319, %v1767, %v653
    %v1769 = vrot.slane %v653, 4
    %v1770 = vsel %vm1319, %v659, %v1769
    %v1772 = vunpack.c.l.s4 1983009808
    %v1773 = vunpack.c.0.s8 %v1772
    %v1774 = vperm.slane %v1768, %v1773
    %v1776 = vunpack.c.l.s4 1983009808
    %v1777 = vunpack.c.0.s8 %v1776
    %v1778 = vperm.slane %v1770, %v1777
    %v1779 = vrot.slane %v662, 4
    %v1780 = vsel %vm1319, %v1779, %v656
    %v1781 = vrot.slane %v656, 4
    %v1782 = vsel %vm1319, %v662, %v1781
    %v1784 = vunpack.c.l.s4 1983009808
    %v1785 = vunpack.c.0.s8 %v1784
    %v1786 = vperm.slane %v1780, %v1785
    %v1788 = vunpack.c.l.s4 1983009808
    %v1789 = vunpack.c.0.s8 %v1788
    %v1790 = vperm.slane %v1782, %v1789
    %v1791 = vrot.slane %v671, 4
    %v1792 = vsel %vm1319, %v1791, %v665
    %v1793 = vrot.slane %v665, 4
    %v1794 = vsel %vm1319, %v671, %v1793
    %v1796 = vunpack.c.l.s4 1983009808
    %v1797 = vunpack.c.0.s8 %v1796
    %v1798 = vperm.slane %v1792, %v1797
    %v1800 = vunpack.c.l.s4 1983009808
    %v1801 = vunpack.c.0.s8 %v1800
    %v1802 = vperm.slane %v1794, %v1801
    %v1803 = vrot.slane %v674, 4
    %v1804 = vsel %vm1319, %v1803, %v668
    %v1805 = vrot.slane %v668, 4
    %v1806 = vsel %vm1319, %v674, %v1805
    %v1808 = vunpack.c.l.s4 1983009808
    %v1809 = vunpack.c.0.s8 %v1808
    %v1810 = vperm.slane %v1804, %v1809
    %v1812 = vunpack.c.l.s4 1983009808
    %v1813 = vunpack.c.0.s8 %v1812
    %v1814 = vperm.slane %v1806, %v1813
    %v1815 = vrot.slane %v1786, 4
    %v1816 = vsel %vm1319, %v1815, %v1774
    %v1817 = vrot.slane %v1774, 4
    %v1818 = vsel %vm1319, %v1786, %v1817
    %v1820 = vunpack.c.l.s4 1934713408
    %v1821 = vunpack.c.0.s8 %v1820
    %v1822 = vperm.slane %v1816, %v1821
    %v1824 = vunpack.c.l.s4 1934713408
    %v1825 = vunpack.c.0.s8 %v1824
    %v1826 = vperm.slane %v1818, %v1825
    %v1827 = vrot.slane %v1790, 4
    %v1828 = vsel %vm1319, %v1827, %v1778
    %v1829 = vrot.slane %v1778, 4
    %v1830 = vsel %vm1319, %v1790, %v1829
    %v1832 = vunpack.c.l.s4 1934713408
    %v1833 = vunpack.c.0.s8 %v1832
    %v1834 = vperm.slane %v1828, %v1833
    %v1836 = vunpack.c.l.s4 1934713408
    %v1837 = vunpack.c.0.s8 %v1836
    %v1838 = vperm.slane %v1830, %v1837
    %v1839 = vrot.slane %v1810, 4
    %v1840 = vsel %vm1319, %v1839, %v1798
    %v1841 = vrot.slane %v1798, 4
    %v1842 = vsel %vm1319, %v1810, %v1841
    %v1844 = vunpack.c.l.s4 1934713408
    %v1845 = vunpack.c.0.s8 %v1844
    %v1846 = vperm.slane %v1840, %v1845
    %v1848 = vunpack.c.l.s4 1934713408
    %v1849 = vunpack.c.0.s8 %v1848
    %v1850 = vperm.slane %v1842, %v1849
    %v1851 = vrot.slane %v1814, 4
    %v1852 = vsel %vm1319, %v1851, %v1802
    %v1853 = vrot.slane %v1802, 4
    %v1854 = vsel %vm1319, %v1814, %v1853
    %v1856 = vunpack.c.l.s4 1934713408
    %v1857 = vunpack.c.0.s8 %v1856
    %v1858 = vperm.slane %v1852, %v1857
    %v1860 = vunpack.c.l.s4 1934713408
    %v1861 = vunpack.c.0.s8 %v1860
    %v1862 = vperm.slane %v1854, %v1861
    %v1863 = vrot.slane %v1846, 4
    %v1864 = vsel %vm1319, %v1863, %v1822
    %v1865 = vrot.slane %v1822, 4
    %v1866 = vsel %vm1319, %v1846, %v1865
    %v1867 = vrot.slane %v1850, 4
    %v1868 = vsel %vm1319, %v1867, %v1826
    %v1869 = vrot.slane %v1826, 4
    %v1870 = vsel %vm1319, %v1850, %v1869
    %v1871 = vrot.slane %v1858, 4
    %v1872 = vsel %vm1319, %v1871, %v1834
    %v1873 = vrot.slane %v1834, 4
    %v1874 = vsel %vm1319, %v1858, %v1873
    %v1875 = vrot.slane %v1862, 4
    %v1876 = vsel %vm1319, %v1875, %v1838
    %v1877 = vrot.slane %v1838, 4
    %v1878 = vsel %vm1319, %v1862, %v1877
    %v1879 = vrot.slane %v683, 4
    %v1880 = vsel %vm1319, %v1879, %v677
    %v1881 = vrot.slane %v677, 4
    %v1882 = vsel %vm1319, %v683, %v1881
    %v1884 = vunpack.c.l.s4 1983009808
    %v1885 = vunpack.c.0.s8 %v1884
    %v1886 = vperm.slane %v1880, %v1885
    %v1888 = vunpack.c.l.s4 1983009808
    %v1889 = vunpack.c.0.s8 %v1888
    %v1890 = vperm.slane %v1882, %v1889
    %v1891 = vrot.slane %v686, 4
    %v1892 = vsel %vm1319, %v1891, %v680
    %v1893 = vrot.slane %v680, 4
    %v1894 = vsel %vm1319, %v686, %v1893
    %v1896 = vunpack.c.l.s4 1983009808
    %v1897 = vunpack.c.0.s8 %v1896
    %v1898 = vperm.slane %v1892, %v1897
    %v1900 = vunpack.c.l.s4 1983009808
    %v1901 = vunpack.c.0.s8 %v1900
    %v1902 = vperm.slane %v1894, %v1901
    %v1903 = vrot.slane %v695, 4
    %v1904 = vsel %vm1319, %v1903, %v689
    %v1905 = vrot.slane %v689, 4
    %v1906 = vsel %vm1319, %v695, %v1905
    %v1908 = vunpack.c.l.s4 1983009808
    %v1909 = vunpack.c.0.s8 %v1908
    %v1910 = vperm.slane %v1904, %v1909
    %v1912 = vunpack.c.l.s4 1983009808
    %v1913 = vunpack.c.0.s8 %v1912
    %v1914 = vperm.slane %v1906, %v1913
    %v1915 = vrot.slane %v698, 4
    %v1916 = vsel %vm1319, %v1915, %v692
    %v1917 = vrot.slane %v692, 4
    %v1918 = vsel %vm1319, %v698, %v1917
    %v1920 = vunpack.c.l.s4 1983009808
    %v1921 = vunpack.c.0.s8 %v1920
    %v1922 = vperm.slane %v1916, %v1921
    %v1924 = vunpack.c.l.s4 1983009808
    %v1925 = vunpack.c.0.s8 %v1924
    %v1926 = vperm.slane %v1918, %v1925
    %v1927 = vrot.slane %v1898, 4
    %v1928 = vsel %vm1319, %v1927, %v1886
    %v1929 = vrot.slane %v1886, 4
    %v1930 = vsel %vm1319, %v1898, %v1929
    %v1932 = vunpack.c.l.s4 1934713408
    %v1933 = vunpack.c.0.s8 %v1932
    %v1934 = vperm.slane %v1928, %v1933
    %v1936 = vunpack.c.l.s4 1934713408
    %v1937 = vunpack.c.0.s8 %v1936
    %v1938 = vperm.slane %v1930, %v1937
    %v1939 = vrot.slane %v1902, 4
    %v1940 = vsel %vm1319, %v1939, %v1890
    %v1941 = vrot.slane %v1890, 4
    %v1942 = vsel %vm1319, %v1902, %v1941
    %v1944 = vunpack.c.l.s4 1934713408
    %v1945 = vunpack.c.0.s8 %v1944
    %v1946 = vperm.slane %v1940, %v1945
    %v1948 = vunpack.c.l.s4 1934713408
    %v1949 = vunpack.c.0.s8 %v1948
    %v1950 = vperm.slane %v1942, %v1949
    %v1951 = vrot.slane %v1922, 4
    %v1952 = vsel %vm1319, %v1951, %v1910
    %v1953 = vrot.slane %v1910, 4
    %v1954 = vsel %vm1319, %v1922, %v1953
    %v1956 = vunpack.c.l.s4 1934713408
    %v1957 = vunpack.c.0.s8 %v1956
    %v1958 = vperm.slane %v1952, %v1957
    %v1960 = vunpack.c.l.s4 1934713408
    %v1961 = vunpack.c.0.s8 %v1960
    %v1962 = vperm.slane %v1954, %v1961
    %v1963 = vrot.slane %v1926, 4
    %v1964 = vsel %vm1319, %v1963, %v1914
    %v1965 = vrot.slane %v1914, 4
    %v1966 = vsel %vm1319, %v1926, %v1965
    %v1968 = vunpack.c.l.s4 1934713408
    %v1969 = vunpack.c.0.s8 %v1968
    %v1970 = vperm.slane %v1964, %v1969
    %v1972 = vunpack.c.l.s4 1934713408
    %v1973 = vunpack.c.0.s8 %v1972
    %v1974 = vperm.slane %v1966, %v1973
    %v1975 = vrot.slane %v1958, 4
    %v1976 = vsel %vm1319, %v1975, %v1934
    %v1977 = vrot.slane %v1934, 4
    %v1978 = vsel %vm1319, %v1958, %v1977
    %v1979 = vrot.slane %v1962, 4
    %v1980 = vsel %vm1319, %v1979, %v1938
    %v1981 = vrot.slane %v1938, 4
    %v1982 = vsel %vm1319, %v1962, %v1981
    %v1983 = vrot.slane %v1970, 4
    %v1984 = vsel %vm1319, %v1983, %v1946
    %v1985 = vrot.slane %v1946, 4
    %v1986 = vsel %vm1319, %v1970, %v1985
    %v1987 = vrot.slane %v1974, 4
    %v1988 = vsel %vm1319, %v1987, %v1950
    %v1989 = vrot.slane %v1950, 4
    %v1990 = vsel %vm1319, %v1974, %v1989
    %v1991 = vrot.slane %v707, 4
    %v1992 = vsel %vm1319, %v1991, %v701
    %v1993 = vrot.slane %v701, 4
    %v1994 = vsel %vm1319, %v707, %v1993
    %v1996 = vunpack.c.l.s4 1983009808
    %v1997 = vunpack.c.0.s8 %v1996
    %v1998 = vperm.slane %v1992, %v1997
    %v2000 = vunpack.c.l.s4 1983009808
    %v2001 = vunpack.c.0.s8 %v2000
    %v2002 = vperm.slane %v1994, %v2001
    %v2003 = vrot.slane %v710, 4
    %v2004 = vsel %vm1319, %v2003, %v704
    %v2005 = vrot.slane %v704, 4
    %v2006 = vsel %vm1319, %v710, %v2005
    %v2008 = vunpack.c.l.s4 1983009808
    %v2009 = vunpack.c.0.s8 %v2008
    %v2010 = vperm.slane %v2004, %v2009
    %v2012 = vunpack.c.l.s4 1983009808
    %v2013 = vunpack.c.0.s8 %v2012
    %v2014 = vperm.slane %v2006, %v2013
    %v2015 = vrot.slane %v719, 4
    %v2016 = vsel %vm1319, %v2015, %v713
    %v2017 = vrot.slane %v713, 4
    %v2018 = vsel %vm1319, %v719, %v2017
    %v2020 = vunpack.c.l.s4 1983009808
    %v2021 = vunpack.c.0.s8 %v2020
    %v2022 = vperm.slane %v2016, %v2021
    %v2024 = vunpack.c.l.s4 1983009808
    %v2025 = vunpack.c.0.s8 %v2024
    %v2026 = vperm.slane %v2018, %v2025
    %v2027 = vrot.slane %v722, 4
    %v2028 = vsel %vm1319, %v2027, %v716
    %v2029 = vrot.slane %v716, 4
    %v2030 = vsel %vm1319, %v722, %v2029
    %v2032 = vunpack.c.l.s4 1983009808
    %v2033 = vunpack.c.0.s8 %v2032
    %v2034 = vperm.slane %v2028, %v2033
    %v2036 = vunpack.c.l.s4 1983009808
    %v2037 = vunpack.c.0.s8 %v2036
    %v2038 = vperm.slane %v2030, %v2037
    %v2039 = vrot.slane %v2010, 4
    %v2040 = vsel %vm1319, %v2039, %v1998
    %v2041 = vrot.slane %v1998, 4
    %v2042 = vsel %vm1319, %v2010, %v2041
    %v2044 = vunpack.c.l.s4 1934713408
    %v2045 = vunpack.c.0.s8 %v2044
    %v2046 = vperm.slane %v2040, %v2045
    %v2048 = vunpack.c.l.s4 1934713408
    %v2049 = vunpack.c.0.s8 %v2048
    %v2050 = vperm.slane %v2042, %v2049
    %v2051 = vrot.slane %v2014, 4
    %v2052 = vsel %vm1319, %v2051, %v2002
    %v2053 = vrot.slane %v2002, 4
    %v2054 = vsel %vm1319, %v2014, %v2053
    %v2056 = vunpack.c.l.s4 1934713408
    %v2057 = vunpack.c.0.s8 %v2056
    %v2058 = vperm.slane %v2052, %v2057
    %v2060 = vunpack.c.l.s4 1934713408
    %v2061 = vunpack.c.0.s8 %v2060
    %v2062 = vperm.slane %v2054, %v2061
    %v2063 = vrot.slane %v2034, 4
    %v2064 = vsel %vm1319, %v2063, %v2022
    %v2065 = vrot.slane %v2022, 4
    %v2066 = vsel %vm1319, %v2034, %v2065
    %v2068 = vunpack.c.l.s4 1934713408
    %v2069 = vunpack.c.0.s8 %v2068
    %v2070 = vperm.slane %v2064, %v2069
    %v2072 = vunpack.c.l.s4 1934713408
    %v2073 = vunpack.c.0.s8 %v2072
    %v2074 = vperm.slane %v2066, %v2073
    %v2075 = vrot.slane %v2038, 4
    %v2076 = vsel %vm1319, %v2075, %v2026
    %v2077 = vrot.slane %v2026, 4
    %v2078 = vsel %vm1319, %v2038, %v2077
    %v2080 = vunpack.c.l.s4 1934713408
    %v2081 = vunpack.c.0.s8 %v2080
    %v2082 = vperm.slane %v2076, %v2081
    %v2084 = vunpack.c.l.s4 1934713408
    %v2085 = vunpack.c.0.s8 %v2084
    %v2086 = vperm.slane %v2078, %v2085
    %v2087 = vrot.slane %v2070, 4
    %v2088 = vsel %vm1319, %v2087, %v2046
    %v2089 = vrot.slane %v2046, 4
    %v2090 = vsel %vm1319, %v2070, %v2089
    %v2091 = vrot.slane %v2074, 4
    %v2092 = vsel %vm1319, %v2091, %v2050
    %v2093 = vrot.slane %v2050, 4
    %v2094 = vsel %vm1319, %v2074, %v2093
    %v2095 = vrot.slane %v2082, 4
    %v2096 = vsel %vm1319, %v2095, %v2058
    %v2097 = vrot.slane %v2058, 4
    %v2098 = vsel %vm1319, %v2082, %v2097
    %v2099 = vrot.slane %v2086, 4
    %v2100 = vsel %vm1319, %v2099, %v2062
    %v2101 = vrot.slane %v2062, 4
    %v2102 = vsel %vm1319, %v2086, %v2101
    %v2103 = vrot.slane %v731, 4
    %v2104 = vsel %vm1319, %v2103, %v725
    %v2105 = vrot.slane %v725, 4
    %v2106 = vsel %vm1319, %v731, %v2105
    %v2108 = vunpack.c.l.s4 1983009808
    %v2109 = vunpack.c.0.s8 %v2108
    %v2110 = vperm.slane %v2104, %v2109
    %v2112 = vunpack.c.l.s4 1983009808
    %v2113 = vunpack.c.0.s8 %v2112
    %v2114 = vperm.slane %v2106, %v2113
    %v2115 = vrot.slane %v734, 4
    %v2116 = vsel %vm1319, %v2115, %v728
    %v2117 = vrot.slane %v728, 4
    %v2118 = vsel %vm1319, %v734, %v2117
    %v2120 = vunpack.c.l.s4 1983009808
    %v2121 = vunpack.c.0.s8 %v2120
    %v2122 = vperm.slane %v2116, %v2121
    %v2124 = vunpack.c.l.s4 1983009808
    %v2125 = vunpack.c.0.s8 %v2124
    %v2126 = vperm.slane %v2118, %v2125
    %v2127 = vrot.slane %v743, 4
    %v2128 = vsel %vm1319, %v2127, %v737
    %v2129 = vrot.slane %v737, 4
    %v2130 = vsel %vm1319, %v743, %v2129
    %v2132 = vunpack.c.l.s4 1983009808
    %v2133 = vunpack.c.0.s8 %v2132
    %v2134 = vperm.slane %v2128, %v2133
    %v2136 = vunpack.c.l.s4 1983009808
    %v2137 = vunpack.c.0.s8 %v2136
    %v2138 = vperm.slane %v2130, %v2137
    %v2139 = vrot.slane %v746, 4
    %v2140 = vsel %vm1319, %v2139, %v740
    %v2141 = vrot.slane %v740, 4
    %v2142 = vsel %vm1319, %v746, %v2141
    %v2144 = vunpack.c.l.s4 1983009808
    %v2145 = vunpack.c.0.s8 %v2144
    %v2146 = vperm.slane %v2140, %v2145
    %v2148 = vunpack.c.l.s4 1983009808
    %v2149 = vunpack.c.0.s8 %v2148
    %v2150 = vperm.slane %v2142, %v2149
    %v2151 = vrot.slane %v2122, 4
    %v2152 = vsel %vm1319, %v2151, %v2110
    %v2153 = vrot.slane %v2110, 4
    %v2154 = vsel %vm1319, %v2122, %v2153
    %v2156 = vunpack.c.l.s4 1934713408
    %v2157 = vunpack.c.0.s8 %v2156
    %v2158 = vperm.slane %v2152, %v2157
    %v2160 = vunpack.c.l.s4 1934713408
    %v2161 = vunpack.c.0.s8 %v2160
    %v2162 = vperm.slane %v2154, %v2161
    %v2163 = vrot.slane %v2126, 4
    %v2164 = vsel %vm1319, %v2163, %v2114
    %v2165 = vrot.slane %v2114, 4
    %v2166 = vsel %vm1319, %v2126, %v2165
    %v2168 = vunpack.c.l.s4 1934713408
    %v2169 = vunpack.c.0.s8 %v2168
    %v2170 = vperm.slane %v2164, %v2169
    %v2172 = vunpack.c.l.s4 1934713408
    %v2173 = vunpack.c.0.s8 %v2172
    %v2174 = vperm.slane %v2166, %v2173
    %v2175 = vrot.slane %v2146, 4
    %v2176 = vsel %vm1319, %v2175, %v2134
    %v2177 = vrot.slane %v2134, 4
    %v2178 = vsel %vm1319, %v2146, %v2177
    %v2180 = vunpack.c.l.s4 1934713408
    %v2181 = vunpack.c.0.s8 %v2180
    %v2182 = vperm.slane %v2176, %v2181
    %v2184 = vunpack.c.l.s4 1934713408
    %v2185 = vunpack.c.0.s8 %v2184
    %v2186 = vperm.slane %v2178, %v2185
    %v2187 = vrot.slane %v2150, 4
    %v2188 = vsel %vm1319, %v2187, %v2138
    %v2189 = vrot.slane %v2138, 4
    %v2190 = vsel %vm1319, %v2150, %v2189
    %v2192 = vunpack.c.l.s4 1934713408
    %v2193 = vunpack.c.0.s8 %v2192
    %v2194 = vperm.slane %v2188, %v2193
    %v2196 = vunpack.c.l.s4 1934713408
    %v2197 = vunpack.c.0.s8 %v2196
    %v2198 = vperm.slane %v2190, %v2197
    %v2199 = vrot.slane %v2182, 4
    %v2200 = vsel %vm1319, %v2199, %v2158
    %v2201 = vrot.slane %v2158, 4
    %v2202 = vsel %vm1319, %v2182, %v2201
    %v2203 = vrot.slane %v2186, 4
    %v2204 = vsel %vm1319, %v2203, %v2162
    %v2205 = vrot.slane %v2162, 4
    %v2206 = vsel %vm1319, %v2186, %v2205
    %v2207 = vrot.slane %v2194, 4
    %v2208 = vsel %vm1319, %v2207, %v2170
    %v2209 = vrot.slane %v2170, 4
    %v2210 = vsel %vm1319, %v2194, %v2209
    %v2211 = vrot.slane %v2198, 4
    %v2212 = vsel %vm1319, %v2211, %v2174
    %v2213 = vrot.slane %v2174, 4
    %v2214 = vsel %vm1319, %v2198, %v2213
    %v2215 = vrot.slane %v753, 4
    %v2216 = vsel %vm1319, %v2215, %v516
    %v2217 = vrot.slane %v516, 4
    %v2218 = vsel %vm1319, %v753, %v2217
    %v2220 = vunpack.c.l.s4 1983009808
    %v2221 = vunpack.c.0.s8 %v2220
    %v2222 = vperm.slane %v2216, %v2221
    %v2224 = vunpack.c.l.s4 1983009808
    %v2225 = vunpack.c.0.s8 %v2224
    %v2226 = vperm.slane %v2218, %v2225
    %v2227 = vrot.slane %v756, 4
    %v2228 = vsel %vm1319, %v2227, %v750
    %v2229 = vrot.slane %v750, 4
    %v2230 = vsel %vm1319, %v756, %v2229
    %v2232 = vunpack.c.l.s4 1983009808
    %v2233 = vunpack.c.0.s8 %v2232
    %v2234 = vperm.slane %v2228, %v2233
    %v2236 = vunpack.c.l.s4 1983009808
    %v2237 = vunpack.c.0.s8 %v2236
    %v2238 = vperm.slane %v2230, %v2237
    %v2239 = vrot.slane %v765, 4
    %v2240 = vsel %vm1319, %v2239, %v759
    %v2241 = vrot.slane %v759, 4
    %v2242 = vsel %vm1319, %v765, %v2241
    %v2244 = vunpack.c.l.s4 1983009808
    %v2245 = vunpack.c.0.s8 %v2244
    %v2246 = vperm.slane %v2240, %v2245
    %v2248 = vunpack.c.l.s4 1983009808
    %v2249 = vunpack.c.0.s8 %v2248
    %v2250 = vperm.slane %v2242, %v2249
    %v2251 = vrot.slane %v768, 4
    %v2252 = vsel %vm1319, %v2251, %v762
    %v2253 = vrot.slane %v762, 4
    %v2254 = vsel %vm1319, %v768, %v2253
    %v2256 = vunpack.c.l.s4 1983009808
    %v2257 = vunpack.c.0.s8 %v2256
    %v2258 = vperm.slane %v2252, %v2257
    %v2260 = vunpack.c.l.s4 1983009808
    %v2261 = vunpack.c.0.s8 %v2260
    %v2262 = vperm.slane %v2254, %v2261
    %v2263 = vrot.slane %v2234, 4
    %v2264 = vsel %vm1319, %v2263, %v2222
    %v2265 = vrot.slane %v2222, 4
    %v2266 = vsel %vm1319, %v2234, %v2265
    %v2268 = vunpack.c.l.s4 1934713408
    %v2269 = vunpack.c.0.s8 %v2268
    %v2270 = vperm.slane %v2264, %v2269
    %v2272 = vunpack.c.l.s4 1934713408
    %v2273 = vunpack.c.0.s8 %v2272
    %v2274 = vperm.slane %v2266, %v2273
    %v2275 = vrot.slane %v2238, 4
    %v2276 = vsel %vm1319, %v2275, %v2226
    %v2277 = vrot.slane %v2226, 4
    %v2278 = vsel %vm1319, %v2238, %v2277
    %v2280 = vunpack.c.l.s4 1934713408
    %v2281 = vunpack.c.0.s8 %v2280
    %v2282 = vperm.slane %v2276, %v2281
    %v2284 = vunpack.c.l.s4 1934713408
    %v2285 = vunpack.c.0.s8 %v2284
    %v2286 = vperm.slane %v2278, %v2285
    %v2287 = vrot.slane %v2258, 4
    %v2288 = vsel %vm1319, %v2287, %v2246
    %v2289 = vrot.slane %v2246, 4
    %v2290 = vsel %vm1319, %v2258, %v2289
    %v2292 = vunpack.c.l.s4 1934713408
    %v2293 = vunpack.c.0.s8 %v2292
    %v2294 = vperm.slane %v2288, %v2293
    %v2296 = vunpack.c.l.s4 1934713408
    %v2297 = vunpack.c.0.s8 %v2296
    %v2298 = vperm.slane %v2290, %v2297
    %v2299 = vrot.slane %v2262, 4
    %v2300 = vsel %vm1319, %v2299, %v2250
    %v2301 = vrot.slane %v2250, 4
    %v2302 = vsel %vm1319, %v2262, %v2301
    %v2304 = vunpack.c.l.s4 1934713408
    %v2305 = vunpack.c.0.s8 %v2304
    %v2306 = vperm.slane %v2300, %v2305
    %v2308 = vunpack.c.l.s4 1934713408
    %v2309 = vunpack.c.0.s8 %v2308
    %v2310 = vperm.slane %v2302, %v2309
    %v2311 = vrot.slane %v2294, 4
    %v2312 = vsel %vm1319, %v2311, %v2270
    %v2313 = vrot.slane %v2270, 4
    %v2314 = vsel %vm1319, %v2294, %v2313
    %v2315 = vrot.slane %v2298, 4
    %v2316 = vsel %vm1319, %v2315, %v2274
    %v2317 = vrot.slane %v2274, 4
    %v2318 = vsel %vm1319, %v2298, %v2317
    %v2319 = vrot.slane %v2306, 4
    %v2320 = vsel %vm1319, %v2319, %v2282
    %v2321 = vrot.slane %v2282, 4
    %v2322 = vsel %vm1319, %v2306, %v2321
    %v2323 = vrot.slane %v2310, 4
    %v2324 = vsel %vm1319, %v2323, %v2286
    %v2325 = vrot.slane %v2286, 4
    %v2326 = vsel %vm1319, %v2310, %v2325
    %v2327 = vrot.slane %v777, 4
    %v2328 = vsel %vm1319, %v2327, %v771
    %v2329 = vrot.slane %v771, 4
    %v2330 = vsel %vm1319, %v777, %v2329
    %v2332 = vunpack.c.l.s4 1983009808
    %v2333 = vunpack.c.0.s8 %v2332
    %v2334 = vperm.slane %v2328, %v2333
    %v2336 = vunpack.c.l.s4 1983009808
    %v2337 = vunpack.c.0.s8 %v2336
    %v2338 = vperm.slane %v2330, %v2337
    %v2339 = vrot.slane %v780, 4
    %v2340 = vsel %vm1319, %v2339, %v774
    %v2341 = vrot.slane %v774, 4
    %v2342 = vsel %vm1319, %v780, %v2341
    %v2344 = vunpack.c.l.s4 1983009808
    %v2345 = vunpack.c.0.s8 %v2344
    %v2346 = vperm.slane %v2340, %v2345
    %v2348 = vunpack.c.l.s4 1983009808
    %v2349 = vunpack.c.0.s8 %v2348
    %v2350 = vperm.slane %v2342, %v2349
    %v2351 = vrot.slane %v789, 4
    %v2352 = vsel %vm1319, %v2351, %v783
    %v2353 = vrot.slane %v783, 4
    %v2354 = vsel %vm1319, %v789, %v2353
    %v2356 = vunpack.c.l.s4 1983009808
    %v2357 = vunpack.c.0.s8 %v2356
    %v2358 = vperm.slane %v2352, %v2357
    %v2360 = vunpack.c.l.s4 1983009808
    %v2361 = vunpack.c.0.s8 %v2360
    %v2362 = vperm.slane %v2354, %v2361
    %v2363 = vrot.slane %v792, 4
    %v2364 = vsel %vm1319, %v2363, %v786
    %v2365 = vrot.slane %v786, 4
    %v2366 = vsel %vm1319, %v792, %v2365
    %v2368 = vunpack.c.l.s4 1983009808
    %v2369 = vunpack.c.0.s8 %v2368
    %v2370 = vperm.slane %v2364, %v2369
    %v2372 = vunpack.c.l.s4 1983009808
    %v2373 = vunpack.c.0.s8 %v2372
    %v2374 = vperm.slane %v2366, %v2373
    %v2375 = vrot.slane %v2346, 4
    %v2376 = vsel %vm1319, %v2375, %v2334
    %v2377 = vrot.slane %v2334, 4
    %v2378 = vsel %vm1319, %v2346, %v2377
    %v2380 = vunpack.c.l.s4 1934713408
    %v2381 = vunpack.c.0.s8 %v2380
    %v2382 = vperm.slane %v2376, %v2381
    %v2384 = vunpack.c.l.s4 1934713408
    %v2385 = vunpack.c.0.s8 %v2384
    %v2386 = vperm.slane %v2378, %v2385
    %v2387 = vrot.slane %v2350, 4
    %v2388 = vsel %vm1319, %v2387, %v2338
    %v2389 = vrot.slane %v2338, 4
    %v2390 = vsel %vm1319, %v2350, %v2389
    %v2392 = vunpack.c.l.s4 1934713408
    %v2393 = vunpack.c.0.s8 %v2392
    %v2394 = vperm.slane %v2388, %v2393
    %v2396 = vunpack.c.l.s4 1934713408
    %v2397 = vunpack.c.0.s8 %v2396
    %v2398 = vperm.slane %v2390, %v2397
    %v2399 = vrot.slane %v2370, 4
    %v2400 = vsel %vm1319, %v2399, %v2358
    %v2401 = vrot.slane %v2358, 4
    %v2402 = vsel %vm1319, %v2370, %v2401
    %v2404 = vunpack.c.l.s4 1934713408
    %v2405 = vunpack.c.0.s8 %v2404
    %v2406 = vperm.slane %v2400, %v2405
    %v2408 = vunpack.c.l.s4 1934713408
    %v2409 = vunpack.c.0.s8 %v2408
    %v2410 = vperm.slane %v2402, %v2409
    %v2411 = vrot.slane %v2374, 4
    %v2412 = vsel %vm1319, %v2411, %v2362
    %v2413 = vrot.slane %v2362, 4
    %v2414 = vsel %vm1319, %v2374, %v2413
    %v2416 = vunpack.c.l.s4 1934713408
    %v2417 = vunpack.c.0.s8 %v2416
    %v2418 = vperm.slane %v2412, %v2417
    %v2420 = vunpack.c.l.s4 1934713408
    %v2421 = vunpack.c.0.s8 %v2420
    %v2422 = vperm.slane %v2414, %v2421
    %v2423 = vrot.slane %v2406, 4
    %v2424 = vsel %vm1319, %v2423, %v2382
    %v2425 = vrot.slane %v2382, 4
    %v2426 = vsel %vm1319, %v2406, %v2425
    %v2427 = vrot.slane %v2410, 4
    %v2428 = vsel %vm1319, %v2427, %v2386
    %v2429 = vrot.slane %v2386, 4
    %v2430 = vsel %vm1319, %v2410, %v2429
    %v2431 = vrot.slane %v2418, 4
    %v2432 = vsel %vm1319, %v2431, %v2394
    %v2433 = vrot.slane %v2394, 4
    %v2434 = vsel %vm1319, %v2418, %v2433
    %v2435 = vrot.slane %v2422, 4
    %v2436 = vsel %vm1319, %v2435, %v2398
    %v2437 = vrot.slane %v2398, 4
    %v2438 = vsel %vm1319, %v2422, %v2437
    %v2439 = vrot.slane %v801, 4
    %v2440 = vsel %vm1319, %v2439, %v795
    %v2441 = vrot.slane %v795, 4
    %v2442 = vsel %vm1319, %v801, %v2441
    %v2444 = vunpack.c.l.s4 1983009808
    %v2445 = vunpack.c.0.s8 %v2444
    %v2446 = vperm.slane %v2440, %v2445
    %v2448 = vunpack.c.l.s4 1983009808
    %v2449 = vunpack.c.0.s8 %v2448
    %v2450 = vperm.slane %v2442, %v2449
    %v2451 = vrot.slane %v804, 4
    %v2452 = vsel %vm1319, %v2451, %v798
    %v2453 = vrot.slane %v798, 4
    %v2454 = vsel %vm1319, %v804, %v2453
    %v2456 = vunpack.c.l.s4 1983009808
    %v2457 = vunpack.c.0.s8 %v2456
    %v2458 = vperm.slane %v2452, %v2457
    %v2460 = vunpack.c.l.s4 1983009808
    %v2461 = vunpack.c.0.s8 %v2460
    %v2462 = vperm.slane %v2454, %v2461
    %v2463 = vrot.slane %v813, 4
    %v2464 = vsel %vm1319, %v2463, %v807
    %v2465 = vrot.slane %v807, 4
    %v2466 = vsel %vm1319, %v813, %v2465
    %v2468 = vunpack.c.l.s4 1983009808
    %v2469 = vunpack.c.0.s8 %v2468
    %v2470 = vperm.slane %v2464, %v2469
    %v2472 = vunpack.c.l.s4 1983009808
    %v2473 = vunpack.c.0.s8 %v2472
    %v2474 = vperm.slane %v2466, %v2473
    %v2475 = vrot.slane %v816, 4
    %v2476 = vsel %vm1319, %v2475, %v810
    %v2477 = vrot.slane %v810, 4
    %v2478 = vsel %vm1319, %v816, %v2477
    %v2480 = vunpack.c.l.s4 1983009808
    %v2481 = vunpack.c.0.s8 %v2480
    %v2482 = vperm.slane %v2476, %v2481
    %v2484 = vunpack.c.l.s4 1983009808
    %v2485 = vunpack.c.0.s8 %v2484
    %v2486 = vperm.slane %v2478, %v2485
    %v2487 = vrot.slane %v2458, 4
    %v2488 = vsel %vm1319, %v2487, %v2446
    %v2489 = vrot.slane %v2446, 4
    %v2490 = vsel %vm1319, %v2458, %v2489
    %v2492 = vunpack.c.l.s4 1934713408
    %v2493 = vunpack.c.0.s8 %v2492
    %v2494 = vperm.slane %v2488, %v2493
    %v2496 = vunpack.c.l.s4 1934713408
    %v2497 = vunpack.c.0.s8 %v2496
    %v2498 = vperm.slane %v2490, %v2497
    %v2499 = vrot.slane %v2462, 4
    %v2500 = vsel %vm1319, %v2499, %v2450
    %v2501 = vrot.slane %v2450, 4
    %v2502 = vsel %vm1319, %v2462, %v2501
    %v2504 = vunpack.c.l.s4 1934713408
    %v2505 = vunpack.c.0.s8 %v2504
    %v2506 = vperm.slane %v2500, %v2505
    %v2508 = vunpack.c.l.s4 1934713408
    %v2509 = vunpack.c.0.s8 %v2508
    %v2510 = vperm.slane %v2502, %v2509
    %v2511 = vrot.slane %v2482, 4
    %v2512 = vsel %vm1319, %v2511, %v2470
    %v2513 = vrot.slane %v2470, 4
    %v2514 = vsel %vm1319, %v2482, %v2513
    %v2516 = vunpack.c.l.s4 1934713408
    %v2517 = vunpack.c.0.s8 %v2516
    %v2518 = vperm.slane %v2512, %v2517
    %v2520 = vunpack.c.l.s4 1934713408
    %v2521 = vunpack.c.0.s8 %v2520
    %v2522 = vperm.slane %v2514, %v2521
    %v2523 = vrot.slane %v2486, 4
    %v2524 = vsel %vm1319, %v2523, %v2474
    %v2525 = vrot.slane %v2474, 4
    %v2526 = vsel %vm1319, %v2486, %v2525
    %v2528 = vunpack.c.l.s4 1934713408
    %v2529 = vunpack.c.0.s8 %v2528
    %v2530 = vperm.slane %v2524, %v2529
    %v2532 = vunpack.c.l.s4 1934713408
    %v2533 = vunpack.c.0.s8 %v2532
    %v2534 = vperm.slane %v2526, %v2533
    %v2535 = vrot.slane %v2518, 4
    %v2536 = vsel %vm1319, %v2535, %v2494
    %v2537 = vrot.slane %v2494, 4
    %v2538 = vsel %vm1319, %v2518, %v2537
    %v2539 = vrot.slane %v2522, 4
    %v2540 = vsel %vm1319, %v2539, %v2498
    %v2541 = vrot.slane %v2498, 4
    %v2542 = vsel %vm1319, %v2522, %v2541
    %v2543 = vrot.slane %v2530, 4
    %v2544 = vsel %vm1319, %v2543, %v2506
    %v2545 = vrot.slane %v2506, 4
    %v2546 = vsel %vm1319, %v2530, %v2545
    %v2547 = vrot.slane %v2534, 4
    %v2548 = vsel %vm1319, %v2547, %v2510
    %v2549 = vrot.slane %v2510, 4
    %v2550 = vsel %vm1319, %v2534, %v2549
    %v2551 = vrot.slane %v825, 4
    %v2552 = vsel %vm1319, %v2551, %v819
    %v2553 = vrot.slane %v819, 4
    %v2554 = vsel %vm1319, %v825, %v2553
    %v2556 = vunpack.c.l.s4 1983009808
    %v2557 = vunpack.c.0.s8 %v2556
    %v2558 = vperm.slane %v2552, %v2557
    %v2560 = vunpack.c.l.s4 1983009808
    %v2561 = vunpack.c.0.s8 %v2560
    %v2562 = vperm.slane %v2554, %v2561
    %v2563 = vrot.slane %v828, 4
    %v2564 = vsel %vm1319, %v2563, %v822
    %v2565 = vrot.slane %v822, 4
    %v2566 = vsel %vm1319, %v828, %v2565
    %v2568 = vunpack.c.l.s4 1983009808
    %v2569 = vunpack.c.0.s8 %v2568
    %v2570 = vperm.slane %v2564, %v2569
    %v2572 = vunpack.c.l.s4 1983009808
    %v2573 = vunpack.c.0.s8 %v2572
    %v2574 = vperm.slane %v2566, %v2573
    %v2575 = vrot.slane %v837, 4
    %v2576 = vsel %vm1319, %v2575, %v831
    %v2577 = vrot.slane %v831, 4
    %v2578 = vsel %vm1319, %v837, %v2577
    %v2580 = vunpack.c.l.s4 1983009808
    %v2581 = vunpack.c.0.s8 %v2580
    %v2582 = vperm.slane %v2576, %v2581
    %v2584 = vunpack.c.l.s4 1983009808
    %v2585 = vunpack.c.0.s8 %v2584
    %v2586 = vperm.slane %v2578, %v2585
    %v2587 = vrot.slane %v840, 4
    %v2588 = vsel %vm1319, %v2587, %v834
    %v2589 = vrot.slane %v834, 4
    %v2590 = vsel %vm1319, %v840, %v2589
    %v2592 = vunpack.c.l.s4 1983009808
    %v2593 = vunpack.c.0.s8 %v2592
    %v2594 = vperm.slane %v2588, %v2593
    %v2596 = vunpack.c.l.s4 1983009808
    %v2597 = vunpack.c.0.s8 %v2596
    %v2598 = vperm.slane %v2590, %v2597
    %v2599 = vrot.slane %v2570, 4
    %v2600 = vsel %vm1319, %v2599, %v2558
    %v2601 = vrot.slane %v2558, 4
    %v2602 = vsel %vm1319, %v2570, %v2601
    %v2604 = vunpack.c.l.s4 1934713408
    %v2605 = vunpack.c.0.s8 %v2604
    %v2606 = vperm.slane %v2600, %v2605
    %v2608 = vunpack.c.l.s4 1934713408
    %v2609 = vunpack.c.0.s8 %v2608
    %v2610 = vperm.slane %v2602, %v2609
    %v2611 = vrot.slane %v2574, 4
    %v2612 = vsel %vm1319, %v2611, %v2562
    %v2613 = vrot.slane %v2562, 4
    %v2614 = vsel %vm1319, %v2574, %v2613
    %v2616 = vunpack.c.l.s4 1934713408
    %v2617 = vunpack.c.0.s8 %v2616
    %v2618 = vperm.slane %v2612, %v2617
    %v2620 = vunpack.c.l.s4 1934713408
    %v2621 = vunpack.c.0.s8 %v2620
    %v2622 = vperm.slane %v2614, %v2621
    %v2623 = vrot.slane %v2594, 4
    %v2624 = vsel %vm1319, %v2623, %v2582
    %v2625 = vrot.slane %v2582, 4
    %v2626 = vsel %vm1319, %v2594, %v2625
    %v2628 = vunpack.c.l.s4 1934713408
    %v2629 = vunpack.c.0.s8 %v2628
    %v2630 = vperm.slane %v2624, %v2629
    %v2632 = vunpack.c.l.s4 1934713408
    %v2633 = vunpack.c.0.s8 %v2632
    %v2634 = vperm.slane %v2626, %v2633
    %v2635 = vrot.slane %v2598, 4
    %v2636 = vsel %vm1319, %v2635, %v2586
    %v2637 = vrot.slane %v2586, 4
    %v2638 = vsel %vm1319, %v2598, %v2637
    %v2640 = vunpack.c.l.s4 1934713408
    %v2641 = vunpack.c.0.s8 %v2640
    %v2642 = vperm.slane %v2636, %v2641
    %v2644 = vunpack.c.l.s4 1934713408
    %v2645 = vunpack.c.0.s8 %v2644
    %v2646 = vperm.slane %v2638, %v2645
    %v2647 = vrot.slane %v2630, 4
    %v2648 = vsel %vm1319, %v2647, %v2606
    %v2649 = vrot.slane %v2606, 4
    %v2650 = vsel %vm1319, %v2630, %v2649
    %v2651 = vrot.slane %v2634, 4
    %v2652 = vsel %vm1319, %v2651, %v2610
    %v2653 = vrot.slane %v2610, 4
    %v2654 = vsel %vm1319, %v2634, %v2653
    %v2655 = vrot.slane %v2642, 4
    %v2656 = vsel %vm1319, %v2655, %v2618
    %v2657 = vrot.slane %v2618, 4
    %v2658 = vsel %vm1319, %v2642, %v2657
    %v2659 = vrot.slane %v2646, 4
    %v2660 = vsel %vm1319, %v2659, %v2622
    %v2661 = vrot.slane %v2622, 4
    %v2662 = vsel %vm1319, %v2646, %v2661
    %v2663 = vrot.slane %v849, 4
    %v2664 = vsel %vm1319, %v2663, %v843
    %v2665 = vrot.slane %v843, 4
    %v2666 = vsel %vm1319, %v849, %v2665
    %v2668 = vunpack.c.l.s4 1983009808
    %v2669 = vunpack.c.0.s8 %v2668
    %v2670 = vperm.slane %v2664, %v2669
    %v2672 = vunpack.c.l.s4 1983009808
    %v2673 = vunpack.c.0.s8 %v2672
    %v2674 = vperm.slane %v2666, %v2673
    %v2675 = vrot.slane %v852, 4
    %v2676 = vsel %vm1319, %v2675, %v846
    %v2677 = vrot.slane %v846, 4
    %v2678 = vsel %vm1319, %v852, %v2677
    %v2680 = vunpack.c.l.s4 1983009808
    %v2681 = vunpack.c.0.s8 %v2680
    %v2682 = vperm.slane %v2676, %v2681
    %v2684 = vunpack.c.l.s4 1983009808
    %v2685 = vunpack.c.0.s8 %v2684
    %v2686 = vperm.slane %v2678, %v2685
    %v2687 = vrot.slane %v861, 4
    %v2688 = vsel %vm1319, %v2687, %v855
    %v2689 = vrot.slane %v855, 4
    %v2690 = vsel %vm1319, %v861, %v2689
    %v2692 = vunpack.c.l.s4 1983009808
    %v2693 = vunpack.c.0.s8 %v2692
    %v2694 = vperm.slane %v2688, %v2693
    %v2696 = vunpack.c.l.s4 1983009808
    %v2697 = vunpack.c.0.s8 %v2696
    %v2698 = vperm.slane %v2690, %v2697
    %v2699 = vrot.slane %v864, 4
    %v2700 = vsel %vm1319, %v2699, %v858
    %v2701 = vrot.slane %v858, 4
    %v2702 = vsel %vm1319, %v864, %v2701
    %v2704 = vunpack.c.l.s4 1983009808
    %v2705 = vunpack.c.0.s8 %v2704
    %v2706 = vperm.slane %v2700, %v2705
    %v2708 = vunpack.c.l.s4 1983009808
    %v2709 = vunpack.c.0.s8 %v2708
    %v2710 = vperm.slane %v2702, %v2709
    %v2711 = vrot.slane %v2682, 4
    %v2712 = vsel %vm1319, %v2711, %v2670
    %v2713 = vrot.slane %v2670, 4
    %v2714 = vsel %vm1319, %v2682, %v2713
    %v2716 = vunpack.c.l.s4 1934713408
    %v2717 = vunpack.c.0.s8 %v2716
    %v2718 = vperm.slane %v2712, %v2717
    %v2720 = vunpack.c.l.s4 1934713408
    %v2721 = vunpack.c.0.s8 %v2720
    %v2722 = vperm.slane %v2714, %v2721
    %v2723 = vrot.slane %v2686, 4
    %v2724 = vsel %vm1319, %v2723, %v2674
    %v2725 = vrot.slane %v2674, 4
    %v2726 = vsel %vm1319, %v2686, %v2725
    %v2728 = vunpack.c.l.s4 1934713408
    %v2729 = vunpack.c.0.s8 %v2728
    %v2730 = vperm.slane %v2724, %v2729
    %v2732 = vunpack.c.l.s4 1934713408
    %v2733 = vunpack.c.0.s8 %v2732
    %v2734 = vperm.slane %v2726, %v2733
    %v2735 = vrot.slane %v2706, 4
    %v2736 = vsel %vm1319, %v2735, %v2694
    %v2737 = vrot.slane %v2694, 4
    %v2738 = vsel %vm1319, %v2706, %v2737
    %v2740 = vunpack.c.l.s4 1934713408
    %v2741 = vunpack.c.0.s8 %v2740
    %v2742 = vperm.slane %v2736, %v2741
    %v2744 = vunpack.c.l.s4 1934713408
    %v2745 = vunpack.c.0.s8 %v2744
    %v2746 = vperm.slane %v2738, %v2745
    %v2747 = vrot.slane %v2710, 4
    %v2748 = vsel %vm1319, %v2747, %v2698
    %v2749 = vrot.slane %v2698, 4
    %v2750 = vsel %vm1319, %v2710, %v2749
    %v2752 = vunpack.c.l.s4 1934713408
    %v2753 = vunpack.c.0.s8 %v2752
    %v2754 = vperm.slane %v2748, %v2753
    %v2756 = vunpack.c.l.s4 1934713408
    %v2757 = vunpack.c.0.s8 %v2756
    %v2758 = vperm.slane %v2750, %v2757
    %v2759 = vrot.slane %v2742, 4
    %v2760 = vsel %vm1319, %v2759, %v2718
    %v2761 = vrot.slane %v2718, 4
    %v2762 = vsel %vm1319, %v2742, %v2761
    %v2763 = vrot.slane %v2746, 4
    %v2764 = vsel %vm1319, %v2763, %v2722
    %v2765 = vrot.slane %v2722, 4
    %v2766 = vsel %vm1319, %v2746, %v2765
    %v2767 = vrot.slane %v2754, 4
    %v2768 = vsel %vm1319, %v2767, %v2730
    %v2769 = vrot.slane %v2730, 4
    %v2770 = vsel %vm1319, %v2754, %v2769
    %v2771 = vrot.slane %v2758, 4
    %v2772 = vsel %vm1319, %v2771, %v2734
    %v2773 = vrot.slane %v2734, 4
    %v2774 = vsel %vm1319, %v2758, %v2773
    %v2775 = vrot.slane %v873, 4
    %v2776 = vsel %vm1319, %v2775, %v867
    %v2777 = vrot.slane %v867, 4
    %v2778 = vsel %vm1319, %v873, %v2777
    %v2780 = vunpack.c.l.s4 1983009808
    %v2781 = vunpack.c.0.s8 %v2780
    %v2782 = vperm.slane %v2776, %v2781
    %v2784 = vunpack.c.l.s4 1983009808
    %v2785 = vunpack.c.0.s8 %v2784
    %v2786 = vperm.slane %v2778, %v2785
    %v2787 = vrot.slane %v876, 4
    %v2788 = vsel %vm1319, %v2787, %v870
    %v2789 = vrot.slane %v870, 4
    %v2790 = vsel %vm1319, %v876, %v2789
    %v2792 = vunpack.c.l.s4 1983009808
    %v2793 = vunpack.c.0.s8 %v2792
    %v2794 = vperm.slane %v2788, %v2793
    %v2796 = vunpack.c.l.s4 1983009808
    %v2797 = vunpack.c.0.s8 %v2796
    %v2798 = vperm.slane %v2790, %v2797
    %v2799 = vrot.slane %v885, 4
    %v2800 = vsel %vm1319, %v2799, %v879
    %v2801 = vrot.slane %v879, 4
    %v2802 = vsel %vm1319, %v885, %v2801
    %v2804 = vunpack.c.l.s4 1983009808
    %v2805 = vunpack.c.0.s8 %v2804
    %v2806 = vperm.slane %v2800, %v2805
    %v2808 = vunpack.c.l.s4 1983009808
    %v2809 = vunpack.c.0.s8 %v2808
    %v2810 = vperm.slane %v2802, %v2809
    %v2811 = vrot.slane %v888, 4
    %v2812 = vsel %vm1319, %v2811, %v882
    %v2813 = vrot.slane %v882, 4
    %v2814 = vsel %vm1319, %v888, %v2813
    %v2816 = vunpack.c.l.s4 1983009808
    %v2817 = vunpack.c.0.s8 %v2816
    %v2818 = vperm.slane %v2812, %v2817
    %v2820 = vunpack.c.l.s4 1983009808
    %v2821 = vunpack.c.0.s8 %v2820
    %v2822 = vperm.slane %v2814, %v2821
    %v2823 = vrot.slane %v2794, 4
    %v2824 = vsel %vm1319, %v2823, %v2782
    %v2825 = vrot.slane %v2782, 4
    %v2826 = vsel %vm1319, %v2794, %v2825
    %v2828 = vunpack.c.l.s4 1934713408
    %v2829 = vunpack.c.0.s8 %v2828
    %v2830 = vperm.slane %v2824, %v2829
    %v2832 = vunpack.c.l.s4 1934713408
    %v2833 = vunpack.c.0.s8 %v2832
    %v2834 = vperm.slane %v2826, %v2833
    %v2835 = vrot.slane %v2798, 4
    %v2836 = vsel %vm1319, %v2835, %v2786
    %v2837 = vrot.slane %v2786, 4
    %v2838 = vsel %vm1319, %v2798, %v2837
    %v2840 = vunpack.c.l.s4 1934713408
    %v2841 = vunpack.c.0.s8 %v2840
    %v2842 = vperm.slane %v2836, %v2841
    %v2844 = vunpack.c.l.s4 1934713408
    %v2845 = vunpack.c.0.s8 %v2844
    %v2846 = vperm.slane %v2838, %v2845
    %v2847 = vrot.slane %v2818, 4
    %v2848 = vsel %vm1319, %v2847, %v2806
    %v2849 = vrot.slane %v2806, 4
    %v2850 = vsel %vm1319, %v2818, %v2849
    %v2852 = vunpack.c.l.s4 1934713408
    %v2853 = vunpack.c.0.s8 %v2852
    %v2854 = vperm.slane %v2848, %v2853
    %v2856 = vunpack.c.l.s4 1934713408
    %v2857 = vunpack.c.0.s8 %v2856
    %v2858 = vperm.slane %v2850, %v2857
    %v2859 = vrot.slane %v2822, 4
    %v2860 = vsel %vm1319, %v2859, %v2810
    %v2861 = vrot.slane %v2810, 4
    %v2862 = vsel %vm1319, %v2822, %v2861
    %v2864 = vunpack.c.l.s4 1934713408
    %v2865 = vunpack.c.0.s8 %v2864
    %v2866 = vperm.slane %v2860, %v2865
    %v2868 = vunpack.c.l.s4 1934713408
    %v2869 = vunpack.c.0.s8 %v2868
    %v2870 = vperm.slane %v2862, %v2869
    %v2871 = vrot.slane %v2854, 4
    %v2872 = vsel %vm1319, %v2871, %v2830
    %v2873 = vrot.slane %v2830, 4
    %v2874 = vsel %vm1319, %v2854, %v2873
    %v2875 = vrot.slane %v2858, 4
    %v2876 = vsel %vm1319, %v2875, %v2834
    %v2877 = vrot.slane %v2834, 4
    %v2878 = vsel %vm1319, %v2858, %v2877
    %v2879 = vrot.slane %v2866, 4
    %v2880 = vsel %vm1319, %v2879, %v2842
    %v2881 = vrot.slane %v2842, 4
    %v2882 = vsel %vm1319, %v2866, %v2881
    %v2883 = vrot.slane %v2870, 4
    %v2884 = vsel %vm1319, %v2883, %v2846
    %v2885 = vrot.slane %v2846, 4
    %v2886 = vsel %vm1319, %v2870, %v2885
    %v2887 = vrot.slane %v897, 4
    %v2888 = vsel %vm1319, %v2887, %v891
    %v2889 = vrot.slane %v891, 4
    %v2890 = vsel %vm1319, %v897, %v2889
    %v2892 = vunpack.c.l.s4 1983009808
    %v2893 = vunpack.c.0.s8 %v2892
    %v2894 = vperm.slane %v2888, %v2893
    %v2896 = vunpack.c.l.s4 1983009808
    %v2897 = vunpack.c.0.s8 %v2896
    %v2898 = vperm.slane %v2890, %v2897
    %v2899 = vrot.slane %v900, 4
    %v2900 = vsel %vm1319, %v2899, %v894
    %v2901 = vrot.slane %v894, 4
    %v2902 = vsel %vm1319, %v900, %v2901
    %v2904 = vunpack.c.l.s4 1983009808
    %v2905 = vunpack.c.0.s8 %v2904
    %v2906 = vperm.slane %v2900, %v2905
    %v2908 = vunpack.c.l.s4 1983009808
    %v2909 = vunpack.c.0.s8 %v2908
    %v2910 = vperm.slane %v2902, %v2909
    %v2911 = vrot.slane %v909, 4
    %v2912 = vsel %vm1319, %v2911, %v903
    %v2913 = vrot.slane %v903, 4
    %v2914 = vsel %vm1319, %v909, %v2913
    %v2916 = vunpack.c.l.s4 1983009808
    %v2917 = vunpack.c.0.s8 %v2916
    %v2918 = vperm.slane %v2912, %v2917
    %v2920 = vunpack.c.l.s4 1983009808
    %v2921 = vunpack.c.0.s8 %v2920
    %v2922 = vperm.slane %v2914, %v2921
    %v2923 = vrot.slane %v912, 4
    %v2924 = vsel %vm1319, %v2923, %v906
    %v2925 = vrot.slane %v906, 4
    %v2926 = vsel %vm1319, %v912, %v2925
    %v2928 = vunpack.c.l.s4 1983009808
    %v2929 = vunpack.c.0.s8 %v2928
    %v2930 = vperm.slane %v2924, %v2929
    %v2932 = vunpack.c.l.s4 1983009808
    %v2933 = vunpack.c.0.s8 %v2932
    %v2934 = vperm.slane %v2926, %v2933
    %v2935 = vrot.slane %v2906, 4
    %v2936 = vsel %vm1319, %v2935, %v2894
    %v2937 = vrot.slane %v2894, 4
    %v2938 = vsel %vm1319, %v2906, %v2937
    %v2940 = vunpack.c.l.s4 1934713408
    %v2941 = vunpack.c.0.s8 %v2940
    %v2942 = vperm.slane %v2936, %v2941
    %v2944 = vunpack.c.l.s4 1934713408
    %v2945 = vunpack.c.0.s8 %v2944
    %v2946 = vperm.slane %v2938, %v2945
    %v2947 = vrot.slane %v2910, 4
    %v2948 = vsel %vm1319, %v2947, %v2898
    %v2949 = vrot.slane %v2898, 4
    %v2950 = vsel %vm1319, %v2910, %v2949
    %v2952 = vunpack.c.l.s4 1934713408
    %v2953 = vunpack.c.0.s8 %v2952
    %v2954 = vperm.slane %v2948, %v2953
    %v2956 = vunpack.c.l.s4 1934713408
    %v2957 = vunpack.c.0.s8 %v2956
    %v2958 = vperm.slane %v2950, %v2957
    %v2959 = vrot.slane %v2930, 4
    %v2960 = vsel %vm1319, %v2959, %v2918
    %v2961 = vrot.slane %v2918, 4
    %v2962 = vsel %vm1319, %v2930, %v2961
    %v2964 = vunpack.c.l.s4 1934713408
    %v2965 = vunpack.c.0.s8 %v2964
    %v2966 = vperm.slane %v2960, %v2965
    %v2968 = vunpack.c.l.s4 1934713408
    %v2969 = vunpack.c.0.s8 %v2968
    %v2970 = vperm.slane %v2962, %v2969
    %v2971 = vrot.slane %v2934, 4
    %v2972 = vsel %vm1319, %v2971, %v2922
    %v2973 = vrot.slane %v2922, 4
    %v2974 = vsel %vm1319, %v2934, %v2973
    %v2976 = vunpack.c.l.s4 1934713408
    %v2977 = vunpack.c.0.s8 %v2976
    %v2978 = vperm.slane %v2972, %v2977
    %v2980 = vunpack.c.l.s4 1934713408
    %v2981 = vunpack.c.0.s8 %v2980
    %v2982 = vperm.slane %v2974, %v2981
    %v2983 = vrot.slane %v2966, 4
    %v2984 = vsel %vm1319, %v2983, %v2942
    %v2985 = vrot.slane %v2942, 4
    %v2986 = vsel %vm1319, %v2966, %v2985
    %v2987 = vrot.slane %v2970, 4
    %v2988 = vsel %vm1319, %v2987, %v2946
    %v2989 = vrot.slane %v2946, 4
    %v2990 = vsel %vm1319, %v2970, %v2989
    %v2991 = vrot.slane %v2978, 4
    %v2992 = vsel %vm1319, %v2991, %v2954
    %v2993 = vrot.slane %v2954, 4
    %v2994 = vsel %vm1319, %v2978, %v2993
    %v2995 = vrot.slane %v2982, 4
    %v2996 = vsel %vm1319, %v2995, %v2958
    %v2997 = vrot.slane %v2958, 4
    %v2998 = vsel %vm1319, %v2982, %v2997
    %v2999 = vrot.slane %v921, 4
    %v3000 = vsel %vm1319, %v2999, %v915
    %v3001 = vrot.slane %v915, 4
    %v3002 = vsel %vm1319, %v921, %v3001
    %v3004 = vunpack.c.l.s4 1983009808
    %v3005 = vunpack.c.0.s8 %v3004
    %v3006 = vperm.slane %v3000, %v3005
    %v3008 = vunpack.c.l.s4 1983009808
    %v3009 = vunpack.c.0.s8 %v3008
    %v3010 = vperm.slane %v3002, %v3009
    %v3011 = vrot.slane %v924, 4
    %v3012 = vsel %vm1319, %v3011, %v918
    %v3013 = vrot.slane %v918, 4
    %v3014 = vsel %vm1319, %v924, %v3013
    %v3016 = vunpack.c.l.s4 1983009808
    %v3017 = vunpack.c.0.s8 %v3016
    %v3018 = vperm.slane %v3012, %v3017
    %v3020 = vunpack.c.l.s4 1983009808
    %v3021 = vunpack.c.0.s8 %v3020
    %v3022 = vperm.slane %v3014, %v3021
    %v3023 = vrot.slane %v933, 4
    %v3024 = vsel %vm1319, %v3023, %v927
    %v3025 = vrot.slane %v927, 4
    %v3026 = vsel %vm1319, %v933, %v3025
    %v3028 = vunpack.c.l.s4 1983009808
    %v3029 = vunpack.c.0.s8 %v3028
    %v3030 = vperm.slane %v3024, %v3029
    %v3032 = vunpack.c.l.s4 1983009808
    %v3033 = vunpack.c.0.s8 %v3032
    %v3034 = vperm.slane %v3026, %v3033
    %v3035 = vrot.slane %v936, 4
    %v3036 = vsel %vm1319, %v3035, %v930
    %v3037 = vrot.slane %v930, 4
    %v3038 = vsel %vm1319, %v936, %v3037
    %v3040 = vunpack.c.l.s4 1983009808
    %v3041 = vunpack.c.0.s8 %v3040
    %v3042 = vperm.slane %v3036, %v3041
    %v3044 = vunpack.c.l.s4 1983009808
    %v3045 = vunpack.c.0.s8 %v3044
    %v3046 = vperm.slane %v3038, %v3045
    %v3047 = vrot.slane %v3018, 4
    %v3048 = vsel %vm1319, %v3047, %v3006
    %v3049 = vrot.slane %v3006, 4
    %v3050 = vsel %vm1319, %v3018, %v3049
    %v3052 = vunpack.c.l.s4 1934713408
    %v3053 = vunpack.c.0.s8 %v3052
    %v3054 = vperm.slane %v3048, %v3053
    %v3056 = vunpack.c.l.s4 1934713408
    %v3057 = vunpack.c.0.s8 %v3056
    %v3058 = vperm.slane %v3050, %v3057
    %v3059 = vrot.slane %v3022, 4
    %v3060 = vsel %vm1319, %v3059, %v3010
    %v3061 = vrot.slane %v3010, 4
    %v3062 = vsel %vm1319, %v3022, %v3061
    %v3064 = vunpack.c.l.s4 1934713408
    %v3065 = vunpack.c.0.s8 %v3064
    %v3066 = vperm.slane %v3060, %v3065
    %v3068 = vunpack.c.l.s4 1934713408
    %v3069 = vunpack.c.0.s8 %v3068
    %v3070 = vperm.slane %v3062, %v3069
    %v3071 = vrot.slane %v3042, 4
    %v3072 = vsel %vm1319, %v3071, %v3030
    %v3073 = vrot.slane %v3030, 4
    %v3074 = vsel %vm1319, %v3042, %v3073
    %v3076 = vunpack.c.l.s4 1934713408
    %v3077 = vunpack.c.0.s8 %v3076
    %v3078 = vperm.slane %v3072, %v3077
    %v3080 = vunpack.c.l.s4 1934713408
    %v3081 = vunpack.c.0.s8 %v3080
    %v3082 = vperm.slane %v3074, %v3081
    %v3083 = vrot.slane %v3046, 4
    %v3084 = vsel %vm1319, %v3083, %v3034
    %v3085 = vrot.slane %v3034, 4
    %v3086 = vsel %vm1319, %v3046, %v3085
    %v3088 = vunpack.c.l.s4 1934713408
    %v3089 = vunpack.c.0.s8 %v3088
    %v3090 = vperm.slane %v3084, %v3089
    %v3092 = vunpack.c.l.s4 1934713408
    %v3093 = vunpack.c.0.s8 %v3092
    %v3094 = vperm.slane %v3086, %v3093
    %v3095 = vrot.slane %v3078, 4
    %v3096 = vsel %vm1319, %v3095, %v3054
    %v3097 = vrot.slane %v3054, 4
    %v3098 = vsel %vm1319, %v3078, %v3097
    %v3099 = vrot.slane %v3082, 4
    %v3100 = vsel %vm1319, %v3099, %v3058
    %v3101 = vrot.slane %v3058, 4
    %v3102 = vsel %vm1319, %v3082, %v3101
    %v3103 = vrot.slane %v3090, 4
    %v3104 = vsel %vm1319, %v3103, %v3066
    %v3105 = vrot.slane %v3066, 4
    %v3106 = vsel %vm1319, %v3090, %v3105
    %v3107 = vrot.slane %v3094, 4
    %v3108 = vsel %vm1319, %v3107, %v3070
    %v3109 = vrot.slane %v3070, 4
    %v3110 = vsel %vm1319, %v3094, %v3109
    %v3111 = vrot.slane %v943, 4
    %v3112 = vsel %vm1319, %v3111, %v536
    %v3113 = vrot.slane %v536, 4
    %v3114 = vsel %vm1319, %v943, %v3113
    %v3116 = vunpack.c.l.s4 1983009808
    %v3117 = vunpack.c.0.s8 %v3116
    %v3118 = vperm.slane %v3112, %v3117
    %v3120 = vunpack.c.l.s4 1983009808
    %v3121 = vunpack.c.0.s8 %v3120
    %v3122 = vperm.slane %v3114, %v3121
    %v3123 = vrot.slane %v946, 4
    %v3124 = vsel %vm1319, %v3123, %v940
    %v3125 = vrot.slane %v940, 4
    %v3126 = vsel %vm1319, %v946, %v3125
    %v3128 = vunpack.c.l.s4 1983009808
    %v3129 = vunpack.c.0.s8 %v3128
    %v3130 = vperm.slane %v3124, %v3129
    %v3132 = vunpack.c.l.s4 1983009808
    %v3133 = vunpack.c.0.s8 %v3132
    %v3134 = vperm.slane %v3126, %v3133
    %v3135 = vrot.slane %v955, 4
    %v3136 = vsel %vm1319, %v3135, %v949
    %v3137 = vrot.slane %v949, 4
    %v3138 = vsel %vm1319, %v955, %v3137
    %v3140 = vunpack.c.l.s4 1983009808
    %v3141 = vunpack.c.0.s8 %v3140
    %v3142 = vperm.slane %v3136, %v3141
    %v3144 = vunpack.c.l.s4 1983009808
    %v3145 = vunpack.c.0.s8 %v3144
    %v3146 = vperm.slane %v3138, %v3145
    %v3147 = vrot.slane %v958, 4
    %v3148 = vsel %vm1319, %v3147, %v952
    %v3149 = vrot.slane %v952, 4
    %v3150 = vsel %vm1319, %v958, %v3149
    %v3152 = vunpack.c.l.s4 1983009808
    %v3153 = vunpack.c.0.s8 %v3152
    %v3154 = vperm.slane %v3148, %v3153
    %v3156 = vunpack.c.l.s4 1983009808
    %v3157 = vunpack.c.0.s8 %v3156
    %v3158 = vperm.slane %v3150, %v3157
    %v3159 = vrot.slane %v3130, 4
    %v3160 = vsel %vm1319, %v3159, %v3118
    %v3161 = vrot.slane %v3118, 4
    %v3162 = vsel %vm1319, %v3130, %v3161
    %v3164 = vunpack.c.l.s4 1934713408
    %v3165 = vunpack.c.0.s8 %v3164
    %v3166 = vperm.slane %v3160, %v3165
    %v3168 = vunpack.c.l.s4 1934713408
    %v3169 = vunpack.c.0.s8 %v3168
    %v3170 = vperm.slane %v3162, %v3169
    %v3171 = vrot.slane %v3134, 4
    %v3172 = vsel %vm1319, %v3171, %v3122
    %v3173 = vrot.slane %v3122, 4
    %v3174 = vsel %vm1319, %v3134, %v3173
    %v3176 = vunpack.c.l.s4 1934713408
    %v3177 = vunpack.c.0.s8 %v3176
    %v3178 = vperm.slane %v3172, %v3177
    %v3180 = vunpack.c.l.s4 1934713408
    %v3181 = vunpack.c.0.s8 %v3180
    %v3182 = vperm.slane %v3174, %v3181
    %v3183 = vrot.slane %v3154, 4
    %v3184 = vsel %vm1319, %v3183, %v3142
    %v3185 = vrot.slane %v3142, 4
    %v3186 = vsel %vm1319, %v3154, %v3185
    %v3188 = vunpack.c.l.s4 1934713408
    %v3189 = vunpack.c.0.s8 %v3188
    %v3190 = vperm.slane %v3184, %v3189
    %v3192 = vunpack.c.l.s4 1934713408
    %v3193 = vunpack.c.0.s8 %v3192
    %v3194 = vperm.slane %v3186, %v3193
    %v3195 = vrot.slane %v3158, 4
    %v3196 = vsel %vm1319, %v3195, %v3146
    %v3197 = vrot.slane %v3146, 4
    %v3198 = vsel %vm1319, %v3158, %v3197
    %v3200 = vunpack.c.l.s4 1934713408
    %v3201 = vunpack.c.0.s8 %v3200
    %v3202 = vperm.slane %v3196, %v3201
    %v3204 = vunpack.c.l.s4 1934713408
    %v3205 = vunpack.c.0.s8 %v3204
    %v3206 = vperm.slane %v3198, %v3205
    %v3207 = vrot.slane %v3190, 4
    %v3208 = vsel %vm1319, %v3207, %v3166
    %v3209 = vrot.slane %v3166, 4
    %v3210 = vsel %vm1319, %v3190, %v3209
    %v3211 = vrot.slane %v3194, 4
    %v3212 = vsel %vm1319, %v3211, %v3170
    %v3213 = vrot.slane %v3170, 4
    %v3214 = vsel %vm1319, %v3194, %v3213
    %v3215 = vrot.slane %v3202, 4
    %v3216 = vsel %vm1319, %v3215, %v3178
    %v3217 = vrot.slane %v3178, 4
    %v3218 = vsel %vm1319, %v3202, %v3217
    %v3219 = vrot.slane %v3206, 4
    %v3220 = vsel %vm1319, %v3219, %v3182
    %v3221 = vrot.slane %v3182, 4
    %v3222 = vsel %vm1319, %v3206, %v3221
    %v3223 = vrot.slane %v967, 4
    %v3224 = vsel %vm1319, %v3223, %v961
    %v3225 = vrot.slane %v961, 4
    %v3226 = vsel %vm1319, %v967, %v3225
    %v3228 = vunpack.c.l.s4 1983009808
    %v3229 = vunpack.c.0.s8 %v3228
    %v3230 = vperm.slane %v3224, %v3229
    %v3232 = vunpack.c.l.s4 1983009808
    %v3233 = vunpack.c.0.s8 %v3232
    %v3234 = vperm.slane %v3226, %v3233
    %v3235 = vrot.slane %v970, 4
    %v3236 = vsel %vm1319, %v3235, %v964
    %v3237 = vrot.slane %v964, 4
    %v3238 = vsel %vm1319, %v970, %v3237
    %v3240 = vunpack.c.l.s4 1983009808
    %v3241 = vunpack.c.0.s8 %v3240
    %v3242 = vperm.slane %v3236, %v3241
    %v3244 = vunpack.c.l.s4 1983009808
    %v3245 = vunpack.c.0.s8 %v3244
    %v3246 = vperm.slane %v3238, %v3245
    %v3247 = vrot.slane %v979, 4
    %v3248 = vsel %vm1319, %v3247, %v973
    %v3249 = vrot.slane %v973, 4
    %v3250 = vsel %vm1319, %v979, %v3249
    %v3252 = vunpack.c.l.s4 1983009808
    %v3253 = vunpack.c.0.s8 %v3252
    %v3254 = vperm.slane %v3248, %v3253
    %v3256 = vunpack.c.l.s4 1983009808
    %v3257 = vunpack.c.0.s8 %v3256
    %v3258 = vperm.slane %v3250, %v3257
    %v3259 = vrot.slane %v982, 4
    %v3260 = vsel %vm1319, %v3259, %v976
    %v3261 = vrot.slane %v976, 4
    %v3262 = vsel %vm1319, %v982, %v3261
    %v3264 = vunpack.c.l.s4 1983009808
    %v3265 = vunpack.c.0.s8 %v3264
    %v3266 = vperm.slane %v3260, %v3265
    %v3268 = vunpack.c.l.s4 1983009808
    %v3269 = vunpack.c.0.s8 %v3268
    %v3270 = vperm.slane %v3262, %v3269
    %v3271 = vrot.slane %v3242, 4
    %v3272 = vsel %vm1319, %v3271, %v3230
    %v3273 = vrot.slane %v3230, 4
    %v3274 = vsel %vm1319, %v3242, %v3273
    %v3276 = vunpack.c.l.s4 1934713408
    %v3277 = vunpack.c.0.s8 %v3276
    %v3278 = vperm.slane %v3272, %v3277
    %v3280 = vunpack.c.l.s4 1934713408
    %v3281 = vunpack.c.0.s8 %v3280
    %v3282 = vperm.slane %v3274, %v3281
    %v3283 = vrot.slane %v3246, 4
    %v3284 = vsel %vm1319, %v3283, %v3234
    %v3285 = vrot.slane %v3234, 4
    %v3286 = vsel %vm1319, %v3246, %v3285
    %v3288 = vunpack.c.l.s4 1934713408
    %v3289 = vunpack.c.0.s8 %v3288
    %v3290 = vperm.slane %v3284, %v3289
    %v3292 = vunpack.c.l.s4 1934713408
    %v3293 = vunpack.c.0.s8 %v3292
    %v3294 = vperm.slane %v3286, %v3293
    %v3295 = vrot.slane %v3266, 4
    %v3296 = vsel %vm1319, %v3295, %v3254
    %v3297 = vrot.slane %v3254, 4
    %v3298 = vsel %vm1319, %v3266, %v3297
    %v3300 = vunpack.c.l.s4 1934713408
    %v3301 = vunpack.c.0.s8 %v3300
    %v3302 = vperm.slane %v3296, %v3301
    %v3304 = vunpack.c.l.s4 1934713408
    %v3305 = vunpack.c.0.s8 %v3304
    %v3306 = vperm.slane %v3298, %v3305
    %v3307 = vrot.slane %v3270, 4
    %v3308 = vsel %vm1319, %v3307, %v3258
    %v3309 = vrot.slane %v3258, 4
    %v3310 = vsel %vm1319, %v3270, %v3309
    %v3312 = vunpack.c.l.s4 1934713408
    %v3313 = vunpack.c.0.s8 %v3312
    %v3314 = vperm.slane %v3308, %v3313
    %v3316 = vunpack.c.l.s4 1934713408
    %v3317 = vunpack.c.0.s8 %v3316
    %v3318 = vperm.slane %v3310, %v3317
    %v3319 = vrot.slane %v3302, 4
    %v3320 = vsel %vm1319, %v3319, %v3278
    %v3321 = vrot.slane %v3278, 4
    %v3322 = vsel %vm1319, %v3302, %v3321
    %v3323 = vrot.slane %v3306, 4
    %v3324 = vsel %vm1319, %v3323, %v3282
    %v3325 = vrot.slane %v3282, 4
    %v3326 = vsel %vm1319, %v3306, %v3325
    %v3327 = vrot.slane %v3314, 4
    %v3328 = vsel %vm1319, %v3327, %v3290
    %v3329 = vrot.slane %v3290, 4
    %v3330 = vsel %vm1319, %v3314, %v3329
    %v3331 = vrot.slane %v3318, 4
    %v3332 = vsel %vm1319, %v3331, %v3294
    %v3333 = vrot.slane %v3294, 4
    %v3334 = vsel %vm1319, %v3318, %v3333
    %v3335 = vrot.slane %v991, 4
    %v3336 = vsel %vm1319, %v3335, %v985
    %v3337 = vrot.slane %v985, 4
    %v3338 = vsel %vm1319, %v991, %v3337
    %v3340 = vunpack.c.l.s4 1983009808
    %v3341 = vunpack.c.0.s8 %v3340
    %v3342 = vperm.slane %v3336, %v3341
    %v3344 = vunpack.c.l.s4 1983009808
    %v3345 = vunpack.c.0.s8 %v3344
    %v3346 = vperm.slane %v3338, %v3345
    %v3347 = vrot.slane %v994, 4
    %v3348 = vsel %vm1319, %v3347, %v988
    %v3349 = vrot.slane %v988, 4
    %v3350 = vsel %vm1319, %v994, %v3349
    %v3352 = vunpack.c.l.s4 1983009808
    %v3353 = vunpack.c.0.s8 %v3352
    %v3354 = vperm.slane %v3348, %v3353
    %v3356 = vunpack.c.l.s4 1983009808
    %v3357 = vunpack.c.0.s8 %v3356
    %v3358 = vperm.slane %v3350, %v3357
    %v3359 = vrot.slane %v1003, 4
    %v3360 = vsel %vm1319, %v3359, %v997
    %v3361 = vrot.slane %v997, 4
    %v3362 = vsel %vm1319, %v1003, %v3361
    %v3364 = vunpack.c.l.s4 1983009808
    %v3365 = vunpack.c.0.s8 %v3364
    %v3366 = vperm.slane %v3360, %v3365
    %v3368 = vunpack.c.l.s4 1983009808
    %v3369 = vunpack.c.0.s8 %v3368
    %v3370 = vperm.slane %v3362, %v3369
    %v3371 = vrot.slane %v1006, 4
    %v3372 = vsel %vm1319, %v3371, %v1000
    %v3373 = vrot.slane %v1000, 4
    %v3374 = vsel %vm1319, %v1006, %v3373
    %v3376 = vunpack.c.l.s4 1983009808
    %v3377 = vunpack.c.0.s8 %v3376
    %v3378 = vperm.slane %v3372, %v3377
    %v3380 = vunpack.c.l.s4 1983009808
    %v3381 = vunpack.c.0.s8 %v3380
    %v3382 = vperm.slane %v3374, %v3381
    %v3383 = vrot.slane %v3354, 4
    %v3384 = vsel %vm1319, %v3383, %v3342
    %v3385 = vrot.slane %v3342, 4
    %v3386 = vsel %vm1319, %v3354, %v3385
    %v3388 = vunpack.c.l.s4 1934713408
    %v3389 = vunpack.c.0.s8 %v3388
    %v3390 = vperm.slane %v3384, %v3389
    %v3392 = vunpack.c.l.s4 1934713408
    %v3393 = vunpack.c.0.s8 %v3392
    %v3394 = vperm.slane %v3386, %v3393
    %v3395 = vrot.slane %v3358, 4
    %v3396 = vsel %vm1319, %v3395, %v3346
    %v3397 = vrot.slane %v3346, 4
    %v3398 = vsel %vm1319, %v3358, %v3397
    %v3400 = vunpack.c.l.s4 1934713408
    %v3401 = vunpack.c.0.s8 %v3400
    %v3402 = vperm.slane %v3396, %v3401
    %v3404 = vunpack.c.l.s4 1934713408
    %v3405 = vunpack.c.0.s8 %v3404
    %v3406 = vperm.slane %v3398, %v3405
    %v3407 = vrot.slane %v3378, 4
    %v3408 = vsel %vm1319, %v3407, %v3366
    %v3409 = vrot.slane %v3366, 4
    %v3410 = vsel %vm1319, %v3378, %v3409
    %v3412 = vunpack.c.l.s4 1934713408
    %v3413 = vunpack.c.0.s8 %v3412
    %v3414 = vperm.slane %v3408, %v3413
    %v3416 = vunpack.c.l.s4 1934713408
    %v3417 = vunpack.c.0.s8 %v3416
    %v3418 = vperm.slane %v3410, %v3417
    %v3419 = vrot.slane %v3382, 4
    %v3420 = vsel %vm1319, %v3419, %v3370
    %v3421 = vrot.slane %v3370, 4
    %v3422 = vsel %vm1319, %v3382, %v3421
    %v3424 = vunpack.c.l.s4 1934713408
    %v3425 = vunpack.c.0.s8 %v3424
    %v3426 = vperm.slane %v3420, %v3425
    %v3428 = vunpack.c.l.s4 1934713408
    %v3429 = vunpack.c.0.s8 %v3428
    %v3430 = vperm.slane %v3422, %v3429
    %v3431 = vrot.slane %v3414, 4
    %v3432 = vsel %vm1319, %v3431, %v3390
    %v3433 = vrot.slane %v3390, 4
    %v3434 = vsel %vm1319, %v3414, %v3433
    %v3435 = vrot.slane %v3418, 4
    %v3436 = vsel %vm1319, %v3435, %v3394
    %v3437 = vrot.slane %v3394, 4
    %v3438 = vsel %vm1319, %v3418, %v3437
    %v3439 = vrot.slane %v3426, 4
    %v3440 = vsel %vm1319, %v3439, %v3402
    %v3441 = vrot.slane %v3402, 4
    %v3442 = vsel %vm1319, %v3426, %v3441
    %v3443 = vrot.slane %v3430, 4
    %v3444 = vsel %vm1319, %v3443, %v3406
    %v3445 = vrot.slane %v3406, 4
    %v3446 = vsel %vm1319, %v3430, %v3445
    %v3447 = vrot.slane %v1015, 4
    %v3448 = vsel %vm1319, %v3447, %v1009
    %v3449 = vrot.slane %v1009, 4
    %v3450 = vsel %vm1319, %v1015, %v3449
    %v3452 = vunpack.c.l.s4 1983009808
    %v3453 = vunpack.c.0.s8 %v3452
    %v3454 = vperm.slane %v3448, %v3453
    %v3456 = vunpack.c.l.s4 1983009808
    %v3457 = vunpack.c.0.s8 %v3456
    %v3458 = vperm.slane %v3450, %v3457
    %v3459 = vrot.slane %v1018, 4
    %v3460 = vsel %vm1319, %v3459, %v1012
    %v3461 = vrot.slane %v1012, 4
    %v3462 = vsel %vm1319, %v1018, %v3461
    %v3464 = vunpack.c.l.s4 1983009808
    %v3465 = vunpack.c.0.s8 %v3464
    %v3466 = vperm.slane %v3460, %v3465
    %v3468 = vunpack.c.l.s4 1983009808
    %v3469 = vunpack.c.0.s8 %v3468
    %v3470 = vperm.slane %v3462, %v3469
    %v3471 = vrot.slane %v1027, 4
    %v3472 = vsel %vm1319, %v3471, %v1021
    %v3473 = vrot.slane %v1021, 4
    %v3474 = vsel %vm1319, %v1027, %v3473
    %v3476 = vunpack.c.l.s4 1983009808
    %v3477 = vunpack.c.0.s8 %v3476
    %v3478 = vperm.slane %v3472, %v3477
    %v3480 = vunpack.c.l.s4 1983009808
    %v3481 = vunpack.c.0.s8 %v3480
    %v3482 = vperm.slane %v3474, %v3481
    %v3483 = vrot.slane %v1030, 4
    %v3484 = vsel %vm1319, %v3483, %v1024
    %v3485 = vrot.slane %v1024, 4
    %v3486 = vsel %vm1319, %v1030, %v3485
    %v3488 = vunpack.c.l.s4 1983009808
    %v3489 = vunpack.c.0.s8 %v3488
    %v3490 = vperm.slane %v3484, %v3489
    %v3492 = vunpack.c.l.s4 1983009808
    %v3493 = vunpack.c.0.s8 %v3492
    %v3494 = vperm.slane %v3486, %v3493
    %v3495 = vrot.slane %v3466, 4
    %v3496 = vsel %vm1319, %v3495, %v3454
    %v3497 = vrot.slane %v3454, 4
    %v3498 = vsel %vm1319, %v3466, %v3497
    %v3500 = vunpack.c.l.s4 1934713408
    %v3501 = vunpack.c.0.s8 %v3500
    %v3502 = vperm.slane %v3496, %v3501
    %v3504 = vunpack.c.l.s4 1934713408
    %v3505 = vunpack.c.0.s8 %v3504
    %v3506 = vperm.slane %v3498, %v3505
    %v3507 = vrot.slane %v3470, 4
    %v3508 = vsel %vm1319, %v3507, %v3458
    %v3509 = vrot.slane %v3458, 4
    %v3510 = vsel %vm1319, %v3470, %v3509
    %v3512 = vunpack.c.l.s4 1934713408
    %v3513 = vunpack.c.0.s8 %v3512
    %v3514 = vperm.slane %v3508, %v3513
    %v3516 = vunpack.c.l.s4 1934713408
    %v3517 = vunpack.c.0.s8 %v3516
    %v3518 = vperm.slane %v3510, %v3517
    %v3519 = vrot.slane %v3490, 4
    %v3520 = vsel %vm1319, %v3519, %v3478
    %v3521 = vrot.slane %v3478, 4
    %v3522 = vsel %vm1319, %v3490, %v3521
    %v3524 = vunpack.c.l.s4 1934713408
    %v3525 = vunpack.c.0.s8 %v3524
    %v3526 = vperm.slane %v3520, %v3525
    %v3528 = vunpack.c.l.s4 1934713408
    %v3529 = vunpack.c.0.s8 %v3528
    %v3530 = vperm.slane %v3522, %v3529
    %v3531 = vrot.slane %v3494, 4
    %v3532 = vsel %vm1319, %v3531, %v3482
    %v3533 = vrot.slane %v3482, 4
    %v3534 = vsel %vm1319, %v3494, %v3533
    %v3536 = vunpack.c.l.s4 1934713408
    %v3537 = vunpack.c.0.s8 %v3536
    %v3538 = vperm.slane %v3532, %v3537
    %v3540 = vunpack.c.l.s4 1934713408
    %v3541 = vunpack.c.0.s8 %v3540
    %v3542 = vperm.slane %v3534, %v3541
    %v3543 = vrot.slane %v3526, 4
    %v3544 = vsel %vm1319, %v3543, %v3502
    %v3545 = vrot.slane %v3502, 4
    %v3546 = vsel %vm1319, %v3526, %v3545
    %v3547 = vrot.slane %v3530, 4
    %v3548 = vsel %vm1319, %v3547, %v3506
    %v3549 = vrot.slane %v3506, 4
    %v3550 = vsel %vm1319, %v3530, %v3549
    %v3551 = vrot.slane %v3538, 4
    %v3552 = vsel %vm1319, %v3551, %v3514
    %v3553 = vrot.slane %v3514, 4
    %v3554 = vsel %vm1319, %v3538, %v3553
    %v3555 = vrot.slane %v3542, 4
    %v3556 = vsel %vm1319, %v3555, %v3518
    %v3557 = vrot.slane %v3518, 4
    %v3558 = vsel %vm1319, %v3542, %v3557
    %v3559 = vrot.slane %v1039, 4
    %v3560 = vsel %vm1319, %v3559, %v1033
    %v3561 = vrot.slane %v1033, 4
    %v3562 = vsel %vm1319, %v1039, %v3561
    %v3564 = vunpack.c.l.s4 1983009808
    %v3565 = vunpack.c.0.s8 %v3564
    %v3566 = vperm.slane %v3560, %v3565
    %v3568 = vunpack.c.l.s4 1983009808
    %v3569 = vunpack.c.0.s8 %v3568
    %v3570 = vperm.slane %v3562, %v3569
    %v3571 = vrot.slane %v1042, 4
    %v3572 = vsel %vm1319, %v3571, %v1036
    %v3573 = vrot.slane %v1036, 4
    %v3574 = vsel %vm1319, %v1042, %v3573
    %v3576 = vunpack.c.l.s4 1983009808
    %v3577 = vunpack.c.0.s8 %v3576
    %v3578 = vperm.slane %v3572, %v3577
    %v3580 = vunpack.c.l.s4 1983009808
    %v3581 = vunpack.c.0.s8 %v3580
    %v3582 = vperm.slane %v3574, %v3581
    %v3583 = vrot.slane %v1051, 4
    %v3584 = vsel %vm1319, %v3583, %v1045
    %v3585 = vrot.slane %v1045, 4
    %v3586 = vsel %vm1319, %v1051, %v3585
    %v3588 = vunpack.c.l.s4 1983009808
    %v3589 = vunpack.c.0.s8 %v3588
    %v3590 = vperm.slane %v3584, %v3589
    %v3592 = vunpack.c.l.s4 1983009808
    %v3593 = vunpack.c.0.s8 %v3592
    %v3594 = vperm.slane %v3586, %v3593
    %v3595 = vrot.slane %v1054, 4
    %v3596 = vsel %vm1319, %v3595, %v1048
    %v3597 = vrot.slane %v1048, 4
    %v3598 = vsel %vm1319, %v1054, %v3597
    %v3600 = vunpack.c.l.s4 1983009808
    %v3601 = vunpack.c.0.s8 %v3600
    %v3602 = vperm.slane %v3596, %v3601
    %v3604 = vunpack.c.l.s4 1983009808
    %v3605 = vunpack.c.0.s8 %v3604
    %v3606 = vperm.slane %v3598, %v3605
    %v3607 = vrot.slane %v3578, 4
    %v3608 = vsel %vm1319, %v3607, %v3566
    %v3609 = vrot.slane %v3566, 4
    %v3610 = vsel %vm1319, %v3578, %v3609
    %v3612 = vunpack.c.l.s4 1934713408
    %v3613 = vunpack.c.0.s8 %v3612
    %v3614 = vperm.slane %v3608, %v3613
    %v3616 = vunpack.c.l.s4 1934713408
    %v3617 = vunpack.c.0.s8 %v3616
    %v3618 = vperm.slane %v3610, %v3617
    %v3619 = vrot.slane %v3582, 4
    %v3620 = vsel %vm1319, %v3619, %v3570
    %v3621 = vrot.slane %v3570, 4
    %v3622 = vsel %vm1319, %v3582, %v3621
    %v3624 = vunpack.c.l.s4 1934713408
    %v3625 = vunpack.c.0.s8 %v3624
    %v3626 = vperm.slane %v3620, %v3625
    %v3628 = vunpack.c.l.s4 1934713408
    %v3629 = vunpack.c.0.s8 %v3628
    %v3630 = vperm.slane %v3622, %v3629
    %v3631 = vrot.slane %v3602, 4
    %v3632 = vsel %vm1319, %v3631, %v3590
    %v3633 = vrot.slane %v3590, 4
    %v3634 = vsel %vm1319, %v3602, %v3633
    %v3636 = vunpack.c.l.s4 1934713408
    %v3637 = vunpack.c.0.s8 %v3636
    %v3638 = vperm.slane %v3632, %v3637
    %v3640 = vunpack.c.l.s4 1934713408
    %v3641 = vunpack.c.0.s8 %v3640
    %v3642 = vperm.slane %v3634, %v3641
    %v3643 = vrot.slane %v3606, 4
    %v3644 = vsel %vm1319, %v3643, %v3594
    %v3645 = vrot.slane %v3594, 4
    %v3646 = vsel %vm1319, %v3606, %v3645
    %v3648 = vunpack.c.l.s4 1934713408
    %v3649 = vunpack.c.0.s8 %v3648
    %v3650 = vperm.slane %v3644, %v3649
    %v3652 = vunpack.c.l.s4 1934713408
    %v3653 = vunpack.c.0.s8 %v3652
    %v3654 = vperm.slane %v3646, %v3653
    %v3655 = vrot.slane %v3638, 4
    %v3656 = vsel %vm1319, %v3655, %v3614
    %v3657 = vrot.slane %v3614, 4
    %v3658 = vsel %vm1319, %v3638, %v3657
    %v3659 = vrot.slane %v3642, 4
    %v3660 = vsel %vm1319, %v3659, %v3618
    %v3661 = vrot.slane %v3618, 4
    %v3662 = vsel %vm1319, %v3642, %v3661
    %v3663 = vrot.slane %v3650, 4
    %v3664 = vsel %vm1319, %v3663, %v3626
    %v3665 = vrot.slane %v3626, 4
    %v3666 = vsel %vm1319, %v3650, %v3665
    %v3667 = vrot.slane %v3654, 4
    %v3668 = vsel %vm1319, %v3667, %v3630
    %v3669 = vrot.slane %v3630, 4
    %v3670 = vsel %vm1319, %v3654, %v3669
    %v3671 = vrot.slane %v1063, 4
    %v3672 = vsel %vm1319, %v3671, %v1057
    %v3673 = vrot.slane %v1057, 4
    %v3674 = vsel %vm1319, %v1063, %v3673
    %v3676 = vunpack.c.l.s4 1983009808
    %v3677 = vunpack.c.0.s8 %v3676
    %v3678 = vperm.slane %v3672, %v3677
    %v3680 = vunpack.c.l.s4 1983009808
    %v3681 = vunpack.c.0.s8 %v3680
    %v3682 = vperm.slane %v3674, %v3681
    %v3683 = vrot.slane %v1066, 4
    %v3684 = vsel %vm1319, %v3683, %v1060
    %v3685 = vrot.slane %v1060, 4
    %v3686 = vsel %vm1319, %v1066, %v3685
    %v3688 = vunpack.c.l.s4 1983009808
    %v3689 = vunpack.c.0.s8 %v3688
    %v3690 = vperm.slane %v3684, %v3689
    %v3692 = vunpack.c.l.s4 1983009808
    %v3693 = vunpack.c.0.s8 %v3692
    %v3694 = vperm.slane %v3686, %v3693
    %v3695 = vrot.slane %v1075, 4
    %v3696 = vsel %vm1319, %v3695, %v1069
    %v3697 = vrot.slane %v1069, 4
    %v3698 = vsel %vm1319, %v1075, %v3697
    %v3700 = vunpack.c.l.s4 1983009808
    %v3701 = vunpack.c.0.s8 %v3700
    %v3702 = vperm.slane %v3696, %v3701
    %v3704 = vunpack.c.l.s4 1983009808
    %v3705 = vunpack.c.0.s8 %v3704
    %v3706 = vperm.slane %v3698, %v3705
    %v3707 = vrot.slane %v1078, 4
    %v3708 = vsel %vm1319, %v3707, %v1072
    %v3709 = vrot.slane %v1072, 4
    %v3710 = vsel %vm1319, %v1078, %v3709
    %v3712 = vunpack.c.l.s4 1983009808
    %v3713 = vunpack.c.0.s8 %v3712
    %v3714 = vperm.slane %v3708, %v3713
    %v3716 = vunpack.c.l.s4 1983009808
    %v3717 = vunpack.c.0.s8 %v3716
    %v3718 = vperm.slane %v3710, %v3717
    %v3719 = vrot.slane %v3690, 4
    %v3720 = vsel %vm1319, %v3719, %v3678
    %v3721 = vrot.slane %v3678, 4
    %v3722 = vsel %vm1319, %v3690, %v3721
    %v3724 = vunpack.c.l.s4 1934713408
    %v3725 = vunpack.c.0.s8 %v3724
    %v3726 = vperm.slane %v3720, %v3725
    %v3728 = vunpack.c.l.s4 1934713408
    %v3729 = vunpack.c.0.s8 %v3728
    %v3730 = vperm.slane %v3722, %v3729
    %v3731 = vrot.slane %v3694, 4
    %v3732 = vsel %vm1319, %v3731, %v3682
    %v3733 = vrot.slane %v3682, 4
    %v3734 = vsel %vm1319, %v3694, %v3733
    %v3736 = vunpack.c.l.s4 1934713408
    %v3737 = vunpack.c.0.s8 %v3736
    %v3738 = vperm.slane %v3732, %v3737
    %v3740 = vunpack.c.l.s4 1934713408
    %v3741 = vunpack.c.0.s8 %v3740
    %v3742 = vperm.slane %v3734, %v3741
    %v3743 = vrot.slane %v3714, 4
    %v3744 = vsel %vm1319, %v3743, %v3702
    %v3745 = vrot.slane %v3702, 4
    %v3746 = vsel %vm1319, %v3714, %v3745
    %v3748 = vunpack.c.l.s4 1934713408
    %v3749 = vunpack.c.0.s8 %v3748
    %v3750 = vperm.slane %v3744, %v3749
    %v3752 = vunpack.c.l.s4 1934713408
    %v3753 = vunpack.c.0.s8 %v3752
    %v3754 = vperm.slane %v3746, %v3753
    %v3755 = vrot.slane %v3718, 4
    %v3756 = vsel %vm1319, %v3755, %v3706
    %v3757 = vrot.slane %v3706, 4
    %v3758 = vsel %vm1319, %v3718, %v3757
    %v3760 = vunpack.c.l.s4 1934713408
    %v3761 = vunpack.c.0.s8 %v3760
    %v3762 = vperm.slane %v3756, %v3761
    %v3764 = vunpack.c.l.s4 1934713408
    %v3765 = vunpack.c.0.s8 %v3764
    %v3766 = vperm.slane %v3758, %v3765
    %v3767 = vrot.slane %v3750, 4
    %v3768 = vsel %vm1319, %v3767, %v3726
    %v3769 = vrot.slane %v3726, 4
    %v3770 = vsel %vm1319, %v3750, %v3769
    %v3771 = vrot.slane %v3754, 4
    %v3772 = vsel %vm1319, %v3771, %v3730
    %v3773 = vrot.slane %v3730, 4
    %v3774 = vsel %vm1319, %v3754, %v3773
    %v3775 = vrot.slane %v3762, 4
    %v3776 = vsel %vm1319, %v3775, %v3738
    %v3777 = vrot.slane %v3738, 4
    %v3778 = vsel %vm1319, %v3762, %v3777
    %v3779 = vrot.slane %v3766, 4
    %v3780 = vsel %vm1319, %v3779, %v3742
    %v3781 = vrot.slane %v3742, 4
    %v3782 = vsel %vm1319, %v3766, %v3781
    %v3783 = vrot.slane %v1087, 4
    %v3784 = vsel %vm1319, %v3783, %v1081
    %v3785 = vrot.slane %v1081, 4
    %v3786 = vsel %vm1319, %v1087, %v3785
    %v3788 = vunpack.c.l.s4 1983009808
    %v3789 = vunpack.c.0.s8 %v3788
    %v3790 = vperm.slane %v3784, %v3789
    %v3792 = vunpack.c.l.s4 1983009808
    %v3793 = vunpack.c.0.s8 %v3792
    %v3794 = vperm.slane %v3786, %v3793
    %v3795 = vrot.slane %v1090, 4
    %v3796 = vsel %vm1319, %v3795, %v1084
    %v3797 = vrot.slane %v1084, 4
    %v3798 = vsel %vm1319, %v1090, %v3797
    %v3800 = vunpack.c.l.s4 1983009808
    %v3801 = vunpack.c.0.s8 %v3800
    %v3802 = vperm.slane %v3796, %v3801
    %v3804 = vunpack.c.l.s4 1983009808
    %v3805 = vunpack.c.0.s8 %v3804
    %v3806 = vperm.slane %v3798, %v3805
    %v3807 = vrot.slane %v1099, 4
    %v3808 = vsel %vm1319, %v3807, %v1093
    %v3809 = vrot.slane %v1093, 4
    %v3810 = vsel %vm1319, %v1099, %v3809
    %v3812 = vunpack.c.l.s4 1983009808
    %v3813 = vunpack.c.0.s8 %v3812
    %v3814 = vperm.slane %v3808, %v3813
    %v3816 = vunpack.c.l.s4 1983009808
    %v3817 = vunpack.c.0.s8 %v3816
    %v3818 = vperm.slane %v3810, %v3817
    %v3819 = vrot.slane %v1102, 4
    %v3820 = vsel %vm1319, %v3819, %v1096
    %v3821 = vrot.slane %v1096, 4
    %v3822 = vsel %vm1319, %v1102, %v3821
    %v3824 = vunpack.c.l.s4 1983009808
    %v3825 = vunpack.c.0.s8 %v3824
    %v3826 = vperm.slane %v3820, %v3825
    %v3828 = vunpack.c.l.s4 1983009808
    %v3829 = vunpack.c.0.s8 %v3828
    %v3830 = vperm.slane %v3822, %v3829
    %v3831 = vrot.slane %v3802, 4
    %v3832 = vsel %vm1319, %v3831, %v3790
    %v3833 = vrot.slane %v3790, 4
    %v3834 = vsel %vm1319, %v3802, %v3833
    %v3836 = vunpack.c.l.s4 1934713408
    %v3837 = vunpack.c.0.s8 %v3836
    %v3838 = vperm.slane %v3832, %v3837
    %v3840 = vunpack.c.l.s4 1934713408
    %v3841 = vunpack.c.0.s8 %v3840
    %v3842 = vperm.slane %v3834, %v3841
    %v3843 = vrot.slane %v3806, 4
    %v3844 = vsel %vm1319, %v3843, %v3794
    %v3845 = vrot.slane %v3794, 4
    %v3846 = vsel %vm1319, %v3806, %v3845
    %v3848 = vunpack.c.l.s4 1934713408
    %v3849 = vunpack.c.0.s8 %v3848
    %v3850 = vperm.slane %v3844, %v3849
    %v3852 = vunpack.c.l.s4 1934713408
    %v3853 = vunpack.c.0.s8 %v3852
    %v3854 = vperm.slane %v3846, %v3853
    %v3855 = vrot.slane %v3826, 4
    %v3856 = vsel %vm1319, %v3855, %v3814
    %v3857 = vrot.slane %v3814, 4
    %v3858 = vsel %vm1319, %v3826, %v3857
    %v3860 = vunpack.c.l.s4 1934713408
    %v3861 = vunpack.c.0.s8 %v3860
    %v3862 = vperm.slane %v3856, %v3861
    %v3864 = vunpack.c.l.s4 1934713408
    %v3865 = vunpack.c.0.s8 %v3864
    %v3866 = vperm.slane %v3858, %v3865
    %v3867 = vrot.slane %v3830, 4
    %v3868 = vsel %vm1319, %v3867, %v3818
    %v3869 = vrot.slane %v3818, 4
    %v3870 = vsel %vm1319, %v3830, %v3869
    %v3872 = vunpack.c.l.s4 1934713408
    %v3873 = vunpack.c.0.s8 %v3872
    %v3874 = vperm.slane %v3868, %v3873
    %v3876 = vunpack.c.l.s4 1934713408
    %v3877 = vunpack.c.0.s8 %v3876
    %v3878 = vperm.slane %v3870, %v3877
    %v3879 = vrot.slane %v3862, 4
    %v3880 = vsel %vm1319, %v3879, %v3838
    %v3881 = vrot.slane %v3838, 4
    %v3882 = vsel %vm1319, %v3862, %v3881
    %v3883 = vrot.slane %v3866, 4
    %v3884 = vsel %vm1319, %v3883, %v3842
    %v3885 = vrot.slane %v3842, 4
    %v3886 = vsel %vm1319, %v3866, %v3885
    %v3887 = vrot.slane %v3874, 4
    %v3888 = vsel %vm1319, %v3887, %v3850
    %v3889 = vrot.slane %v3850, 4
    %v3890 = vsel %vm1319, %v3874, %v3889
    %v3891 = vrot.slane %v3878, 4
    %v3892 = vsel %vm1319, %v3891, %v3854
    %v3893 = vrot.slane %v3854, 4
    %v3894 = vsel %vm1319, %v3878, %v3893
    %v3895 = vrot.slane %v1111, 4
    %v3896 = vsel %vm1319, %v3895, %v1105
    %v3897 = vrot.slane %v1105, 4
    %v3898 = vsel %vm1319, %v1111, %v3897
    %v3900 = vunpack.c.l.s4 1983009808
    %v3901 = vunpack.c.0.s8 %v3900
    %v3902 = vperm.slane %v3896, %v3901
    %v3904 = vunpack.c.l.s4 1983009808
    %v3905 = vunpack.c.0.s8 %v3904
    %v3906 = vperm.slane %v3898, %v3905
    %v3907 = vrot.slane %v1114, 4
    %v3908 = vsel %vm1319, %v3907, %v1108
    %v3909 = vrot.slane %v1108, 4
    %v3910 = vsel %vm1319, %v1114, %v3909
    %v3912 = vunpack.c.l.s4 1983009808
    %v3913 = vunpack.c.0.s8 %v3912
    %v3914 = vperm.slane %v3908, %v3913
    %v3916 = vunpack.c.l.s4 1983009808
    %v3917 = vunpack.c.0.s8 %v3916
    %v3918 = vperm.slane %v3910, %v3917
    %v3919 = vrot.slane %v1123, 4
    %v3920 = vsel %vm1319, %v3919, %v1117
    %v3921 = vrot.slane %v1117, 4
    %v3922 = vsel %vm1319, %v1123, %v3921
    %v3924 = vunpack.c.l.s4 1983009808
    %v3925 = vunpack.c.0.s8 %v3924
    %v3926 = vperm.slane %v3920, %v3925
    %v3928 = vunpack.c.l.s4 1983009808
    %v3929 = vunpack.c.0.s8 %v3928
    %v3930 = vperm.slane %v3922, %v3929
    %v3931 = vrot.slane %v1126, 4
    %v3932 = vsel %vm1319, %v3931, %v1120
    %v3933 = vrot.slane %v1120, 4
    %v3934 = vsel %vm1319, %v1126, %v3933
    %v3936 = vunpack.c.l.s4 1983009808
    %v3937 = vunpack.c.0.s8 %v3936
    %v3938 = vperm.slane %v3932, %v3937
    %v3940 = vunpack.c.l.s4 1983009808
    %v3941 = vunpack.c.0.s8 %v3940
    %v3942 = vperm.slane %v3934, %v3941
    %v3943 = vrot.slane %v3914, 4
    %v3944 = vsel %vm1319, %v3943, %v3902
    %v3945 = vrot.slane %v3902, 4
    %v3946 = vsel %vm1319, %v3914, %v3945
    %v3948 = vunpack.c.l.s4 1934713408
    %v3949 = vunpack.c.0.s8 %v3948
    %v3950 = vperm.slane %v3944, %v3949
    %v3952 = vunpack.c.l.s4 1934713408
    %v3953 = vunpack.c.0.s8 %v3952
    %v3954 = vperm.slane %v3946, %v3953
    %v3955 = vrot.slane %v3918, 4
    %v3956 = vsel %vm1319, %v3955, %v3906
    %v3957 = vrot.slane %v3906, 4
    %v3958 = vsel %vm1319, %v3918, %v3957
    %v3960 = vunpack.c.l.s4 1934713408
    %v3961 = vunpack.c.0.s8 %v3960
    %v3962 = vperm.slane %v3956, %v3961
    %v3964 = vunpack.c.l.s4 1934713408
    %v3965 = vunpack.c.0.s8 %v3964
    %v3966 = vperm.slane %v3958, %v3965
    %v3967 = vrot.slane %v3938, 4
    %v3968 = vsel %vm1319, %v3967, %v3926
    %v3969 = vrot.slane %v3926, 4
    %v3970 = vsel %vm1319, %v3938, %v3969
    %v3972 = vunpack.c.l.s4 1934713408
    %v3973 = vunpack.c.0.s8 %v3972
    %v3974 = vperm.slane %v3968, %v3973
    %v3976 = vunpack.c.l.s4 1934713408
    %v3977 = vunpack.c.0.s8 %v3976
    %v3978 = vperm.slane %v3970, %v3977
    %v3979 = vrot.slane %v3942, 4
    %v3980 = vsel %vm1319, %v3979, %v3930
    %v3981 = vrot.slane %v3930, 4
    %v3982 = vsel %vm1319, %v3942, %v3981
    %v3984 = vunpack.c.l.s4 1934713408
    %v3985 = vunpack.c.0.s8 %v3984
    %v3986 = vperm.slane %v3980, %v3985
    %v3988 = vunpack.c.l.s4 1934713408
    %v3989 = vunpack.c.0.s8 %v3988
    %v3990 = vperm.slane %v3982, %v3989
    %v3991 = vrot.slane %v3974, 4
    %v3992 = vsel %vm1319, %v3991, %v3950
    %v3993 = vrot.slane %v3950, 4
    %v3994 = vsel %vm1319, %v3974, %v3993
    %v3995 = vrot.slane %v3978, 4
    %v3996 = vsel %vm1319, %v3995, %v3954
    %v3997 = vrot.slane %v3954, 4
    %v3998 = vsel %vm1319, %v3978, %v3997
    %v3999 = vrot.slane %v3986, 4
    %v4000 = vsel %vm1319, %v3999, %v3962
    %v4001 = vrot.slane %v3962, 4
    %v4002 = vsel %vm1319, %v3986, %v4001
    %v4003 = vrot.slane %v3990, 4
    %v4004 = vsel %vm1319, %v4003, %v3966
    %v4005 = vrot.slane %v3966, 4
    %v4006 = vsel %vm1319, %v3990, %v4005
    %v4007 = vrot.slane %v1133, 4
    %v4008 = vsel %vm1319, %v4007, %v556
    %v4009 = vrot.slane %v556, 4
    %v4010 = vsel %vm1319, %v1133, %v4009
    %v4012 = vunpack.c.l.s4 1983009808
    %v4013 = vunpack.c.0.s8 %v4012
    %v4014 = vperm.slane %v4008, %v4013
    %v4016 = vunpack.c.l.s4 1983009808
    %v4017 = vunpack.c.0.s8 %v4016
    %v4018 = vperm.slane %v4010, %v4017
    %v4019 = vrot.slane %v1136, 4
    %v4020 = vsel %vm1319, %v4019, %v1130
    %v4021 = vrot.slane %v1130, 4
    %v4022 = vsel %vm1319, %v1136, %v4021
    %v4024 = vunpack.c.l.s4 1983009808
    %v4025 = vunpack.c.0.s8 %v4024
    %v4026 = vperm.slane %v4020, %v4025
    %v4028 = vunpack.c.l.s4 1983009808
    %v4029 = vunpack.c.0.s8 %v4028
    %v4030 = vperm.slane %v4022, %v4029
    %v4031 = vrot.slane %v1145, 4
    %v4032 = vsel %vm1319, %v4031, %v1139
    %v4033 = vrot.slane %v1139, 4
    %v4034 = vsel %vm1319, %v1145, %v4033
    %v4036 = vunpack.c.l.s4 1983009808
    %v4037 = vunpack.c.0.s8 %v4036
    %v4038 = vperm.slane %v4032, %v4037
    %v4040 = vunpack.c.l.s4 1983009808
    %v4041 = vunpack.c.0.s8 %v4040
    %v4042 = vperm.slane %v4034, %v4041
    %v4043 = vrot.slane %v1148, 4
    %v4044 = vsel %vm1319, %v4043, %v1142
    %v4045 = vrot.slane %v1142, 4
    %v4046 = vsel %vm1319, %v1148, %v4045
    %v4048 = vunpack.c.l.s4 1983009808
    %v4049 = vunpack.c.0.s8 %v4048
    %v4050 = vperm.slane %v4044, %v4049
    %v4052 = vunpack.c.l.s4 1983009808
    %v4053 = vunpack.c.0.s8 %v4052
    %v4054 = vperm.slane %v4046, %v4053
    %v4055 = vrot.slane %v4026, 4
    %v4056 = vsel %vm1319, %v4055, %v4014
    %v4057 = vrot.slane %v4014, 4
    %v4058 = vsel %vm1319, %v4026, %v4057
    %v4060 = vunpack.c.l.s4 1934713408
    %v4061 = vunpack.c.0.s8 %v4060
    %v4062 = vperm.slane %v4056, %v4061
    %v4064 = vunpack.c.l.s4 1934713408
    %v4065 = vunpack.c.0.s8 %v4064
    %v4066 = vperm.slane %v4058, %v4065
    %v4067 = vrot.slane %v4030, 4
    %v4068 = vsel %vm1319, %v4067, %v4018
    %v4069 = vrot.slane %v4018, 4
    %v4070 = vsel %vm1319, %v4030, %v4069
    %v4072 = vunpack.c.l.s4 1934713408
    %v4073 = vunpack.c.0.s8 %v4072
    %v4074 = vperm.slane %v4068, %v4073
    %v4076 = vunpack.c.l.s4 1934713408
    %v4077 = vunpack.c.0.s8 %v4076
    %v4078 = vperm.slane %v4070, %v4077
    %v4079 = vrot.slane %v4050, 4
    %v4080 = vsel %vm1319, %v4079, %v4038
    %v4081 = vrot.slane %v4038, 4
    %v4082 = vsel %vm1319, %v4050, %v4081
    %v4084 = vunpack.c.l.s4 1934713408
    %v4085 = vunpack.c.0.s8 %v4084
    %v4086 = vperm.slane %v4080, %v4085
    %v4088 = vunpack.c.l.s4 1934713408
    %v4089 = vunpack.c.0.s8 %v4088
    %v4090 = vperm.slane %v4082, %v4089
    %v4091 = vrot.slane %v4054, 4
    %v4092 = vsel %vm1319, %v4091, %v4042
    %v4093 = vrot.slane %v4042, 4
    %v4094 = vsel %vm1319, %v4054, %v4093
    %v4096 = vunpack.c.l.s4 1934713408
    %v4097 = vunpack.c.0.s8 %v4096
    %v4098 = vperm.slane %v4092, %v4097
    %v4100 = vunpack.c.l.s4 1934713408
    %v4101 = vunpack.c.0.s8 %v4100
    %v4102 = vperm.slane %v4094, %v4101
    %v4103 = vrot.slane %v4086, 4
    %v4104 = vsel %vm1319, %v4103, %v4062
    %v4105 = vrot.slane %v4062, 4
    %v4106 = vsel %vm1319, %v4086, %v4105
    %v4107 = vrot.slane %v4090, 4
    %v4108 = vsel %vm1319, %v4107, %v4066
    %v4109 = vrot.slane %v4066, 4
    %v4110 = vsel %vm1319, %v4090, %v4109
    %v4111 = vrot.slane %v4098, 4
    %v4112 = vsel %vm1319, %v4111, %v4074
    %v4113 = vrot.slane %v4074, 4
    %v4114 = vsel %vm1319, %v4098, %v4113
    %v4115 = vrot.slane %v4102, 4
    %v4116 = vsel %vm1319, %v4115, %v4078
    %v4117 = vrot.slane %v4078, 4
    %v4118 = vsel %vm1319, %v4102, %v4117
    %v4119 = vrot.slane %v1157, 4
    %v4120 = vsel %vm1319, %v4119, %v1151
    %v4121 = vrot.slane %v1151, 4
    %v4122 = vsel %vm1319, %v1157, %v4121
    %v4124 = vunpack.c.l.s4 1983009808
    %v4125 = vunpack.c.0.s8 %v4124
    %v4126 = vperm.slane %v4120, %v4125
    %v4128 = vunpack.c.l.s4 1983009808
    %v4129 = vunpack.c.0.s8 %v4128
    %v4130 = vperm.slane %v4122, %v4129
    %v4131 = vrot.slane %v1160, 4
    %v4132 = vsel %vm1319, %v4131, %v1154
    %v4133 = vrot.slane %v1154, 4
    %v4134 = vsel %vm1319, %v1160, %v4133
    %v4136 = vunpack.c.l.s4 1983009808
    %v4137 = vunpack.c.0.s8 %v4136
    %v4138 = vperm.slane %v4132, %v4137
    %v4140 = vunpack.c.l.s4 1983009808
    %v4141 = vunpack.c.0.s8 %v4140
    %v4142 = vperm.slane %v4134, %v4141
    %v4143 = vrot.slane %v1169, 4
    %v4144 = vsel %vm1319, %v4143, %v1163
    %v4145 = vrot.slane %v1163, 4
    %v4146 = vsel %vm1319, %v1169, %v4145
    %v4148 = vunpack.c.l.s4 1983009808
    %v4149 = vunpack.c.0.s8 %v4148
    %v4150 = vperm.slane %v4144, %v4149
    %v4152 = vunpack.c.l.s4 1983009808
    %v4153 = vunpack.c.0.s8 %v4152
    %v4154 = vperm.slane %v4146, %v4153
    %v4155 = vrot.slane %v1172, 4
    %v4156 = vsel %vm1319, %v4155, %v1166
    %v4157 = vrot.slane %v1166, 4
    %v4158 = vsel %vm1319, %v1172, %v4157
    %v4160 = vunpack.c.l.s4 1983009808
    %v4161 = vunpack.c.0.s8 %v4160
    %v4162 = vperm.slane %v4156, %v4161
    %v4164 = vunpack.c.l.s4 1983009808
    %v4165 = vunpack.c.0.s8 %v4164
    %v4166 = vperm.slane %v4158, %v4165
    %v4167 = vrot.slane %v4138, 4
    %v4168 = vsel %vm1319, %v4167, %v4126
    %v4169 = vrot.slane %v4126, 4
    %v4170 = vsel %vm1319, %v4138, %v4169
    %v4172 = vunpack.c.l.s4 1934713408
    %v4173 = vunpack.c.0.s8 %v4172
    %v4174 = vperm.slane %v4168, %v4173
    %v4176 = vunpack.c.l.s4 1934713408
    %v4177 = vunpack.c.0.s8 %v4176
    %v4178 = vperm.slane %v4170, %v4177
    %v4179 = vrot.slane %v4142, 4
    %v4180 = vsel %vm1319, %v4179, %v4130
    %v4181 = vrot.slane %v4130, 4
    %v4182 = vsel %vm1319, %v4142, %v4181
    %v4184 = vunpack.c.l.s4 1934713408
    %v4185 = vunpack.c.0.s8 %v4184
    %v4186 = vperm.slane %v4180, %v4185
    %v4188 = vunpack.c.l.s4 1934713408
    %v4189 = vunpack.c.0.s8 %v4188
    %v4190 = vperm.slane %v4182, %v4189
    %v4191 = vrot.slane %v4162, 4
    %v4192 = vsel %vm1319, %v4191, %v4150
    %v4193 = vrot.slane %v4150, 4
    %v4194 = vsel %vm1319, %v4162, %v4193
    %v4196 = vunpack.c.l.s4 1934713408
    %v4197 = vunpack.c.0.s8 %v4196
    %v4198 = vperm.slane %v4192, %v4197
    %v4200 = vunpack.c.l.s4 1934713408
    %v4201 = vunpack.c.0.s8 %v4200
    %v4202 = vperm.slane %v4194, %v4201
    %v4203 = vrot.slane %v4166, 4
    %v4204 = vsel %vm1319, %v4203, %v4154
    %v4205 = vrot.slane %v4154, 4
    %v4206 = vsel %vm1319, %v4166, %v4205
    %v4208 = vunpack.c.l.s4 1934713408
    %v4209 = vunpack.c.0.s8 %v4208
    %v4210 = vperm.slane %v4204, %v4209
    %v4212 = vunpack.c.l.s4 1934713408
    %v4213 = vunpack.c.0.s8 %v4212
    %v4214 = vperm.slane %v4206, %v4213
    %v4215 = vrot.slane %v4198, 4
    %v4216 = vsel %vm1319, %v4215, %v4174
    %v4217 = vrot.slane %v4174, 4
    %v4218 = vsel %vm1319, %v4198, %v4217
    %v4219 = vrot.slane %v4202, 4
    %v4220 = vsel %vm1319, %v4219, %v4178
    %v4221 = vrot.slane %v4178, 4
    %v4222 = vsel %vm1319, %v4202, %v4221
    %v4223 = vrot.slane %v4210, 4
    %v4224 = vsel %vm1319, %v4223, %v4186
    %v4225 = vrot.slane %v4186, 4
    %v4226 = vsel %vm1319, %v4210, %v4225
    %v4227 = vrot.slane %v4214, 4
    %v4228 = vsel %vm1319, %v4227, %v4190
    %v4229 = vrot.slane %v4190, 4
    %v4230 = vsel %vm1319, %v4214, %v4229
    %v4231 = vrot.slane %v1181, 4
    %v4232 = vsel %vm1319, %v4231, %v1175
    %v4233 = vrot.slane %v1175, 4
    %v4234 = vsel %vm1319, %v1181, %v4233
    %v4236 = vunpack.c.l.s4 1983009808
    %v4237 = vunpack.c.0.s8 %v4236
    %v4238 = vperm.slane %v4232, %v4237
    %v4240 = vunpack.c.l.s4 1983009808
    %v4241 = vunpack.c.0.s8 %v4240
    %v4242 = vperm.slane %v4234, %v4241
    %v4243 = vrot.slane %v1184, 4
    %v4244 = vsel %vm1319, %v4243, %v1178
    %v4245 = vrot.slane %v1178, 4
    %v4246 = vsel %vm1319, %v1184, %v4245
    %v4248 = vunpack.c.l.s4 1983009808
    %v4249 = vunpack.c.0.s8 %v4248
    %v4250 = vperm.slane %v4244, %v4249
    %v4252 = vunpack.c.l.s4 1983009808
    %v4253 = vunpack.c.0.s8 %v4252
    %v4254 = vperm.slane %v4246, %v4253
    %v4255 = vrot.slane %v1193, 4
    %v4256 = vsel %vm1319, %v4255, %v1187
    %v4257 = vrot.slane %v1187, 4
    %v4258 = vsel %vm1319, %v1193, %v4257
    %v4260 = vunpack.c.l.s4 1983009808
    %v4261 = vunpack.c.0.s8 %v4260
    %v4262 = vperm.slane %v4256, %v4261
    %v4264 = vunpack.c.l.s4 1983009808
    %v4265 = vunpack.c.0.s8 %v4264
    %v4266 = vperm.slane %v4258, %v4265
    %v4267 = vrot.slane %v1196, 4
    %v4268 = vsel %vm1319, %v4267, %v1190
    %v4269 = vrot.slane %v1190, 4
    %v4270 = vsel %vm1319, %v1196, %v4269
    %v4272 = vunpack.c.l.s4 1983009808
    %v4273 = vunpack.c.0.s8 %v4272
    %v4274 = vperm.slane %v4268, %v4273
    %v4276 = vunpack.c.l.s4 1983009808
    %v4277 = vunpack.c.0.s8 %v4276
    %v4278 = vperm.slane %v4270, %v4277
    %v4279 = vrot.slane %v4250, 4
    %v4280 = vsel %vm1319, %v4279, %v4238
    %v4281 = vrot.slane %v4238, 4
    %v4282 = vsel %vm1319, %v4250, %v4281
    %v4284 = vunpack.c.l.s4 1934713408
    %v4285 = vunpack.c.0.s8 %v4284
    %v4286 = vperm.slane %v4280, %v4285
    %v4288 = vunpack.c.l.s4 1934713408
    %v4289 = vunpack.c.0.s8 %v4288
    %v4290 = vperm.slane %v4282, %v4289
    %v4291 = vrot.slane %v4254, 4
    %v4292 = vsel %vm1319, %v4291, %v4242
    %v4293 = vrot.slane %v4242, 4
    %v4294 = vsel %vm1319, %v4254, %v4293
    %v4296 = vunpack.c.l.s4 1934713408
    %v4297 = vunpack.c.0.s8 %v4296
    %v4298 = vperm.slane %v4292, %v4297
    %v4300 = vunpack.c.l.s4 1934713408
    %v4301 = vunpack.c.0.s8 %v4300
    %v4302 = vperm.slane %v4294, %v4301
    %v4303 = vrot.slane %v4274, 4
    %v4304 = vsel %vm1319, %v4303, %v4262
    %v4305 = vrot.slane %v4262, 4
    %v4306 = vsel %vm1319, %v4274, %v4305
    %v4308 = vunpack.c.l.s4 1934713408
    %v4309 = vunpack.c.0.s8 %v4308
    %v4310 = vperm.slane %v4304, %v4309
    %v4312 = vunpack.c.l.s4 1934713408
    %v4313 = vunpack.c.0.s8 %v4312
    %v4314 = vperm.slane %v4306, %v4313
    %v4315 = vrot.slane %v4278, 4
    %v4316 = vsel %vm1319, %v4315, %v4266
    %v4317 = vrot.slane %v4266, 4
    %v4318 = vsel %vm1319, %v4278, %v4317
    %v4320 = vunpack.c.l.s4 1934713408
    %v4321 = vunpack.c.0.s8 %v4320
    %v4322 = vperm.slane %v4316, %v4321
    %v4324 = vunpack.c.l.s4 1934713408
    %v4325 = vunpack.c.0.s8 %v4324
    %v4326 = vperm.slane %v4318, %v4325
    %v4327 = vrot.slane %v4310, 4
    %v4328 = vsel %vm1319, %v4327, %v4286
    %v4329 = vrot.slane %v4286, 4
    %v4330 = vsel %vm1319, %v4310, %v4329
    %v4331 = vrot.slane %v4314, 4
    %v4332 = vsel %vm1319, %v4331, %v4290
    %v4333 = vrot.slane %v4290, 4
    %v4334 = vsel %vm1319, %v4314, %v4333
    %v4335 = vrot.slane %v4322, 4
    %v4336 = vsel %vm1319, %v4335, %v4298
    %v4337 = vrot.slane %v4298, 4
    %v4338 = vsel %vm1319, %v4322, %v4337
    %v4339 = vrot.slane %v4326, 4
    %v4340 = vsel %vm1319, %v4339, %v4302
    %v4341 = vrot.slane %v4302, 4
    %v4342 = vsel %vm1319, %v4326, %v4341
    %v4343 = vrot.slane %v1205, 4
    %v4344 = vsel %vm1319, %v4343, %v1199
    %v4345 = vrot.slane %v1199, 4
    %v4346 = vsel %vm1319, %v1205, %v4345
    %v4348 = vunpack.c.l.s4 1983009808
    %v4349 = vunpack.c.0.s8 %v4348
    %v4350 = vperm.slane %v4344, %v4349
    %v4352 = vunpack.c.l.s4 1983009808
    %v4353 = vunpack.c.0.s8 %v4352
    %v4354 = vperm.slane %v4346, %v4353
    %v4355 = vrot.slane %v1208, 4
    %v4356 = vsel %vm1319, %v4355, %v1202
    %v4357 = vrot.slane %v1202, 4
    %v4358 = vsel %vm1319, %v1208, %v4357
    %v4360 = vunpack.c.l.s4 1983009808
    %v4361 = vunpack.c.0.s8 %v4360
    %v4362 = vperm.slane %v4356, %v4361
    %v4364 = vunpack.c.l.s4 1983009808
    %v4365 = vunpack.c.0.s8 %v4364
    %v4366 = vperm.slane %v4358, %v4365
    %v4367 = vrot.slane %v1217, 4
    %v4368 = vsel %vm1319, %v4367, %v1211
    %v4369 = vrot.slane %v1211, 4
    %v4370 = vsel %vm1319, %v1217, %v4369
    %v4372 = vunpack.c.l.s4 1983009808
    %v4373 = vunpack.c.0.s8 %v4372
    %v4374 = vperm.slane %v4368, %v4373
    %v4376 = vunpack.c.l.s4 1983009808
    %v4377 = vunpack.c.0.s8 %v4376
    %v4378 = vperm.slane %v4370, %v4377
    %v4379 = vrot.slane %v1220, 4
    %v4380 = vsel %vm1319, %v4379, %v1214
    %v4381 = vrot.slane %v1214, 4
    %v4382 = vsel %vm1319, %v1220, %v4381
    %v4384 = vunpack.c.l.s4 1983009808
    %v4385 = vunpack.c.0.s8 %v4384
    %v4386 = vperm.slane %v4380, %v4385
    %v4388 = vunpack.c.l.s4 1983009808
    %v4389 = vunpack.c.0.s8 %v4388
    %v4390 = vperm.slane %v4382, %v4389
    %v4391 = vrot.slane %v4362, 4
    %v4392 = vsel %vm1319, %v4391, %v4350
    %v4393 = vrot.slane %v4350, 4
    %v4394 = vsel %vm1319, %v4362, %v4393
    %v4396 = vunpack.c.l.s4 1934713408
    %v4397 = vunpack.c.0.s8 %v4396
    %v4398 = vperm.slane %v4392, %v4397
    %v4400 = vunpack.c.l.s4 1934713408
    %v4401 = vunpack.c.0.s8 %v4400
    %v4402 = vperm.slane %v4394, %v4401
    %v4403 = vrot.slane %v4366, 4
    %v4404 = vsel %vm1319, %v4403, %v4354
    %v4405 = vrot.slane %v4354, 4
    %v4406 = vsel %vm1319, %v4366, %v4405
    %v4408 = vunpack.c.l.s4 1934713408
    %v4409 = vunpack.c.0.s8 %v4408
    %v4410 = vperm.slane %v4404, %v4409
    %v4412 = vunpack.c.l.s4 1934713408
    %v4413 = vunpack.c.0.s8 %v4412
    %v4414 = vperm.slane %v4406, %v4413
    %v4415 = vrot.slane %v4386, 4
    %v4416 = vsel %vm1319, %v4415, %v4374
    %v4417 = vrot.slane %v4374, 4
    %v4418 = vsel %vm1319, %v4386, %v4417
    %v4420 = vunpack.c.l.s4 1934713408
    %v4421 = vunpack.c.0.s8 %v4420
    %v4422 = vperm.slane %v4416, %v4421
    %v4424 = vunpack.c.l.s4 1934713408
    %v4425 = vunpack.c.0.s8 %v4424
    %v4426 = vperm.slane %v4418, %v4425
    %v4427 = vrot.slane %v4390, 4
    %v4428 = vsel %vm1319, %v4427, %v4378
    %v4429 = vrot.slane %v4378, 4
    %v4430 = vsel %vm1319, %v4390, %v4429
    %v4432 = vunpack.c.l.s4 1934713408
    %v4433 = vunpack.c.0.s8 %v4432
    %v4434 = vperm.slane %v4428, %v4433
    %v4436 = vunpack.c.l.s4 1934713408
    %v4437 = vunpack.c.0.s8 %v4436
    %v4438 = vperm.slane %v4430, %v4437
    %v4439 = vrot.slane %v4422, 4
    %v4440 = vsel %vm1319, %v4439, %v4398
    %v4441 = vrot.slane %v4398, 4
    %v4442 = vsel %vm1319, %v4422, %v4441
    %v4443 = vrot.slane %v4426, 4
    %v4444 = vsel %vm1319, %v4443, %v4402
    %v4445 = vrot.slane %v4402, 4
    %v4446 = vsel %vm1319, %v4426, %v4445
    %v4447 = vrot.slane %v4434, 4
    %v4448 = vsel %vm1319, %v4447, %v4410
    %v4449 = vrot.slane %v4410, 4
    %v4450 = vsel %vm1319, %v4434, %v4449
    %v4451 = vrot.slane %v4438, 4
    %v4452 = vsel %vm1319, %v4451, %v4414
    %v4453 = vrot.slane %v4414, 4
    %v4454 = vsel %vm1319, %v4438, %v4453
    %v4455 = vrot.slane %v1229, 4
    %v4456 = vsel %vm1319, %v4455, %v1223
    %v4457 = vrot.slane %v1223, 4
    %v4458 = vsel %vm1319, %v1229, %v4457
    %v4460 = vunpack.c.l.s4 1983009808
    %v4461 = vunpack.c.0.s8 %v4460
    %v4462 = vperm.slane %v4456, %v4461
    %v4464 = vunpack.c.l.s4 1983009808
    %v4465 = vunpack.c.0.s8 %v4464
    %v4466 = vperm.slane %v4458, %v4465
    %v4467 = vrot.slane %v1232, 4
    %v4468 = vsel %vm1319, %v4467, %v1226
    %v4469 = vrot.slane %v1226, 4
    %v4470 = vsel %vm1319, %v1232, %v4469
    %v4472 = vunpack.c.l.s4 1983009808
    %v4473 = vunpack.c.0.s8 %v4472
    %v4474 = vperm.slane %v4468, %v4473
    %v4476 = vunpack.c.l.s4 1983009808
    %v4477 = vunpack.c.0.s8 %v4476
    %v4478 = vperm.slane %v4470, %v4477
    %v4479 = vrot.slane %v1241, 4
    %v4480 = vsel %vm1319, %v4479, %v1235
    %v4481 = vrot.slane %v1235, 4
    %v4482 = vsel %vm1319, %v1241, %v4481
    %v4484 = vunpack.c.l.s4 1983009808
    %v4485 = vunpack.c.0.s8 %v4484
    %v4486 = vperm.slane %v4480, %v4485
    %v4488 = vunpack.c.l.s4 1983009808
    %v4489 = vunpack.c.0.s8 %v4488
    %v4490 = vperm.slane %v4482, %v4489
    %v4491 = vrot.slane %v1244, 4
    %v4492 = vsel %vm1319, %v4491, %v1238
    %v4493 = vrot.slane %v1238, 4
    %v4494 = vsel %vm1319, %v1244, %v4493
    %v4496 = vunpack.c.l.s4 1983009808
    %v4497 = vunpack.c.0.s8 %v4496
    %v4498 = vperm.slane %v4492, %v4497
    %v4500 = vunpack.c.l.s4 1983009808
    %v4501 = vunpack.c.0.s8 %v4500
    %v4502 = vperm.slane %v4494, %v4501
    %v4503 = vrot.slane %v4474, 4
    %v4504 = vsel %vm1319, %v4503, %v4462
    %v4505 = vrot.slane %v4462, 4
    %v4506 = vsel %vm1319, %v4474, %v4505
    %v4508 = vunpack.c.l.s4 1934713408
    %v4509 = vunpack.c.0.s8 %v4508
    %v4510 = vperm.slane %v4504, %v4509
    %v4512 = vunpack.c.l.s4 1934713408
    %v4513 = vunpack.c.0.s8 %v4512
    %v4514 = vperm.slane %v4506, %v4513
    %v4515 = vrot.slane %v4478, 4
    %v4516 = vsel %vm1319, %v4515, %v4466
    %v4517 = vrot.slane %v4466, 4
    %v4518 = vsel %vm1319, %v4478, %v4517
    %v4520 = vunpack.c.l.s4 1934713408
    %v4521 = vunpack.c.0.s8 %v4520
    %v4522 = vperm.slane %v4516, %v4521
    %v4524 = vunpack.c.l.s4 1934713408
    %v4525 = vunpack.c.0.s8 %v4524
    %v4526 = vperm.slane %v4518, %v4525
    %v4527 = vrot.slane %v4498, 4
    %v4528 = vsel %vm1319, %v4527, %v4486
    %v4529 = vrot.slane %v4486, 4
    %v4530 = vsel %vm1319, %v4498, %v4529
    %v4532 = vunpack.c.l.s4 1934713408
    %v4533 = vunpack.c.0.s8 %v4532
    %v4534 = vperm.slane %v4528, %v4533
    %v4536 = vunpack.c.l.s4 1934713408
    %v4537 = vunpack.c.0.s8 %v4536
    %v4538 = vperm.slane %v4530, %v4537
    %v4539 = vrot.slane %v4502, 4
    %v4540 = vsel %vm1319, %v4539, %v4490
    %v4541 = vrot.slane %v4490, 4
    %v4542 = vsel %vm1319, %v4502, %v4541
    %v4544 = vunpack.c.l.s4 1934713408
    %v4545 = vunpack.c.0.s8 %v4544
    %v4546 = vperm.slane %v4540, %v4545
    %v4548 = vunpack.c.l.s4 1934713408
    %v4549 = vunpack.c.0.s8 %v4548
    %v4550 = vperm.slane %v4542, %v4549
    %v4551 = vrot.slane %v4534, 4
    %v4552 = vsel %vm1319, %v4551, %v4510
    %v4553 = vrot.slane %v4510, 4
    %v4554 = vsel %vm1319, %v4534, %v4553
    %v4555 = vrot.slane %v4538, 4
    %v4556 = vsel %vm1319, %v4555, %v4514
    %v4557 = vrot.slane %v4514, 4
    %v4558 = vsel %vm1319, %v4538, %v4557
    %v4559 = vrot.slane %v4546, 4
    %v4560 = vsel %vm1319, %v4559, %v4522
    %v4561 = vrot.slane %v4522, 4
    %v4562 = vsel %vm1319, %v4546, %v4561
    %v4563 = vrot.slane %v4550, 4
    %v4564 = vsel %vm1319, %v4563, %v4526
    %v4565 = vrot.slane %v4526, 4
    %v4566 = vsel %vm1319, %v4550, %v4565
    %v4567 = vrot.slane %v1253, 4
    %v4568 = vsel %vm1319, %v4567, %v1247
    %v4569 = vrot.slane %v1247, 4
    %v4570 = vsel %vm1319, %v1253, %v4569
    %v4572 = vunpack.c.l.s4 1983009808
    %v4573 = vunpack.c.0.s8 %v4572
    %v4574 = vperm.slane %v4568, %v4573
    %v4576 = vunpack.c.l.s4 1983009808
    %v4577 = vunpack.c.0.s8 %v4576
    %v4578 = vperm.slane %v4570, %v4577
    %v4579 = vrot.slane %v1256, 4
    %v4580 = vsel %vm1319, %v4579, %v1250
    %v4581 = vrot.slane %v1250, 4
    %v4582 = vsel %vm1319, %v1256, %v4581
    %v4584 = vunpack.c.l.s4 1983009808
    %v4585 = vunpack.c.0.s8 %v4584
    %v4586 = vperm.slane %v4580, %v4585
    %v4588 = vunpack.c.l.s4 1983009808
    %v4589 = vunpack.c.0.s8 %v4588
    %v4590 = vperm.slane %v4582, %v4589
    %v4591 = vrot.slane %v1265, 4
    %v4592 = vsel %vm1319, %v4591, %v1259
    %v4593 = vrot.slane %v1259, 4
    %v4594 = vsel %vm1319, %v1265, %v4593
    %v4596 = vunpack.c.l.s4 1983009808
    %v4597 = vunpack.c.0.s8 %v4596
    %v4598 = vperm.slane %v4592, %v4597
    %v4600 = vunpack.c.l.s4 1983009808
    %v4601 = vunpack.c.0.s8 %v4600
    %v4602 = vperm.slane %v4594, %v4601
    %v4603 = vrot.slane %v1268, 4
    %v4604 = vsel %vm1319, %v4603, %v1262
    %v4605 = vrot.slane %v1262, 4
    %v4606 = vsel %vm1319, %v1268, %v4605
    %v4608 = vunpack.c.l.s4 1983009808
    %v4609 = vunpack.c.0.s8 %v4608
    %v4610 = vperm.slane %v4604, %v4609
    %v4612 = vunpack.c.l.s4 1983009808
    %v4613 = vunpack.c.0.s8 %v4612
    %v4614 = vperm.slane %v4606, %v4613
    %v4615 = vrot.slane %v4586, 4
    %v4616 = vsel %vm1319, %v4615, %v4574
    %v4617 = vrot.slane %v4574, 4
    %v4618 = vsel %vm1319, %v4586, %v4617
    %v4620 = vunpack.c.l.s4 1934713408
    %v4621 = vunpack.c.0.s8 %v4620
    %v4622 = vperm.slane %v4616, %v4621
    %v4624 = vunpack.c.l.s4 1934713408
    %v4625 = vunpack.c.0.s8 %v4624
    %v4626 = vperm.slane %v4618, %v4625
    %v4627 = vrot.slane %v4590, 4
    %v4628 = vsel %vm1319, %v4627, %v4578
    %v4629 = vrot.slane %v4578, 4
    %v4630 = vsel %vm1319, %v4590, %v4629
    %v4632 = vunpack.c.l.s4 1934713408
    %v4633 = vunpack.c.0.s8 %v4632
    %v4634 = vperm.slane %v4628, %v4633
    %v4636 = vunpack.c.l.s4 1934713408
    %v4637 = vunpack.c.0.s8 %v4636
    %v4638 = vperm.slane %v4630, %v4637
    %v4639 = vrot.slane %v4610, 4
    %v4640 = vsel %vm1319, %v4639, %v4598
    %v4641 = vrot.slane %v4598, 4
    %v4642 = vsel %vm1319, %v4610, %v4641
    %v4644 = vunpack.c.l.s4 1934713408
    %v4645 = vunpack.c.0.s8 %v4644
    %v4646 = vperm.slane %v4640, %v4645
    %v4648 = vunpack.c.l.s4 1934713408
    %v4649 = vunpack.c.0.s8 %v4648
    %v4650 = vperm.slane %v4642, %v4649
    %v4651 = vrot.slane %v4614, 4
    %v4652 = vsel %vm1319, %v4651, %v4602
    %v4653 = vrot.slane %v4602, 4
    %v4654 = vsel %vm1319, %v4614, %v4653
    %v4656 = vunpack.c.l.s4 1934713408
    %v4657 = vunpack.c.0.s8 %v4656
    %v4658 = vperm.slane %v4652, %v4657
    %v4660 = vunpack.c.l.s4 1934713408
    %v4661 = vunpack.c.0.s8 %v4660
    %v4662 = vperm.slane %v4654, %v4661
    %v4663 = vrot.slane %v4646, 4
    %v4664 = vsel %vm1319, %v4663, %v4622
    %v4665 = vrot.slane %v4622, 4
    %v4666 = vsel %vm1319, %v4646, %v4665
    %v4667 = vrot.slane %v4650, 4
    %v4668 = vsel %vm1319, %v4667, %v4626
    %v4669 = vrot.slane %v4626, 4
    %v4670 = vsel %vm1319, %v4650, %v4669
    %v4671 = vrot.slane %v4658, 4
    %v4672 = vsel %vm1319, %v4671, %v4634
    %v4673 = vrot.slane %v4634, 4
    %v4674 = vsel %vm1319, %v4658, %v4673
    %v4675 = vrot.slane %v4662, 4
    %v4676 = vsel %vm1319, %v4675, %v4638
    %v4677 = vrot.slane %v4638, 4
    %v4678 = vsel %vm1319, %v4662, %v4677
    %v4679 = vrot.slane %v1277, 4
    %v4680 = vsel %vm1319, %v4679, %v1271
    %v4681 = vrot.slane %v1271, 4
    %v4682 = vsel %vm1319, %v1277, %v4681
    %v4684 = vunpack.c.l.s4 1983009808
    %v4685 = vunpack.c.0.s8 %v4684
    %v4686 = vperm.slane %v4680, %v4685
    %v4688 = vunpack.c.l.s4 1983009808
    %v4689 = vunpack.c.0.s8 %v4688
    %v4690 = vperm.slane %v4682, %v4689
    %v4691 = vrot.slane %v1280, 4
    %v4692 = vsel %vm1319, %v4691, %v1274
    %v4693 = vrot.slane %v1274, 4
    %v4694 = vsel %vm1319, %v1280, %v4693
    %v4696 = vunpack.c.l.s4 1983009808
    %v4697 = vunpack.c.0.s8 %v4696
    %v4698 = vperm.slane %v4692, %v4697
    %v4700 = vunpack.c.l.s4 1983009808
    %v4701 = vunpack.c.0.s8 %v4700
    %v4702 = vperm.slane %v4694, %v4701
    %v4703 = vrot.slane %v1289, 4
    %v4704 = vsel %vm1319, %v4703, %v1283
    %v4705 = vrot.slane %v1283, 4
    %v4706 = vsel %vm1319, %v1289, %v4705
    %v4708 = vunpack.c.l.s4 1983009808
    %v4709 = vunpack.c.0.s8 %v4708
    %v4710 = vperm.slane %v4704, %v4709
    %v4712 = vunpack.c.l.s4 1983009808
    %v4713 = vunpack.c.0.s8 %v4712
    %v4714 = vperm.slane %v4706, %v4713
    %v4715 = vrot.slane %v1292, 4
    %v4716 = vsel %vm1319, %v4715, %v1286
    %v4717 = vrot.slane %v1286, 4
    %v4718 = vsel %vm1319, %v1292, %v4717
    %v4720 = vunpack.c.l.s4 1983009808
    %v4721 = vunpack.c.0.s8 %v4720
    %v4722 = vperm.slane %v4716, %v4721
    %v4724 = vunpack.c.l.s4 1983009808
    %v4725 = vunpack.c.0.s8 %v4724
    %v4726 = vperm.slane %v4718, %v4725
    %v4727 = vrot.slane %v4698, 4
    %v4728 = vsel %vm1319, %v4727, %v4686
    %v4729 = vrot.slane %v4686, 4
    %v4730 = vsel %vm1319, %v4698, %v4729
    %v4732 = vunpack.c.l.s4 1934713408
    %v4733 = vunpack.c.0.s8 %v4732
    %v4734 = vperm.slane %v4728, %v4733
    %v4736 = vunpack.c.l.s4 1934713408
    %v4737 = vunpack.c.0.s8 %v4736
    %v4738 = vperm.slane %v4730, %v4737
    %v4739 = vrot.slane %v4702, 4
    %v4740 = vsel %vm1319, %v4739, %v4690
    %v4741 = vrot.slane %v4690, 4
    %v4742 = vsel %vm1319, %v4702, %v4741
    %v4744 = vunpack.c.l.s4 1934713408
    %v4745 = vunpack.c.0.s8 %v4744
    %v4746 = vperm.slane %v4740, %v4745
    %v4748 = vunpack.c.l.s4 1934713408
    %v4749 = vunpack.c.0.s8 %v4748
    %v4750 = vperm.slane %v4742, %v4749
    %v4751 = vrot.slane %v4722, 4
    %v4752 = vsel %vm1319, %v4751, %v4710
    %v4753 = vrot.slane %v4710, 4
    %v4754 = vsel %vm1319, %v4722, %v4753
    %v4756 = vunpack.c.l.s4 1934713408
    %v4757 = vunpack.c.0.s8 %v4756
    %v4758 = vperm.slane %v4752, %v4757
    %v4760 = vunpack.c.l.s4 1934713408
    %v4761 = vunpack.c.0.s8 %v4760
    %v4762 = vperm.slane %v4754, %v4761
    %v4763 = vrot.slane %v4726, 4
    %v4764 = vsel %vm1319, %v4763, %v4714
    %v4765 = vrot.slane %v4714, 4
    %v4766 = vsel %vm1319, %v4726, %v4765
    %v4768 = vunpack.c.l.s4 1934713408
    %v4769 = vunpack.c.0.s8 %v4768
    %v4770 = vperm.slane %v4764, %v4769
    %v4772 = vunpack.c.l.s4 1934713408
    %v4773 = vunpack.c.0.s8 %v4772
    %v4774 = vperm.slane %v4766, %v4773
    %v4775 = vrot.slane %v4758, 4
    %v4776 = vsel %vm1319, %v4775, %v4734
    %v4777 = vrot.slane %v4734, 4
    %v4778 = vsel %vm1319, %v4758, %v4777
    %v4779 = vrot.slane %v4762, 4
    %v4780 = vsel %vm1319, %v4779, %v4738
    %v4781 = vrot.slane %v4738, 4
    %v4782 = vsel %vm1319, %v4762, %v4781
    %v4783 = vrot.slane %v4770, 4
    %v4784 = vsel %vm1319, %v4783, %v4746
    %v4785 = vrot.slane %v4746, 4
    %v4786 = vsel %vm1319, %v4770, %v4785
    %v4787 = vrot.slane %v4774, 4
    %v4788 = vsel %vm1319, %v4787, %v4750
    %v4789 = vrot.slane %v4750, 4
    %v4790 = vsel %vm1319, %v4774, %v4789
    %v4791 = vrot.slane %v1301, 4
    %v4792 = vsel %vm1319, %v4791, %v1295
    %v4793 = vrot.slane %v1295, 4
    %v4794 = vsel %vm1319, %v1301, %v4793
    %v4796 = vunpack.c.l.s4 1983009808
    %v4797 = vunpack.c.0.s8 %v4796
    %v4798 = vperm.slane %v4792, %v4797
    %v4800 = vunpack.c.l.s4 1983009808
    %v4801 = vunpack.c.0.s8 %v4800
    %v4802 = vperm.slane %v4794, %v4801
    %v4803 = vrot.slane %v1304, 4
    %v4804 = vsel %vm1319, %v4803, %v1298
    %v4805 = vrot.slane %v1298, 4
    %v4806 = vsel %vm1319, %v1304, %v4805
    %v4808 = vunpack.c.l.s4 1983009808
    %v4809 = vunpack.c.0.s8 %v4808
    %v4810 = vperm.slane %v4804, %v4809
    %v4812 = vunpack.c.l.s4 1983009808
    %v4813 = vunpack.c.0.s8 %v4812
    %v4814 = vperm.slane %v4806, %v4813
    %v4815 = vrot.slane %v1313, 4
    %v4816 = vsel %vm1319, %v4815, %v1307
    %v4817 = vrot.slane %v1307, 4
    %v4818 = vsel %vm1319, %v1313, %v4817
    %v4820 = vunpack.c.l.s4 1983009808
    %v4821 = vunpack.c.0.s8 %v4820
    %v4822 = vperm.slane %v4816, %v4821
    %v4824 = vunpack.c.l.s4 1983009808
    %v4825 = vunpack.c.0.s8 %v4824
    %v4826 = vperm.slane %v4818, %v4825
    %v4827 = vrot.slane %v1316, 4
    %v4828 = vsel %vm1319, %v4827, %v1310
    %v4829 = vrot.slane %v1310, 4
    %v4830 = vsel %vm1319, %v1316, %v4829
    %v4832 = vunpack.c.l.s4 1983009808
    %v4833 = vunpack.c.0.s8 %v4832
    %v4834 = vperm.slane %v4828, %v4833
    %v4836 = vunpack.c.l.s4 1983009808
    %v4837 = vunpack.c.0.s8 %v4836
    %v4838 = vperm.slane %v4830, %v4837
    %v4839 = vrot.slane %v4810, 4
    %v4840 = vsel %vm1319, %v4839, %v4798
    %v4841 = vrot.slane %v4798, 4
    %v4842 = vsel %vm1319, %v4810, %v4841
    %v4844 = vunpack.c.l.s4 1934713408
    %v4845 = vunpack.c.0.s8 %v4844
    %v4846 = vperm.slane %v4840, %v4845
    %v4848 = vunpack.c.l.s4 1934713408
    %v4849 = vunpack.c.0.s8 %v4848
    %v4850 = vperm.slane %v4842, %v4849
    %v4851 = vrot.slane %v4814, 4
    %v4852 = vsel %vm1319, %v4851, %v4802
    %v4853 = vrot.slane %v4802, 4
    %v4854 = vsel %vm1319, %v4814, %v4853
    %v4856 = vunpack.c.l.s4 1934713408
    %v4857 = vunpack.c.0.s8 %v4856
    %v4858 = vperm.slane %v4852, %v4857
    %v4860 = vunpack.c.l.s4 1934713408
    %v4861 = vunpack.c.0.s8 %v4860
    %v4862 = vperm.slane %v4854, %v4861
    %v4863 = vrot.slane %v4834, 4
    %v4864 = vsel %vm1319, %v4863, %v4822
    %v4865 = vrot.slane %v4822, 4
    %v4866 = vsel %vm1319, %v4834, %v4865
    %v4868 = vunpack.c.l.s4 1934713408
    %v4869 = vunpack.c.0.s8 %v4868
    %v4870 = vperm.slane %v4864, %v4869
    %v4872 = vunpack.c.l.s4 1934713408
    %v4873 = vunpack.c.0.s8 %v4872
    %v4874 = vperm.slane %v4866, %v4873
    %v4875 = vrot.slane %v4838, 4
    %v4876 = vsel %vm1319, %v4875, %v4826
    %v4877 = vrot.slane %v4826, 4
    %v4878 = vsel %vm1319, %v4838, %v4877
    %v4880 = vunpack.c.l.s4 1934713408
    %v4881 = vunpack.c.0.s8 %v4880
    %v4882 = vperm.slane %v4876, %v4881
    %v4884 = vunpack.c.l.s4 1934713408
    %v4885 = vunpack.c.0.s8 %v4884
    %v4886 = vperm.slane %v4878, %v4885
    %v4887 = vrot.slane %v4870, 4
    %v4888 = vsel %vm1319, %v4887, %v4846
    %v4889 = vrot.slane %v4846, 4
    %v4890 = vsel %vm1319, %v4870, %v4889
    %v4891 = vrot.slane %v4874, 4
    %v4892 = vsel %vm1319, %v4891, %v4850
    %v4893 = vrot.slane %v4850, 4
    %v4894 = vsel %vm1319, %v4874, %v4893
    %v4895 = vrot.slane %v4882, 4
    %v4896 = vsel %vm1319, %v4895, %v4858
    %v4897 = vrot.slane %v4858, 4
    %v4898 = vsel %vm1319, %v4882, %v4897
    %v4899 = vrot.slane %v4886, 4
    %v4900 = vsel %vm1319, %v4899, %v4862
    %v4901 = vrot.slane %v4862, 4
    %v4902 = vsel %vm1319, %v4886, %v4901
    %vm4903 = vcmask 15360
    %v4904 = vsel %vm4903, %v1416, -inf
    %4905 = vmax.xlane.f32.xlu0 %v4904
    %v4906 = vpop.xlane.xlu0 %4905
    %v4907 = vsel %vm4903, %v1528, -inf
    %4908 = vmax.xlane.f32.xlu0 %v4907
    %v4909 = vpop.xlane.xlu0 %4908
    %v4910 = vsel %vm4903, %v1640, -inf
    %4911 = vmax.xlane.f32.xlu0 %v4910
    %v4912 = vpop.xlane.xlu0 %4911
    %v4913 = vsel %vm4903, %v1752, -inf
    %4914 = vmax.xlane.f32.xlu0 %v4913
    %v4915 = vpop.xlane.xlu0 %4914
    %v4916 = vsel %vm4903, %v1864, -inf
    %4917 = vmax.xlane.f32.xlu0 %v4916
    %v4918 = vpop.xlane.xlu0 %4917
    %v4919 = vsel %vm4903, %v1976, -inf
    %4920 = vmax.xlane.f32.xlu0 %v4919
    %v4921 = vpop.xlane.xlu0 %4920
    %v4922 = vsel %vm4903, %v2088, -inf
    %4923 = vmax.xlane.f32.xlu0 %v4922
    %v4924 = vpop.xlane.xlu0 %4923
    %v4925 = vsel %vm4903, %v2200, -inf
    %4926 = vmax.xlane.f32.xlu0 %v4925
    %v4927 = vpop.xlane.xlu0 %4926
    %v4928 = vsel %vm4903, %v2312, -inf
    %4929 = vmax.xlane.f32.xlu0 %v4928
    %v4930 = vpop.xlane.xlu0 %4929
    %v4931 = vsel %vm4903, %v2424, -inf
    %4932 = vmax.xlane.f32.xlu0 %v4931
    %v4933 = vpop.xlane.xlu0 %4932
    %v4934 = vsel %vm4903, %v2536, -inf
    %4935 = vmax.xlane.f32.xlu0 %v4934
    %v4936 = vpop.xlane.xlu0 %4935
    %v4937 = vsel %vm4903, %v2648, -inf
    %4938 = vmax.xlane.f32.xlu0 %v4937
    %v4939 = vpop.xlane.xlu0 %4938
    %v4940 = vsel %vm4903, %v2760, -inf
    %4941 = vmax.xlane.f32.xlu0 %v4940
    %v4942 = vpop.xlane.xlu0 %4941
    %v4943 = vsel %vm4903, %v2872, -inf
    %4944 = vmax.xlane.f32.xlu0 %v4943
    %v4945 = vpop.xlane.xlu0 %4944
    %v4946 = vsel %vm4903, %v2984, -inf
    %4947 = vmax.xlane.f32.xlu0 %v4946
    %v4948 = vpop.xlane.xlu0 %4947
    %v4949 = vsel %vm4903, %v3096, -inf
    %4950 = vmax.xlane.f32.xlu0 %v4949
    %v4951 = vpop.xlane.xlu0 %4950
    %v4952 = vsel %vm4903, %v3208, -inf
    %4953 = vmax.xlane.f32.xlu0 %v4952
    %v4954 = vpop.xlane.xlu0 %4953
    %v4955 = vsel %vm4903, %v3320, -inf
    %4956 = vmax.xlane.f32.xlu0 %v4955
    %v4957 = vpop.xlane.xlu0 %4956
    %v4958 = vsel %vm4903, %v3432, -inf
    %4959 = vmax.xlane.f32.xlu0 %v4958
    %v4960 = vpop.xlane.xlu0 %4959
    %v4961 = vsel %vm4903, %v3544, -inf
    %4962 = vmax.xlane.f32.xlu0 %v4961
    %v4963 = vpop.xlane.xlu0 %4962
    %v4964 = vsel %vm4903, %v3656, -inf
    %4965 = vmax.xlane.f32.xlu0 %v4964
    %v4966 = vpop.xlane.xlu0 %4965
    %v4967 = vsel %vm4903, %v3768, -inf
    %4968 = vmax.xlane.f32.xlu0 %v4967
    %v4969 = vpop.xlane.xlu0 %4968
    %v4970 = vsel %vm4903, %v3880, -inf
    %4971 = vmax.xlane.f32.xlu0 %v4970
    %v4972 = vpop.xlane.xlu0 %4971
    %v4973 = vsel %vm4903, %v3992, -inf
    %4974 = vmax.xlane.f32.xlu0 %v4973
    %v4975 = vpop.xlane.xlu0 %4974
    %v4976 = vsel %vm4903, %v4104, -inf
    %4977 = vmax.xlane.f32.xlu0 %v4976
    %v4978 = vpop.xlane.xlu0 %4977
    %v4979 = vsel %vm4903, %v4216, -inf
    %4980 = vmax.xlane.f32.xlu0 %v4979
    %v4981 = vpop.xlane.xlu0 %4980
    %v4982 = vsel %vm4903, %v4328, -inf
    %4983 = vmax.xlane.f32.xlu0 %v4982
    %v4984 = vpop.xlane.xlu0 %4983
    %v4985 = vsel %vm4903, %v4440, -inf
    %4986 = vmax.xlane.f32.xlu0 %v4985
    %v4987 = vpop.xlane.xlu0 %4986
    %v4988 = vsel %vm4903, %v4552, -inf
    %4989 = vmax.xlane.f32.xlu0 %v4988
    %v4990 = vpop.xlane.xlu0 %4989
    %v4991 = vsel %vm4903, %v4664, -inf
    %4992 = vmax.xlane.f32.xlu0 %v4991
    %v4993 = vpop.xlane.xlu0 %4992
    %v4994 = vsel %vm4903, %v4776, -inf
    %4995 = vmax.xlane.f32.xlu0 %v4994
    %v4996 = vpop.xlane.xlu0 %4995
    %v4997 = vsel %vm4903, %v4888, -inf
    %4998 = vmax.xlane.f32.xlu0 %v4997
    %v4999 = vpop.xlane.xlu0 %4998
    %v5000 = vsel %vm4903, %v1418, -inf
    %5001 = vmax.xlane.f32.xlu0 %v5000
    %v5002 = vpop.xlane.xlu0 %5001
    %v5003 = vsel %vm4903, %v1530, -inf
    %5004 = vmax.xlane.f32.xlu0 %v5003
    %v5005 = vpop.xlane.xlu0 %5004
    %v5006 = vsel %vm4903, %v1642, -inf
    %5007 = vmax.xlane.f32.xlu0 %v5006
    %v5008 = vpop.xlane.xlu0 %5007
    %v5009 = vsel %vm4903, %v1754, -inf
    %5010 = vmax.xlane.f32.xlu0 %v5009
    %v5011 = vpop.xlane.xlu0 %5010
    %v5012 = vsel %vm4903, %v1866, -inf
    %5013 = vmax.xlane.f32.xlu0 %v5012
    %v5014 = vpop.xlane.xlu0 %5013
    %v5015 = vsel %vm4903, %v1978, -inf
    %5016 = vmax.xlane.f32.xlu0 %v5015
    %v5017 = vpop.xlane.xlu0 %5016
    %v5018 = vsel %vm4903, %v2090, -inf
    %5019 = vmax.xlane.f32.xlu0 %v5018
    %v5020 = vpop.xlane.xlu0 %5019
    %v5021 = vsel %vm4903, %v2202, -inf
    %5022 = vmax.xlane.f32.xlu0 %v5021
    %v5023 = vpop.xlane.xlu0 %5022
    %v5024 = vsel %vm4903, %v2314, -inf
    %5025 = vmax.xlane.f32.xlu0 %v5024
    %v5026 = vpop.xlane.xlu0 %5025
    %v5027 = vsel %vm4903, %v2426, -inf
    %5028 = vmax.xlane.f32.xlu0 %v5027
    %v5029 = vpop.xlane.xlu0 %5028
    %v5030 = vsel %vm4903, %v2538, -inf
    %5031 = vmax.xlane.f32.xlu0 %v5030
    %v5032 = vpop.xlane.xlu0 %5031
    %v5033 = vsel %vm4903, %v2650, -inf
    %5034 = vmax.xlane.f32.xlu0 %v5033
    %v5035 = vpop.xlane.xlu0 %5034
    %v5036 = vsel %vm4903, %v2762, -inf
    %5037 = vmax.xlane.f32.xlu0 %v5036
    %v5038 = vpop.xlane.xlu0 %5037
    %v5039 = vsel %vm4903, %v2874, -inf
    %5040 = vmax.xlane.f32.xlu0 %v5039
    %v5041 = vpop.xlane.xlu0 %5040
    %v5042 = vsel %vm4903, %v2986, -inf
    %5043 = vmax.xlane.f32.xlu0 %v5042
    %v5044 = vpop.xlane.xlu0 %5043
    %v5045 = vsel %vm4903, %v3098, -inf
    %5046 = vmax.xlane.f32.xlu0 %v5045
    %v5047 = vpop.xlane.xlu0 %5046
    %v5048 = vsel %vm4903, %v3210, -inf
    %5049 = vmax.xlane.f32.xlu0 %v5048
    %v5050 = vpop.xlane.xlu0 %5049
    %v5051 = vsel %vm4903, %v3322, -inf
    %5052 = vmax.xlane.f32.xlu0 %v5051
    %v5053 = vpop.xlane.xlu0 %5052
    %v5054 = vsel %vm4903, %v3434, -inf
    %5055 = vmax.xlane.f32.xlu0 %v5054
    %v5056 = vpop.xlane.xlu0 %5055
    %v5057 = vsel %vm4903, %v3546, -inf
    %5058 = vmax.xlane.f32.xlu0 %v5057
    %v5059 = vpop.xlane.xlu0 %5058
    %v5060 = vsel %vm4903, %v3658, -inf
    %5061 = vmax.xlane.f32.xlu0 %v5060
    %v5062 = vpop.xlane.xlu0 %5061
    %v5063 = vsel %vm4903, %v3770, -inf
    %5064 = vmax.xlane.f32.xlu0 %v5063
    %v5065 = vpop.xlane.xlu0 %5064
    %v5066 = vsel %vm4903, %v3882, -inf
    %5067 = vmax.xlane.f32.xlu0 %v5066
    %v5068 = vpop.xlane.xlu0 %5067
    %v5069 = vsel %vm4903, %v3994, -inf
    %5070 = vmax.xlane.f32.xlu0 %v5069
    %v5071 = vpop.xlane.xlu0 %5070
    %v5072 = vsel %vm4903, %v4106, -inf
    %5073 = vmax.xlane.f32.xlu0 %v5072
    %v5074 = vpop.xlane.xlu0 %5073
    %v5075 = vsel %vm4903, %v4218, -inf
    %5076 = vmax.xlane.f32.xlu0 %v5075
    %v5077 = vpop.xlane.xlu0 %5076
    %v5078 = vsel %vm4903, %v4330, -inf
    %5079 = vmax.xlane.f32.xlu0 %v5078
    %v5080 = vpop.xlane.xlu0 %5079
    %v5081 = vsel %vm4903, %v4442, -inf
    %5082 = vmax.xlane.f32.xlu0 %v5081
    %v5083 = vpop.xlane.xlu0 %5082
    %v5084 = vsel %vm4903, %v4554, -inf
    %5085 = vmax.xlane.f32.xlu0 %v5084
    %v5086 = vpop.xlane.xlu0 %5085
    %v5087 = vsel %vm4903, %v4666, -inf
    %5088 = vmax.xlane.f32.xlu0 %v5087
    %v5089 = vpop.xlane.xlu0 %5088
    %v5090 = vsel %vm4903, %v4778, -inf
    %5091 = vmax.xlane.f32.xlu0 %v5090
    %v5092 = vpop.xlane.xlu0 %5091
    %v5093 = vsel %vm4903, %v4890, -inf
    %5094 = vmax.xlane.f32.xlu0 %v5093
    %v5095 = vpop.xlane.xlu0 %5094
    %v5096 = vsel %vm4903, %v1420, -inf
    %5097 = vmax.xlane.f32.xlu0 %v5096
    %v5098 = vpop.xlane.xlu0 %5097
    %v5099 = vsel %vm4903, %v1532, -inf
    %5100 = vmax.xlane.f32.xlu0 %v5099
    %v5101 = vpop.xlane.xlu0 %5100
    %v5102 = vsel %vm4903, %v1644, -inf
    %5103 = vmax.xlane.f32.xlu0 %v5102
    %v5104 = vpop.xlane.xlu0 %5103
    %v5105 = vsel %vm4903, %v1756, -inf
    %5106 = vmax.xlane.f32.xlu0 %v5105
    %v5107 = vpop.xlane.xlu0 %5106
    %v5108 = vsel %vm4903, %v1868, -inf
    %5109 = vmax.xlane.f32.xlu0 %v5108
    %v5110 = vpop.xlane.xlu0 %5109
    %v5111 = vsel %vm4903, %v1980, -inf
    %5112 = vmax.xlane.f32.xlu0 %v5111
    %v5113 = vpop.xlane.xlu0 %5112
    %v5114 = vsel %vm4903, %v2092, -inf
    %5115 = vmax.xlane.f32.xlu0 %v5114
    %v5116 = vpop.xlane.xlu0 %5115
    %v5117 = vsel %vm4903, %v2204, -inf
    %5118 = vmax.xlane.f32.xlu0 %v5117
    %v5119 = vpop.xlane.xlu0 %5118
    %v5120 = vsel %vm4903, %v2316, -inf
    %5121 = vmax.xlane.f32.xlu0 %v5120
    %v5122 = vpop.xlane.xlu0 %5121
    %v5123 = vsel %vm4903, %v2428, -inf
    %5124 = vmax.xlane.f32.xlu0 %v5123
    %v5125 = vpop.xlane.xlu0 %5124
    %v5126 = vsel %vm4903, %v2540, -inf
    %5127 = vmax.xlane.f32.xlu0 %v5126
    %v5128 = vpop.xlane.xlu0 %5127
    %v5129 = vsel %vm4903, %v2652, -inf
    %5130 = vmax.xlane.f32.xlu0 %v5129
    %v5131 = vpop.xlane.xlu0 %5130
    %v5132 = vsel %vm4903, %v2764, -inf
    %5133 = vmax.xlane.f32.xlu0 %v5132
    %v5134 = vpop.xlane.xlu0 %5133
    %v5135 = vsel %vm4903, %v2876, -inf
    %5136 = vmax.xlane.f32.xlu0 %v5135
    %v5137 = vpop.xlane.xlu0 %5136
    %v5138 = vsel %vm4903, %v2988, -inf
    %5139 = vmax.xlane.f32.xlu0 %v5138
    %v5140 = vpop.xlane.xlu0 %5139
    %v5141 = vsel %vm4903, %v3100, -inf
    %5142 = vmax.xlane.f32.xlu0 %v5141
    %v5143 = vpop.xlane.xlu0 %5142
    %v5144 = vsel %vm4903, %v3212, -inf
    %5145 = vmax.xlane.f32.xlu0 %v5144
    %v5146 = vpop.xlane.xlu0 %5145
    %v5147 = vsel %vm4903, %v3324, -inf
    %5148 = vmax.xlane.f32.xlu0 %v5147
    %v5149 = vpop.xlane.xlu0 %5148
    %v5150 = vsel %vm4903, %v3436, -inf
    %5151 = vmax.xlane.f32.xlu0 %v5150
    %v5152 = vpop.xlane.xlu0 %5151
    %v5153 = vsel %vm4903, %v3548, -inf
    %5154 = vmax.xlane.f32.xlu0 %v5153
    %v5155 = vpop.xlane.xlu0 %5154
    %v5156 = vsel %vm4903, %v3660, -inf
    %5157 = vmax.xlane.f32.xlu0 %v5156
    %v5158 = vpop.xlane.xlu0 %5157
    %v5159 = vsel %vm4903, %v3772, -inf
    %5160 = vmax.xlane.f32.xlu0 %v5159
    %v5161 = vpop.xlane.xlu0 %5160
    %v5162 = vsel %vm4903, %v3884, -inf
    %5163 = vmax.xlane.f32.xlu0 %v5162
    %v5164 = vpop.xlane.xlu0 %5163
    %v5165 = vsel %vm4903, %v3996, -inf
    %5166 = vmax.xlane.f32.xlu0 %v5165
    %v5167 = vpop.xlane.xlu0 %5166
    %v5168 = vsel %vm4903, %v4108, -inf
    %5169 = vmax.xlane.f32.xlu0 %v5168
    %v5170 = vpop.xlane.xlu0 %5169
    %v5171 = vsel %vm4903, %v4220, -inf
    %5172 = vmax.xlane.f32.xlu0 %v5171
    %v5173 = vpop.xlane.xlu0 %5172
    %v5174 = vsel %vm4903, %v4332, -inf
    %5175 = vmax.xlane.f32.xlu0 %v5174
    %v5176 = vpop.xlane.xlu0 %5175
    %v5177 = vsel %vm4903, %v4444, -inf
    %5178 = vmax.xlane.f32.xlu0 %v5177
    %v5179 = vpop.xlane.xlu0 %5178
    %v5180 = vsel %vm4903, %v4556, -inf
    %5181 = vmax.xlane.f32.xlu0 %v5180
    %v5182 = vpop.xlane.xlu0 %5181
    %v5183 = vsel %vm4903, %v4668, -inf
    %5184 = vmax.xlane.f32.xlu0 %v5183
    %v5185 = vpop.xlane.xlu0 %5184
    %v5186 = vsel %vm4903, %v4780, -inf
    %5187 = vmax.xlane.f32.xlu0 %v5186
    %v5188 = vpop.xlane.xlu0 %5187
    %v5189 = vsel %vm4903, %v4892, -inf
    %5190 = vmax.xlane.f32.xlu0 %v5189
    %v5191 = vpop.xlane.xlu0 %5190
    %v5192 = vsel %vm4903, %v1422, -inf
    %5193 = vmax.xlane.f32.xlu0 %v5192
    %v5194 = vpop.xlane.xlu0 %5193
    %v5195 = vsel %vm4903, %v1534, -inf
    %5196 = vmax.xlane.f32.xlu0 %v5195
    %v5197 = vpop.xlane.xlu0 %5196
    %v5198 = vsel %vm4903, %v1646, -inf
    %5199 = vmax.xlane.f32.xlu0 %v5198
    %v5200 = vpop.xlane.xlu0 %5199
    %v5201 = vsel %vm4903, %v1758, -inf
    %5202 = vmax.xlane.f32.xlu0 %v5201
    %v5203 = vpop.xlane.xlu0 %5202
    %v5204 = vsel %vm4903, %v1870, -inf
    %5205 = vmax.xlane.f32.xlu0 %v5204
    %v5206 = vpop.xlane.xlu0 %5205
    %v5207 = vsel %vm4903, %v1982, -inf
    %5208 = vmax.xlane.f32.xlu0 %v5207
    %v5209 = vpop.xlane.xlu0 %5208
    %v5210 = vsel %vm4903, %v2094, -inf
    %5211 = vmax.xlane.f32.xlu0 %v5210
    %v5212 = vpop.xlane.xlu0 %5211
    %v5213 = vsel %vm4903, %v2206, -inf
    %5214 = vmax.xlane.f32.xlu0 %v5213
    %v5215 = vpop.xlane.xlu0 %5214
    %v5216 = vsel %vm4903, %v2318, -inf
    %5217 = vmax.xlane.f32.xlu0 %v5216
    %v5218 = vpop.xlane.xlu0 %5217
    %v5219 = vsel %vm4903, %v2430, -inf
    %5220 = vmax.xlane.f32.xlu0 %v5219
    %v5221 = vpop.xlane.xlu0 %5220
    %v5222 = vsel %vm4903, %v2542, -inf
    %5223 = vmax.xlane.f32.xlu0 %v5222
    %v5224 = vpop.xlane.xlu0 %5223
    %v5225 = vsel %vm4903, %v2654, -inf
    %5226 = vmax.xlane.f32.xlu0 %v5225
    %v5227 = vpop.xlane.xlu0 %5226
    %v5228 = vsel %vm4903, %v2766, -inf
    %5229 = vmax.xlane.f32.xlu0 %v5228
    %v5230 = vpop.xlane.xlu0 %5229
    %v5231 = vsel %vm4903, %v2878, -inf
    %5232 = vmax.xlane.f32.xlu0 %v5231
    %v5233 = vpop.xlane.xlu0 %5232
    %v5234 = vsel %vm4903, %v2990, -inf
    %5235 = vmax.xlane.f32.xlu0 %v5234
    %v5236 = vpop.xlane.xlu0 %5235
    %v5237 = vsel %vm4903, %v3102, -inf
    %5238 = vmax.xlane.f32.xlu0 %v5237
    %v5239 = vpop.xlane.xlu0 %5238
    %v5240 = vsel %vm4903, %v3214, -inf
    %5241 = vmax.xlane.f32.xlu0 %v5240
    %v5242 = vpop.xlane.xlu0 %5241
    %v5243 = vsel %vm4903, %v3326, -inf
    %5244 = vmax.xlane.f32.xlu0 %v5243
    %v5245 = vpop.xlane.xlu0 %5244
    %v5246 = vsel %vm4903, %v3438, -inf
    %5247 = vmax.xlane.f32.xlu0 %v5246
    %v5248 = vpop.xlane.xlu0 %5247
    %v5249 = vsel %vm4903, %v3550, -inf
    %5250 = vmax.xlane.f32.xlu0 %v5249
    %v5251 = vpop.xlane.xlu0 %5250
    %v5252 = vsel %vm4903, %v3662, -inf
    %5253 = vmax.xlane.f32.xlu0 %v5252
    %v5254 = vpop.xlane.xlu0 %5253
    %v5255 = vsel %vm4903, %v3774, -inf
    %5256 = vmax.xlane.f32.xlu0 %v5255
    %v5257 = vpop.xlane.xlu0 %5256
    %v5258 = vsel %vm4903, %v3886, -inf
    %5259 = vmax.xlane.f32.xlu0 %v5258
    %v5260 = vpop.xlane.xlu0 %5259
    %v5261 = vsel %vm4903, %v3998, -inf
    %5262 = vmax.xlane.f32.xlu0 %v5261
    %v5263 = vpop.xlane.xlu0 %5262
    %v5264 = vsel %vm4903, %v4110, -inf
    %5265 = vmax.xlane.f32.xlu0 %v5264
    %v5266 = vpop.xlane.xlu0 %5265
    %v5267 = vsel %vm4903, %v4222, -inf
    %5268 = vmax.xlane.f32.xlu0 %v5267
    %v5269 = vpop.xlane.xlu0 %5268
    %v5270 = vsel %vm4903, %v4334, -inf
    %5271 = vmax.xlane.f32.xlu0 %v5270
    %v5272 = vpop.xlane.xlu0 %5271
    %v5273 = vsel %vm4903, %v4446, -inf
    %5274 = vmax.xlane.f32.xlu0 %v5273
    %v5275 = vpop.xlane.xlu0 %5274
    %v5276 = vsel %vm4903, %v4558, -inf
    %5277 = vmax.xlane.f32.xlu0 %v5276
    %v5278 = vpop.xlane.xlu0 %5277
    %v5279 = vsel %vm4903, %v4670, -inf
    %5280 = vmax.xlane.f32.xlu0 %v5279
    %v5281 = vpop.xlane.xlu0 %5280
    %v5282 = vsel %vm4903, %v4782, -inf
    %5283 = vmax.xlane.f32.xlu0 %v5282
    %v5284 = vpop.xlane.xlu0 %5283
    %v5285 = vsel %vm4903, %v4894, -inf
    %5286 = vmax.xlane.f32.xlu0 %v5285
    %v5287 = vpop.xlane.xlu0 %5286
    %v5288 = vsel %vm4903, %v1424, -inf
    %5289 = vmax.xlane.f32.xlu0 %v5288
    %v5290 = vpop.xlane.xlu0 %5289
    %v5291 = vsel %vm4903, %v1536, -inf
    %5292 = vmax.xlane.f32.xlu0 %v5291
    %v5293 = vpop.xlane.xlu0 %5292
    %v5294 = vsel %vm4903, %v1648, -inf
    %5295 = vmax.xlane.f32.xlu0 %v5294
    %v5296 = vpop.xlane.xlu0 %5295
    %v5297 = vsel %vm4903, %v1760, -inf
    %5298 = vmax.xlane.f32.xlu0 %v5297
    %v5299 = vpop.xlane.xlu0 %5298
    %v5300 = vsel %vm4903, %v1872, -inf
    %5301 = vmax.xlane.f32.xlu0 %v5300
    %v5302 = vpop.xlane.xlu0 %5301
    %v5303 = vsel %vm4903, %v1984, -inf
    %5304 = vmax.xlane.f32.xlu0 %v5303
    %v5305 = vpop.xlane.xlu0 %5304
    %v5306 = vsel %vm4903, %v2096, -inf
    %5307 = vmax.xlane.f32.xlu0 %v5306
    %v5308 = vpop.xlane.xlu0 %5307
    %v5309 = vsel %vm4903, %v2208, -inf
    %5310 = vmax.xlane.f32.xlu0 %v5309
    %v5311 = vpop.xlane.xlu0 %5310
    %v5312 = vsel %vm4903, %v2320, -inf
    %5313 = vmax.xlane.f32.xlu0 %v5312
    %v5314 = vpop.xlane.xlu0 %5313
    %v5315 = vsel %vm4903, %v2432, -inf
    %5316 = vmax.xlane.f32.xlu0 %v5315
    %v5317 = vpop.xlane.xlu0 %5316
    %v5318 = vsel %vm4903, %v2544, -inf
    %5319 = vmax.xlane.f32.xlu0 %v5318
    %v5320 = vpop.xlane.xlu0 %5319
    %v5321 = vsel %vm4903, %v2656, -inf
    %5322 = vmax.xlane.f32.xlu0 %v5321
    %v5323 = vpop.xlane.xlu0 %5322
    %v5324 = vsel %vm4903, %v2768, -inf
    %5325 = vmax.xlane.f32.xlu0 %v5324
    %v5326 = vpop.xlane.xlu0 %5325
    %v5327 = vsel %vm4903, %v2880, -inf
    %5328 = vmax.xlane.f32.xlu0 %v5327
    %v5329 = vpop.xlane.xlu0 %5328
    %v5330 = vsel %vm4903, %v2992, -inf
    %5331 = vmax.xlane.f32.xlu0 %v5330
    %v5332 = vpop.xlane.xlu0 %5331
    %v5333 = vsel %vm4903, %v3104, -inf
    %5334 = vmax.xlane.f32.xlu0 %v5333
    %v5335 = vpop.xlane.xlu0 %5334
    %v5336 = vsel %vm4903, %v3216, -inf
    %5337 = vmax.xlane.f32.xlu0 %v5336
    %v5338 = vpop.xlane.xlu0 %5337
    %v5339 = vsel %vm4903, %v3328, -inf
    %5340 = vmax.xlane.f32.xlu0 %v5339
    %v5341 = vpop.xlane.xlu0 %5340
    %v5342 = vsel %vm4903, %v3440, -inf
    %5343 = vmax.xlane.f32.xlu0 %v5342
    %v5344 = vpop.xlane.xlu0 %5343
    %v5345 = vsel %vm4903, %v3552, -inf
    %5346 = vmax.xlane.f32.xlu0 %v5345
    %v5347 = vpop.xlane.xlu0 %5346
    %v5348 = vsel %vm4903, %v3664, -inf
    %5349 = vmax.xlane.f32.xlu0 %v5348
    %v5350 = vpop.xlane.xlu0 %5349
    %v5351 = vsel %vm4903, %v3776, -inf
    %5352 = vmax.xlane.f32.xlu0 %v5351
    %v5353 = vpop.xlane.xlu0 %5352
    %v5354 = vsel %vm4903, %v3888, -inf
    %5355 = vmax.xlane.f32.xlu0 %v5354
    %v5356 = vpop.xlane.xlu0 %5355
    %v5357 = vsel %vm4903, %v4000, -inf
    %5358 = vmax.xlane.f32.xlu0 %v5357
    %v5359 = vpop.xlane.xlu0 %5358
    %v5360 = vsel %vm4903, %v4112, -inf
    %5361 = vmax.xlane.f32.xlu0 %v5360
    %v5362 = vpop.xlane.xlu0 %5361
    %v5363 = vsel %vm4903, %v4224, -inf
    %5364 = vmax.xlane.f32.xlu0 %v5363
    %v5365 = vpop.xlane.xlu0 %5364
    %v5366 = vsel %vm4903, %v4336, -inf
    %5367 = vmax.xlane.f32.xlu0 %v5366
    %v5368 = vpop.xlane.xlu0 %5367
    %v5369 = vsel %vm4903, %v4448, -inf
    %5370 = vmax.xlane.f32.xlu0 %v5369
    %v5371 = vpop.xlane.xlu0 %5370
    %v5372 = vsel %vm4903, %v4560, -inf
    %5373 = vmax.xlane.f32.xlu0 %v5372
    %v5374 = vpop.xlane.xlu0 %5373
    %v5375 = vsel %vm4903, %v4672, -inf
    %5376 = vmax.xlane.f32.xlu0 %v5375
    %v5377 = vpop.xlane.xlu0 %5376
    %v5378 = vsel %vm4903, %v4784, -inf
    %5379 = vmax.xlane.f32.xlu0 %v5378
    %v5380 = vpop.xlane.xlu0 %5379
    %v5381 = vsel %vm4903, %v4896, -inf
    %5382 = vmax.xlane.f32.xlu0 %v5381
    %v5383 = vpop.xlane.xlu0 %5382
    %v5384 = vsel %vm4903, %v1426, -inf
    %5385 = vmax.xlane.f32.xlu0 %v5384
    %v5386 = vpop.xlane.xlu0 %5385
    %v5387 = vsel %vm4903, %v1538, -inf
    %5388 = vmax.xlane.f32.xlu0 %v5387
    %v5389 = vpop.xlane.xlu0 %5388
    %v5390 = vsel %vm4903, %v1650, -inf
    %5391 = vmax.xlane.f32.xlu0 %v5390
    %v5392 = vpop.xlane.xlu0 %5391
    %v5393 = vsel %vm4903, %v1762, -inf
    %5394 = vmax.xlane.f32.xlu0 %v5393
    %v5395 = vpop.xlane.xlu0 %5394
    %v5396 = vsel %vm4903, %v1874, -inf
    %5397 = vmax.xlane.f32.xlu0 %v5396
    %v5398 = vpop.xlane.xlu0 %5397
    %v5399 = vsel %vm4903, %v1986, -inf
    %5400 = vmax.xlane.f32.xlu0 %v5399
    %v5401 = vpop.xlane.xlu0 %5400
    %v5402 = vsel %vm4903, %v2098, -inf
    %5403 = vmax.xlane.f32.xlu0 %v5402
    %v5404 = vpop.xlane.xlu0 %5403
    %v5405 = vsel %vm4903, %v2210, -inf
    %5406 = vmax.xlane.f32.xlu0 %v5405
    %v5407 = vpop.xlane.xlu0 %5406
    %v5408 = vsel %vm4903, %v2322, -inf
    %5409 = vmax.xlane.f32.xlu0 %v5408
    %v5410 = vpop.xlane.xlu0 %5409
    %v5411 = vsel %vm4903, %v2434, -inf
    %5412 = vmax.xlane.f32.xlu0 %v5411
    %v5413 = vpop.xlane.xlu0 %5412
    %v5414 = vsel %vm4903, %v2546, -inf
    %5415 = vmax.xlane.f32.xlu0 %v5414
    %v5416 = vpop.xlane.xlu0 %5415
    %v5417 = vsel %vm4903, %v2658, -inf
    %5418 = vmax.xlane.f32.xlu0 %v5417
    %v5419 = vpop.xlane.xlu0 %5418
    %v5420 = vsel %vm4903, %v2770, -inf
    %5421 = vmax.xlane.f32.xlu0 %v5420
    %v5422 = vpop.xlane.xlu0 %5421
    %v5423 = vsel %vm4903, %v2882, -inf
    %5424 = vmax.xlane.f32.xlu0 %v5423
    %v5425 = vpop.xlane.xlu0 %5424
    %v5426 = vsel %vm4903, %v2994, -inf
    %5427 = vmax.xlane.f32.xlu0 %v5426
    %v5428 = vpop.xlane.xlu0 %5427
    %v5429 = vsel %vm4903, %v3106, -inf
    %5430 = vmax.xlane.f32.xlu0 %v5429
    %v5431 = vpop.xlane.xlu0 %5430
    %v5432 = vsel %vm4903, %v3218, -inf
    %5433 = vmax.xlane.f32.xlu0 %v5432
    %v5434 = vpop.xlane.xlu0 %5433
    %v5435 = vsel %vm4903, %v3330, -inf
    %5436 = vmax.xlane.f32.xlu0 %v5435
    %v5437 = vpop.xlane.xlu0 %5436
    %v5438 = vsel %vm4903, %v3442, -inf
    %5439 = vmax.xlane.f32.xlu0 %v5438
    %v5440 = vpop.xlane.xlu0 %5439
    %v5441 = vsel %vm4903, %v3554, -inf
    %5442 = vmax.xlane.f32.xlu0 %v5441
    %v5443 = vpop.xlane.xlu0 %5442
    %v5444 = vsel %vm4903, %v3666, -inf
    %5445 = vmax.xlane.f32.xlu0 %v5444
    %v5446 = vpop.xlane.xlu0 %5445
    %v5447 = vsel %vm4903, %v3778, -inf
    %5448 = vmax.xlane.f32.xlu0 %v5447
    %v5449 = vpop.xlane.xlu0 %5448
    %v5450 = vsel %vm4903, %v3890, -inf
    %5451 = vmax.xlane.f32.xlu0 %v5450
    %v5452 = vpop.xlane.xlu0 %5451
    %v5453 = vsel %vm4903, %v4002, -inf
    %5454 = vmax.xlane.f32.xlu0 %v5453
    %v5455 = vpop.xlane.xlu0 %5454
    %v5456 = vsel %vm4903, %v4114, -inf
    %5457 = vmax.xlane.f32.xlu0 %v5456
    %v5458 = vpop.xlane.xlu0 %5457
    %v5459 = vsel %vm4903, %v4226, -inf
    %5460 = vmax.xlane.f32.xlu0 %v5459
    %v5461 = vpop.xlane.xlu0 %5460
    %v5462 = vsel %vm4903, %v4338, -inf
    %5463 = vmax.xlane.f32.xlu0 %v5462
    %v5464 = vpop.xlane.xlu0 %5463
    %v5465 = vsel %vm4903, %v4450, -inf
    %5466 = vmax.xlane.f32.xlu0 %v5465
    %v5467 = vpop.xlane.xlu0 %5466
    %v5468 = vsel %vm4903, %v4562, -inf
    %5469 = vmax.xlane.f32.xlu0 %v5468
    %v5470 = vpop.xlane.xlu0 %5469
    %v5471 = vsel %vm4903, %v4674, -inf
    %5472 = vmax.xlane.f32.xlu0 %v5471
    %v5473 = vpop.xlane.xlu0 %5472
    %v5474 = vsel %vm4903, %v4786, -inf
    %5475 = vmax.xlane.f32.xlu0 %v5474
    %v5476 = vpop.xlane.xlu0 %5475
    %v5477 = vsel %vm4903, %v4898, -inf
    %5478 = vmax.xlane.f32.xlu0 %v5477
    %v5479 = vpop.xlane.xlu0 %5478
    %v5480 = vsel %vm4903, %v1428, -inf
    %5481 = vmax.xlane.f32.xlu0 %v5480
    %v5482 = vpop.xlane.xlu0 %5481
    %v5483 = vsel %vm4903, %v1540, -inf
    %5484 = vmax.xlane.f32.xlu0 %v5483
    %v5485 = vpop.xlane.xlu0 %5484
    %v5486 = vsel %vm4903, %v1652, -inf
    %5487 = vmax.xlane.f32.xlu0 %v5486
    %v5488 = vpop.xlane.xlu0 %5487
    %v5489 = vsel %vm4903, %v1764, -inf
    %5490 = vmax.xlane.f32.xlu0 %v5489
    %v5491 = vpop.xlane.xlu0 %5490
    %v5492 = vsel %vm4903, %v1876, -inf
    %5493 = vmax.xlane.f32.xlu0 %v5492
    %v5494 = vpop.xlane.xlu0 %5493
    %v5495 = vsel %vm4903, %v1988, -inf
    %5496 = vmax.xlane.f32.xlu0 %v5495
    %v5497 = vpop.xlane.xlu0 %5496
    %v5498 = vsel %vm4903, %v2100, -inf
    %5499 = vmax.xlane.f32.xlu0 %v5498
    %v5500 = vpop.xlane.xlu0 %5499
    %v5501 = vsel %vm4903, %v2212, -inf
    %5502 = vmax.xlane.f32.xlu0 %v5501
    %v5503 = vpop.xlane.xlu0 %5502
    %v5504 = vsel %vm4903, %v2324, -inf
    %5505 = vmax.xlane.f32.xlu0 %v5504
    %v5506 = vpop.xlane.xlu0 %5505
    %v5507 = vsel %vm4903, %v2436, -inf
    %5508 = vmax.xlane.f32.xlu0 %v5507
    %v5509 = vpop.xlane.xlu0 %5508
    %v5510 = vsel %vm4903, %v2548, -inf
    %5511 = vmax.xlane.f32.xlu0 %v5510
    %v5512 = vpop.xlane.xlu0 %5511
    %v5513 = vsel %vm4903, %v2660, -inf
    %5514 = vmax.xlane.f32.xlu0 %v5513
    %v5515 = vpop.xlane.xlu0 %5514
    %v5516 = vsel %vm4903, %v2772, -inf
    %5517 = vmax.xlane.f32.xlu0 %v5516
    %v5518 = vpop.xlane.xlu0 %5517
    %v5519 = vsel %vm4903, %v2884, -inf
    %5520 = vmax.xlane.f32.xlu0 %v5519
    %v5521 = vpop.xlane.xlu0 %5520
    %v5522 = vsel %vm4903, %v2996, -inf
    %5523 = vmax.xlane.f32.xlu0 %v5522
    %v5524 = vpop.xlane.xlu0 %5523
    %v5525 = vsel %vm4903, %v3108, -inf
    %5526 = vmax.xlane.f32.xlu0 %v5525
    %v5527 = vpop.xlane.xlu0 %5526
    %v5528 = vsel %vm4903, %v3220, -inf
    %5529 = vmax.xlane.f32.xlu0 %v5528
    %v5530 = vpop.xlane.xlu0 %5529
    %v5531 = vsel %vm4903, %v3332, -inf
    %5532 = vmax.xlane.f32.xlu0 %v5531
    %v5533 = vpop.xlane.xlu0 %5532
    %v5534 = vsel %vm4903, %v3444, -inf
    %5535 = vmax.xlane.f32.xlu0 %v5534
    %v5536 = vpop.xlane.xlu0 %5535
    %v5537 = vsel %vm4903, %v3556, -inf
    %5538 = vmax.xlane.f32.xlu0 %v5537
    %v5539 = vpop.xlane.xlu0 %5538
    %v5540 = vsel %vm4903, %v3668, -inf
    %5541 = vmax.xlane.f32.xlu0 %v5540
    %v5542 = vpop.xlane.xlu0 %5541
    %v5543 = vsel %vm4903, %v3780, -inf
    %5544 = vmax.xlane.f32.xlu0 %v5543
    %v5545 = vpop.xlane.xlu0 %5544
    %v5546 = vsel %vm4903, %v3892, -inf
    %5547 = vmax.xlane.f32.xlu0 %v5546
    %v5548 = vpop.xlane.xlu0 %5547
    %v5549 = vsel %vm4903, %v4004, -inf
    %5550 = vmax.xlane.f32.xlu0 %v5549
    %v5551 = vpop.xlane.xlu0 %5550
    %v5552 = vsel %vm4903, %v4116, -inf
    %5553 = vmax.xlane.f32.xlu0 %v5552
    %v5554 = vpop.xlane.xlu0 %5553
    %v5555 = vsel %vm4903, %v4228, -inf
    %5556 = vmax.xlane.f32.xlu0 %v5555
    %v5557 = vpop.xlane.xlu0 %5556
    %v5558 = vsel %vm4903, %v4340, -inf
    %5559 = vmax.xlane.f32.xlu0 %v5558
    %v5560 = vpop.xlane.xlu0 %5559
    %v5561 = vsel %vm4903, %v4452, -inf
    %5562 = vmax.xlane.f32.xlu0 %v5561
    %v5563 = vpop.xlane.xlu0 %5562
    %v5564 = vsel %vm4903, %v4564, -inf
    %5565 = vmax.xlane.f32.xlu0 %v5564
    %v5566 = vpop.xlane.xlu0 %5565
    %v5567 = vsel %vm4903, %v4676, -inf
    %5568 = vmax.xlane.f32.xlu0 %v5567
    %v5569 = vpop.xlane.xlu0 %5568
    %v5570 = vsel %vm4903, %v4788, -inf
    %5571 = vmax.xlane.f32.xlu0 %v5570
    %v5572 = vpop.xlane.xlu0 %5571
    %v5573 = vsel %vm4903, %v4900, -inf
    %5574 = vmax.xlane.f32.xlu0 %v5573
    %v5575 = vpop.xlane.xlu0 %5574
    %v5576 = vsel %vm4903, %v1430, -inf
    %5577 = vmax.xlane.f32.xlu0 %v5576
    %v5578 = vpop.xlane.xlu0 %5577
    %v5579 = vsel %vm4903, %v1542, -inf
    %5580 = vmax.xlane.f32.xlu0 %v5579
    %v5581 = vpop.xlane.xlu0 %5580
    %v5582 = vsel %vm4903, %v1654, -inf
    %5583 = vmax.xlane.f32.xlu0 %v5582
    %v5584 = vpop.xlane.xlu0 %5583
    %v5585 = vsel %vm4903, %v1766, -inf
    %5586 = vmax.xlane.f32.xlu0 %v5585
    %v5587 = vpop.xlane.xlu0 %5586
    %v5588 = vsel %vm4903, %v1878, -inf
    %5589 = vmax.xlane.f32.xlu0 %v5588
    %v5590 = vpop.xlane.xlu0 %5589
    %v5591 = vsel %vm4903, %v1990, -inf
    %5592 = vmax.xlane.f32.xlu0 %v5591
    %v5593 = vpop.xlane.xlu0 %5592
    %v5594 = vsel %vm4903, %v2102, -inf
    %5595 = vmax.xlane.f32.xlu0 %v5594
    %v5596 = vpop.xlane.xlu0 %5595
    %v5597 = vsel %vm4903, %v2214, -inf
    %5598 = vmax.xlane.f32.xlu0 %v5597
    %v5599 = vpop.xlane.xlu0 %5598
    %v5600 = vsel %vm4903, %v2326, -inf
    %5601 = vmax.xlane.f32.xlu0 %v5600
    %v5602 = vpop.xlane.xlu0 %5601
    %v5603 = vsel %vm4903, %v2438, -inf
    %5604 = vmax.xlane.f32.xlu0 %v5603
    %v5605 = vpop.xlane.xlu0 %5604
    %v5606 = vsel %vm4903, %v2550, -inf
    %5607 = vmax.xlane.f32.xlu0 %v5606
    %v5608 = vpop.xlane.xlu0 %5607
    %v5609 = vsel %vm4903, %v2662, -inf
    %5610 = vmax.xlane.f32.xlu0 %v5609
    %v5611 = vpop.xlane.xlu0 %5610
    %v5612 = vsel %vm4903, %v2774, -inf
    %5613 = vmax.xlane.f32.xlu0 %v5612
    %v5614 = vpop.xlane.xlu0 %5613
    %v5615 = vsel %vm4903, %v2886, -inf
    %5616 = vmax.xlane.f32.xlu0 %v5615
    %v5617 = vpop.xlane.xlu0 %5616
    %v5618 = vsel %vm4903, %v2998, -inf
    %5619 = vmax.xlane.f32.xlu0 %v5618
    %v5620 = vpop.xlane.xlu0 %5619
    %v5621 = vsel %vm4903, %v3110, -inf
    %5622 = vmax.xlane.f32.xlu0 %v5621
    %v5623 = vpop.xlane.xlu0 %5622
    %v5624 = vsel %vm4903, %v3222, -inf
    %5625 = vmax.xlane.f32.xlu0 %v5624
    %v5626 = vpop.xlane.xlu0 %5625
    %v5627 = vsel %vm4903, %v3334, -inf
    %5628 = vmax.xlane.f32.xlu0 %v5627
    %v5629 = vpop.xlane.xlu0 %5628
    %v5630 = vsel %vm4903, %v3446, -inf
    %5631 = vmax.xlane.f32.xlu0 %v5630
    %v5632 = vpop.xlane.xlu0 %5631
    %v5633 = vsel %vm4903, %v3558, -inf
    %5634 = vmax.xlane.f32.xlu0 %v5633
    %v5635 = vpop.xlane.xlu0 %5634
    %v5636 = vsel %vm4903, %v3670, -inf
    %5637 = vmax.xlane.f32.xlu0 %v5636
    %v5638 = vpop.xlane.xlu0 %5637
    %v5639 = vsel %vm4903, %v3782, -inf
    %5640 = vmax.xlane.f32.xlu0 %v5639
    %v5641 = vpop.xlane.xlu0 %5640
    %v5642 = vsel %vm4903, %v3894, -inf
    %5643 = vmax.xlane.f32.xlu0 %v5642
    %v5644 = vpop.xlane.xlu0 %5643
    %v5645 = vsel %vm4903, %v4006, -inf
    %5646 = vmax.xlane.f32.xlu0 %v5645
    %v5647 = vpop.xlane.xlu0 %5646
    %v5648 = vsel %vm4903, %v4118, -inf
    %5649 = vmax.xlane.f32.xlu0 %v5648
    %v5650 = vpop.xlane.xlu0 %5649
    %v5651 = vsel %vm4903, %v4230, -inf
    %5652 = vmax.xlane.f32.xlu0 %v5651
    %v5653 = vpop.xlane.xlu0 %5652
    %v5654 = vsel %vm4903, %v4342, -inf
    %5655 = vmax.xlane.f32.xlu0 %v5654
    %v5656 = vpop.xlane.xlu0 %5655
    %v5657 = vsel %vm4903, %v4454, -inf
    %5658 = vmax.xlane.f32.xlu0 %v5657
    %v5659 = vpop.xlane.xlu0 %5658
    %v5660 = vsel %vm4903, %v4566, -inf
    %5661 = vmax.xlane.f32.xlu0 %v5660
    %v5662 = vpop.xlane.xlu0 %5661
    %v5663 = vsel %vm4903, %v4678, -inf
    %5664 = vmax.xlane.f32.xlu0 %v5663
    %v5665 = vpop.xlane.xlu0 %5664
    %v5666 = vsel %vm4903, %v4790, -inf
    %5667 = vmax.xlane.f32.xlu0 %v5666
    %v5668 = vpop.xlane.xlu0 %5667
    %v5669 = vsel %vm4903, %v4902, -inf
    %5670 = vmax.xlane.f32.xlu0 %v5669
    %v5671 = vpop.xlane.xlu0 %5670
    %v5672 = vmax.f32 %v4906, %v4909
    %v5673 = vmax.f32 %v4912, %v4915
    %v5674 = vmax.f32 %v4918, %v4921
    %v5675 = vmax.f32 %v4924, %v4927
    %v5676 = vmax.f32 %v4930, %v4933
    %v5677 = vmax.f32 %v4936, %v4939
    %v5678 = vmax.f32 %v4942, %v4945
    %v5679 = vmax.f32 %v4948, %v4951
    %v5680 = vmax.f32 %v4954, %v4957
    %v5681 = vmax.f32 %v4960, %v4963
    %v5682 = vmax.f32 %v4966, %v4969
    %v5683 = vmax.f32 %v4972, %v4975
    %v5684 = vmax.f32 %v4978, %v4981
    %v5685 = vmax.f32 %v4984, %v4987
    %v5686 = vmax.f32 %v4990, %v4993
    %v5687 = vmax.f32 %v4996, %v4999
    %v5688 = vmax.f32 %v5002, %v5005
    %v5689 = vmax.f32 %v5008, %v5011
    %v5690 = vmax.f32 %v5014, %v5017
    %v5691 = vmax.f32 %v5020, %v5023
    %v5692 = vmax.f32 %v5026, %v5029
    %v5693 = vmax.f32 %v5032, %v5035
    %v5694 = vmax.f32 %v5038, %v5041
    %v5695 = vmax.f32 %v5044, %v5047
    %v5696 = vmax.f32 %v5050, %v5053
    %v5697 = vmax.f32 %v5056, %v5059
    %v5698 = vmax.f32 %v5062, %v5065
    %v5699 = vmax.f32 %v5068, %v5071
    %v5700 = vmax.f32 %v5074, %v5077
    %v5701 = vmax.f32 %v5080, %v5083
    %v5702 = vmax.f32 %v5086, %v5089
    %v5703 = vmax.f32 %v5092, %v5095
    %v5704 = vmax.f32 %v5098, %v5101
    %v5705 = vmax.f32 %v5104, %v5107
    %v5706 = vmax.f32 %v5110, %v5113
    %v5707 = vmax.f32 %v5116, %v5119
    %v5708 = vmax.f32 %v5122, %v5125
    %v5709 = vmax.f32 %v5128, %v5131
    %v5710 = vmax.f32 %v5134, %v5137
    %v5711 = vmax.f32 %v5140, %v5143
    %v5712 = vmax.f32 %v5146, %v5149
    %v5713 = vmax.f32 %v5152, %v5155
    %v5714 = vmax.f32 %v5158, %v5161
    %v5715 = vmax.f32 %v5164, %v5167
    %v5716 = vmax.f32 %v5170, %v5173
    %v5717 = vmax.f32 %v5176, %v5179
    %v5718 = vmax.f32 %v5182, %v5185
    %v5719 = vmax.f32 %v5188, %v5191
    %v5720 = vmax.f32 %v5194, %v5197
    %v5721 = vmax.f32 %v5200, %v5203
    %v5722 = vmax.f32 %v5206, %v5209
    %v5723 = vmax.f32 %v5212, %v5215
    %v5724 = vmax.f32 %v5218, %v5221
    %v5725 = vmax.f32 %v5224, %v5227
    %v5726 = vmax.f32 %v5230, %v5233
    %v5727 = vmax.f32 %v5236, %v5239
    %v5728 = vmax.f32 %v5242, %v5245
    %v5729 = vmax.f32 %v5248, %v5251
    %v5730 = vmax.f32 %v5254, %v5257
    %v5731 = vmax.f32 %v5260, %v5263
    %v5732 = vmax.f32 %v5266, %v5269
    %v5733 = vmax.f32 %v5272, %v5275
    %v5734 = vmax.f32 %v5278, %v5281
    %v5735 = vmax.f32 %v5284, %v5287
    %v5736 = vmax.f32 %v5290, %v5293
    %v5737 = vmax.f32 %v5296, %v5299
    %v5738 = vmax.f32 %v5302, %v5305
    %v5739 = vmax.f32 %v5308, %v5311
    %v5740 = vmax.f32 %v5314, %v5317
    %v5741 = vmax.f32 %v5320, %v5323
    %v5742 = vmax.f32 %v5326, %v5329
    %v5743 = vmax.f32 %v5332, %v5335
    %v5744 = vmax.f32 %v5338, %v5341
    %v5745 = vmax.f32 %v5344, %v5347
    %v5746 = vmax.f32 %v5350, %v5353
    %v5747 = vmax.f32 %v5356, %v5359
    %v5748 = vmax.f32 %v5362, %v5365
    %v5749 = vmax.f32 %v5368, %v5371
    %v5750 = vmax.f32 %v5374, %v5377
    %v5751 = vmax.f32 %v5380, %v5383
    %v5752 = vmax.f32 %v5386, %v5389
    %v5753 = vmax.f32 %v5392, %v5395
    %v5754 = vmax.f32 %v5398, %v5401
    %v5755 = vmax.f32 %v5404, %v5407
    %v5756 = vmax.f32 %v5410, %v5413
    %v5757 = vmax.f32 %v5416, %v5419
    %v5758 = vmax.f32 %v5422, %v5425
    %v5759 = vmax.f32 %v5428, %v5431
    %v5760 = vmax.f32 %v5434, %v5437
    %v5761 = vmax.f32 %v5440, %v5443
    %v5762 = vmax.f32 %v5446, %v5449
    %v5763 = vmax.f32 %v5452, %v5455
    %v5764 = vmax.f32 %v5458, %v5461
    %v5765 = vmax.f32 %v5464, %v5467
    %v5766 = vmax.f32 %v5470, %v5473
    %v5767 = vmax.f32 %v5476, %v5479
    %v5768 = vmax.f32 %v5482, %v5485
    %v5769 = vmax.f32 %v5488, %v5491
    %v5770 = vmax.f32 %v5494, %v5497
    %v5771 = vmax.f32 %v5500, %v5503
    %v5772 = vmax.f32 %v5506, %v5509
    %v5773 = vmax.f32 %v5512, %v5515
    %v5774 = vmax.f32 %v5518, %v5521
    %v5775 = vmax.f32 %v5524, %v5527
    %v5776 = vmax.f32 %v5530, %v5533
    %v5777 = vmax.f32 %v5536, %v5539
    %v5778 = vmax.f32 %v5542, %v5545
    %v5779 = vmax.f32 %v5548, %v5551
    %v5780 = vmax.f32 %v5554, %v5557
    %v5781 = vmax.f32 %v5560, %v5563
    %v5782 = vmax.f32 %v5566, %v5569
    %v5783 = vmax.f32 %v5572, %v5575
    %v5784 = vmax.f32 %v5578, %v5581
    %v5785 = vmax.f32 %v5584, %v5587
    %v5786 = vmax.f32 %v5590, %v5593
    %v5787 = vmax.f32 %v5596, %v5599
    %v5788 = vmax.f32 %v5602, %v5605
    %v5789 = vmax.f32 %v5608, %v5611
    %v5790 = vmax.f32 %v5614, %v5617
    %v5791 = vmax.f32 %v5620, %v5623
    %v5792 = vmax.f32 %v5626, %v5629
    %v5793 = vmax.f32 %v5632, %v5635
    %v5794 = vmax.f32 %v5638, %v5641
    %v5795 = vmax.f32 %v5644, %v5647
    %v5796 = vmax.f32 %v5650, %v5653
    %v5797 = vmax.f32 %v5656, %v5659
    %v5798 = vmax.f32 %v5662, %v5665
    %v5799 = vmax.f32 %v5668, %v5671
    %v5928 = vperm.slane %v5672, %v39
    %v5929 = vadd.s32 %v39, 4294967288
    %v5930 = vperm.slane %v5673, %v5929
    %vm5931 = vcmask 130112
    %v5932 = vsel %vm5931, %v5930, %v5928
    %v5933 = vadd.s32 %v39, 4294967280
    %v5934 = vperm.slane %v5674, %v5933
    %vm5935 = vcmask 195712
    %v5936 = vsel %vm5935, %v5934, %v5932
    %v5937 = vadd.s32 %v39, 4294967272
    %v5938 = vperm.slane %v5675, %v5937
    %vm5939 = vcmask 261312
    %v5940 = vsel %vm5939, %v5938, %v5936
    %v5941 = vadd.s32 %v39, 4294967264
    %v5942 = vperm.slane %v5676, %v5941
    %vm5943 = vcmask 326912
    %v5944 = vsel %vm5943, %v5942, %v5940
    %v5945 = vadd.s32 %v39, 4294967256
    %v5946 = vperm.slane %v5677, %v5945
    %vm5947 = vcmask 392512
    %v5948 = vsel %vm5947, %v5946, %v5944
    %v5949 = vadd.s32 %v39, 4294967248
    %v5950 = vperm.slane %v5678, %v5949
    %vm5951 = vcmask 458112
    %v5952 = vsel %vm5951, %v5950, %v5948
    %v5953 = vadd.s32 %v39, 4294967240
    %v5954 = vperm.slane %v5679, %v5953
    %vm5955 = vcmask 523712
    %v5956 = vsel %vm5955, %v5954, %v5952
    %v5957 = vadd.s32 %v39, 4294967232
    %v5958 = vperm.slane %v5680, %v5957
    %vm5959 = vcmask 589312
    %v5960 = vsel %vm5959, %v5958, %v5956
    %v5961 = vadd.s32 %v39, 4294967224
    %v5962 = vperm.slane %v5681, %v5961
    %vm5963 = vcmask 654912
    %v5964 = vsel %vm5963, %v5962, %v5960
    %v5965 = vadd.s32 %v39, 4294967216
    %v5966 = vperm.slane %v5682, %v5965
    %vm5967 = vcmask 720512
    %v5968 = vsel %vm5967, %v5966, %v5964
    %v5969 = vadd.s32 %v39, 4294967208
    %v5970 = vperm.slane %v5683, %v5969
    %vm5971 = vcmask 786112
    %v5972 = vsel %vm5971, %v5970, %v5968
    %v5973 = vadd.s32 %v39, 4294967200
    %v5974 = vperm.slane %v5684, %v5973
    %vm5975 = vcmask 851712
    %v5976 = vsel %vm5975, %v5974, %v5972
    %v5977 = vadd.s32 %v39, 4294967192
    %v5978 = vperm.slane %v5685, %v5977
    %vm5979 = vcmask 917312
    %v5980 = vsel %vm5979, %v5978, %v5976
    %v5981 = vadd.s32 %v39, 4294967184
    %v5982 = vperm.slane %v5686, %v5981
    %vm5983 = vcmask 982912
    %v5984 = vsel %vm5983, %v5982, %v5980
    %v5985 = vadd.s32 %v39, 4294967176
    %v5986 = vperm.slane %v5687, %v5985
    %vm5987 = vcmask 1048512
    %v5988 = vsel %vm5987, %v5986, %v5984
    %v5989 = vperm.slane %v5688, %v39
    %v5990 = vperm.slane %v5689, %v5929
    %v5991 = vsel %vm5931, %v5990, %v5989
    %v5992 = vperm.slane %v5690, %v5933
    %v5993 = vsel %vm5935, %v5992, %v5991
    %v5994 = vperm.slane %v5691, %v5937
    %v5995 = vsel %vm5939, %v5994, %v5993
    %v5996 = vperm.slane %v5692, %v5941
    %v5997 = vsel %vm5943, %v5996, %v5995
    %v5998 = vperm.slane %v5693, %v5945
    %v5999 = vsel %vm5947, %v5998, %v5997
    %v6000 = vperm.slane %v5694, %v5949
    %v6001 = vsel %vm5951, %v6000, %v5999
    %v6002 = vperm.slane %v5695, %v5953
    %v6003 = vsel %vm5955, %v6002, %v6001
    %v6004 = vperm.slane %v5696, %v5957
    %v6005 = vsel %vm5959, %v6004, %v6003
    %v6006 = vperm.slane %v5697, %v5961
    %v6007 = vsel %vm5963, %v6006, %v6005
    %v6008 = vperm.slane %v5698, %v5965
    %v6009 = vsel %vm5967, %v6008, %v6007
    %v6010 = vperm.slane %v5699, %v5969
    %v6011 = vsel %vm5971, %v6010, %v6009
    %v6012 = vperm.slane %v5700, %v5973
    %v6013 = vsel %vm5975, %v6012, %v6011
    %v6014 = vperm.slane %v5701, %v5977
    %v6015 = vsel %vm5979, %v6014, %v6013
    %v6016 = vperm.slane %v5702, %v5981
    %v6017 = vsel %vm5983, %v6016, %v6015
    %v6018 = vperm.slane %v5703, %v5985
    %v6019 = vsel %vm5987, %v6018, %v6017
    %v6020 = vperm.slane %v5704, %v39
    %v6021 = vperm.slane %v5705, %v5929
    %v6022 = vsel %vm5931, %v6021, %v6020
    %v6023 = vperm.slane %v5706, %v5933
    %v6024 = vsel %vm5935, %v6023, %v6022
    %v6025 = vperm.slane %v5707, %v5937
    %v6026 = vsel %vm5939, %v6025, %v6024
    %v6027 = vperm.slane %v5708, %v5941
    %v6028 = vsel %vm5943, %v6027, %v6026
    %v6029 = vperm.slane %v5709, %v5945
    %v6030 = vsel %vm5947, %v6029, %v6028
    %v6031 = vperm.slane %v5710, %v5949
    %v6032 = vsel %vm5951, %v6031, %v6030
    %v6033 = vperm.slane %v5711, %v5953
    %v6034 = vsel %vm5955, %v6033, %v6032
    %v6035 = vperm.slane %v5712, %v5957
    %v6036 = vsel %vm5959, %v6035, %v6034
    %v6037 = vperm.slane %v5713, %v5961
    %v6038 = vsel %vm5963, %v6037, %v6036
    %v6039 = vperm.slane %v5714, %v5965
    %v6040 = vsel %vm5967, %v6039, %v6038
    %v6041 = vperm.slane %v5715, %v5969
    %v6042 = vsel %vm5971, %v6041, %v6040
    %v6043 = vperm.slane %v5716, %v5973
    %v6044 = vsel %vm5975, %v6043, %v6042
    %v6045 = vperm.slane %v5717, %v5977
    %v6046 = vsel %vm5979, %v6045, %v6044
    %v6047 = vperm.slane %v5718, %v5981
    %v6048 = vsel %vm5983, %v6047, %v6046
    %v6049 = vperm.slane %v5719, %v5985
    %v6050 = vsel %vm5987, %v6049, %v6048
    %v6051 = vperm.slane %v5720, %v39
    %v6052 = vperm.slane %v5721, %v5929
    %v6053 = vsel %vm5931, %v6052, %v6051
    %v6054 = vperm.slane %v5722, %v5933
    %v6055 = vsel %vm5935, %v6054, %v6053
    %v6056 = vperm.slane %v5723, %v5937
    %v6057 = vsel %vm5939, %v6056, %v6055
    %v6058 = vperm.slane %v5724, %v5941
    %v6059 = vsel %vm5943, %v6058, %v6057
    %v6060 = vperm.slane %v5725, %v5945
    %v6061 = vsel %vm5947, %v6060, %v6059
    %v6062 = vperm.slane %v5726, %v5949
    %v6063 = vsel %vm5951, %v6062, %v6061
    %v6064 = vperm.slane %v5727, %v5953
    %v6065 = vsel %vm5955, %v6064, %v6063
    %v6066 = vperm.slane %v5728, %v5957
    %v6067 = vsel %vm5959, %v6066, %v6065
    %v6068 = vperm.slane %v5729, %v5961
    %v6069 = vsel %vm5963, %v6068, %v6067
    %v6070 = vperm.slane %v5730, %v5965
    %v6071 = vsel %vm5967, %v6070, %v6069
    %v6072 = vperm.slane %v5731, %v5969
    %v6073 = vsel %vm5971, %v6072, %v6071
    %v6074 = vperm.slane %v5732, %v5973
    %v6075 = vsel %vm5975, %v6074, %v6073
    %v6076 = vperm.slane %v5733, %v5977
    %v6077 = vsel %vm5979, %v6076, %v6075
    %v6078 = vperm.slane %v5734, %v5981
    %v6079 = vsel %vm5983, %v6078, %v6077
    %v6080 = vperm.slane %v5735, %v5985
    %v6081 = vsel %vm5987, %v6080, %v6079
    %v6082 = vperm.slane %v5736, %v39
    %v6083 = vperm.slane %v5737, %v5929
    %v6084 = vsel %vm5931, %v6083, %v6082
    %v6085 = vperm.slane %v5738, %v5933
    %v6086 = vsel %vm5935, %v6085, %v6084
    %v6087 = vperm.slane %v5739, %v5937
    %v6088 = vsel %vm5939, %v6087, %v6086
    %v6089 = vperm.slane %v5740, %v5941
    %v6090 = vsel %vm5943, %v6089, %v6088
    %v6091 = vperm.slane %v5741, %v5945
    %v6092 = vsel %vm5947, %v6091, %v6090
    %v6093 = vperm.slane %v5742, %v5949
    %v6094 = vsel %vm5951, %v6093, %v6092
    %v6095 = vperm.slane %v5743, %v5953
    %v6096 = vsel %vm5955, %v6095, %v6094
    %v6097 = vperm.slane %v5744, %v5957
    %v6098 = vsel %vm5959, %v6097, %v6096
    %v6099 = vperm.slane %v5745, %v5961
    %v6100 = vsel %vm5963, %v6099, %v6098
    %v6101 = vperm.slane %v5746, %v5965
    %v6102 = vsel %vm5967, %v6101, %v6100
    %v6103 = vperm.slane %v5747, %v5969
    %v6104 = vsel %vm5971, %v6103, %v6102
    %v6105 = vperm.slane %v5748, %v5973
    %v6106 = vsel %vm5975, %v6105, %v6104
    %v6107 = vperm.slane %v5749, %v5977
    %v6108 = vsel %vm5979, %v6107, %v6106
    %v6109 = vperm.slane %v5750, %v5981
    %v6110 = vsel %vm5983, %v6109, %v6108
    %v6111 = vperm.slane %v5751, %v5985
    %v6112 = vsel %vm5987, %v6111, %v6110
    %v6113 = vperm.slane %v5752, %v39
    %v6114 = vperm.slane %v5753, %v5929
    %v6115 = vsel %vm5931, %v6114, %v6113
    %v6116 = vperm.slane %v5754, %v5933
    %v6117 = vsel %vm5935, %v6116, %v6115
    %v6118 = vperm.slane %v5755, %v5937
    %v6119 = vsel %vm5939, %v6118, %v6117
    %v6120 = vperm.slane %v5756, %v5941
    %v6121 = vsel %vm5943, %v6120, %v6119
    %v6122 = vperm.slane %v5757, %v5945
    %v6123 = vsel %vm5947, %v6122, %v6121
    %v6124 = vperm.slane %v5758, %v5949
    %v6125 = vsel %vm5951, %v6124, %v6123
    %v6126 = vperm.slane %v5759, %v5953
    %v6127 = vsel %vm5955, %v6126, %v6125
    %v6128 = vperm.slane %v5760, %v5957
    %v6129 = vsel %vm5959, %v6128, %v6127
    %v6130 = vperm.slane %v5761, %v5961
    %v6131 = vsel %vm5963, %v6130, %v6129
    %v6132 = vperm.slane %v5762, %v5965
    %v6133 = vsel %vm5967, %v6132, %v6131
    %v6134 = vperm.slane %v5763, %v5969
    %v6135 = vsel %vm5971, %v6134, %v6133
    %v6136 = vperm.slane %v5764, %v5973
    %v6137 = vsel %vm5975, %v6136, %v6135
    %v6138 = vperm.slane %v5765, %v5977
    %v6139 = vsel %vm5979, %v6138, %v6137
    %v6140 = vperm.slane %v5766, %v5981
    %v6141 = vsel %vm5983, %v6140, %v6139
    %v6142 = vperm.slane %v5767, %v5985
    %v6143 = vsel %vm5987, %v6142, %v6141
    %v6144 = vperm.slane %v5768, %v39
    %v6145 = vperm.slane %v5769, %v5929
    %v6146 = vsel %vm5931, %v6145, %v6144
    %v6147 = vperm.slane %v5770, %v5933
    %v6148 = vsel %vm5935, %v6147, %v6146
    %v6149 = vperm.slane %v5771, %v5937
    %v6150 = vsel %vm5939, %v6149, %v6148
    %v6151 = vperm.slane %v5772, %v5941
    %v6152 = vsel %vm5943, %v6151, %v6150
    %v6153 = vperm.slane %v5773, %v5945
    %v6154 = vsel %vm5947, %v6153, %v6152
    %v6155 = vperm.slane %v5774, %v5949
    %v6156 = vsel %vm5951, %v6155, %v6154
    %v6157 = vperm.slane %v5775, %v5953
    %v6158 = vsel %vm5955, %v6157, %v6156
    %v6159 = vperm.slane %v5776, %v5957
    %v6160 = vsel %vm5959, %v6159, %v6158
    %v6161 = vperm.slane %v5777, %v5961
    %v6162 = vsel %vm5963, %v6161, %v6160
    %v6163 = vperm.slane %v5778, %v5965
    %v6164 = vsel %vm5967, %v6163, %v6162
    %v6165 = vperm.slane %v5779, %v5969
    %v6166 = vsel %vm5971, %v6165, %v6164
    %v6167 = vperm.slane %v5780, %v5973
    %v6168 = vsel %vm5975, %v6167, %v6166
    %v6169 = vperm.slane %v5781, %v5977
    %v6170 = vsel %vm5979, %v6169, %v6168
    %v6171 = vperm.slane %v5782, %v5981
    %v6172 = vsel %vm5983, %v6171, %v6170
    %v6173 = vperm.slane %v5783, %v5985
    %v6174 = vsel %vm5987, %v6173, %v6172
    %v6175 = vperm.slane %v5784, %v39
    %v6176 = vperm.slane %v5785, %v5929
    %v6177 = vsel %vm5931, %v6176, %v6175
    %v6178 = vperm.slane %v5786, %v5933
    %v6179 = vsel %vm5935, %v6178, %v6177
    %v6180 = vperm.slane %v5787, %v5937
    %v6181 = vsel %vm5939, %v6180, %v6179
    %v6182 = vperm.slane %v5788, %v5941
    %v6183 = vsel %vm5943, %v6182, %v6181
    %v6184 = vperm.slane %v5789, %v5945
    %v6185 = vsel %vm5947, %v6184, %v6183
    %v6186 = vperm.slane %v5790, %v5949
    %v6187 = vsel %vm5951, %v6186, %v6185
    %v6188 = vperm.slane %v5791, %v5953
    %v6189 = vsel %vm5955, %v6188, %v6187
    %v6190 = vperm.slane %v5792, %v5957
    %v6191 = vsel %vm5959, %v6190, %v6189
    %v6192 = vperm.slane %v5793, %v5961
    %v6193 = vsel %vm5963, %v6192, %v6191
    %v6194 = vperm.slane %v5794, %v5965
    %v6195 = vsel %vm5967, %v6194, %v6193
    %v6196 = vperm.slane %v5795, %v5969
    %v6197 = vsel %vm5971, %v6196, %v6195
    %v6198 = vperm.slane %v5796, %v5973
    %v6199 = vsel %vm5975, %v6198, %v6197
    %v6200 = vperm.slane %v5797, %v5977
    %v6201 = vsel %vm5979, %v6200, %v6199
    %v6202 = vperm.slane %v5798, %v5981
    %v6203 = vsel %vm5983, %v6202, %v6201
    %v6204 = vperm.slane %v5799, %v5985
    %v6205 = vsel %vm5987, %v6204, %v6203
    %vm6206 = vcmask 1041409
    %v6207 = vsel %vm6206, %v6019, %v5988
    %vm6208 = vcmask 1042434
    %v6209 = vsel %vm6208, %v6050, %v6207
    %vm6210 = vcmask 1043459
    %v6211 = vsel %vm6210, %v6081, %v6209
    %vm6212 = vcmask 1044484
    %v6213 = vsel %vm6212, %v6112, %v6211
    %vm6214 = vcmask 1045509
    %v6215 = vsel %vm6214, %v6143, %v6213
    %vm6216 = vcmask 1046534
    %v6217 = vsel %vm6216, %v6174, %v6215
    %vm6218 = vcmask 1047559
    %v6219 = vsel %vm6218, %v6205, %v6217
    %6221 = vst [vmem:[#allocation4] sm:$0xff] %v6219
    %v6222 = vld [vmem:[#allocation4] sm:$0xff]
    %6223 = vadd.xlane.f32.xlu0 %v6222
    %v6224 = vpop.xlane.xlu0 %6223
    %v6225 = vmul.f32 %v6224, 0.0078125
    %v6226 = vsub.f32 %v6222, %v6225
    %v6227 = vmul.f32 %v6226, %v6226
    %6228 = vadd.xlane.f32.xlu0 %v6227
    %v6229 = vpop.xlane.xlu0 %6228
    %v6230 = vmul.f32 %v6229, 0.0078125
    %v6231 = vadd.f32 %v6230, 1e-05
    %v6232 = vrsqrt.pop %v6231
    %v6233 = vmul.f32 %v6232, %v6231
    %v6234 = vmul.f32 %v6233, %v6232
    %v6235 = vmul.f32 0.5, %v6234
    %v6236 = vsub.f32 1.5, %v6235
    %v6237 = vmul.f32 %v6232, %v6236
    %vm6238 = vweird.f32 %v6231
    %vm6239 = vweird.f32 %v6232
    %vm6240 = vmor %vm6238, %vm6239
    %v6241 = vsel %vm6240, %v6232, %v6237
    %v6242 = vld [vmem:[%s2] sm:$0xff]
    %v6243 = vmul.f32 %v6242, %v6241
    %v6244 = vld [vmem:[%s3] sm:$0xff]
    %v6245 = vmul.f32 %v6225, %v6243
    %v6246 = vsub.f32 %v6244, %v6245
    %6248 = vset.pattern.permute.xlu0 0
    %6249 = vperm.xlu0 %6248, %v6243
    %v6250 = vpop.permute.xlu0 %6249
    %v6252 = vmul.f32 %v6222, %v6250
    %6254 = vset.pattern.permute.xlu0 0
    %6255 = vperm.xlu0 %6254, %v6246
    %v6256 = vpop.permute.xlu0 %6255
    %v6258 = vadd.f32 %v6252, %v6256
    %v6259 = vmax.f32 %v6258, 0.0
    %vm6260 = vcmask 523264
    %6261 = vst.msk [vmem:[#allocation8] sm:$0xff] %vm6260, %v6259
    %v6262 = vld [vmem:[#allocation4] sm:$0xff]
    %v6263 = vmul.f32 %v6262, %v6250
    %v6264 = vadd.f32 %v6263, %v6256
    %v6265 = vmax.f32 %v6264, 0.0
    %6267 = vrot.lane.b32.xlu0 %v6265, 64
    %v6268 = vpop.permute.xlu0 %6267
    %s6270 = scalar_lea.vmem [#allocation8], 8
    %6271 = vst.msk [vmem:[%s6270] sm:$0xff] %vm6260, %v6268
    // Predicated region
    $region22: #{tpu_custom_call.1} parent=1 // pred_check
      _
    $region23: #{tpu_custom_call.1} parent=1 // pred_check_branch
      %6273 = sbr.rel (0) target = $region25
    $region24: #{tpu_custom_call.1} parent=1 // pred_region
      %6275 = vsyncadd [#allocation7], 0
      %s6276 = sshll.u32 [#allocation8], 4
      %s6277 = int_to_ptr.vmem [resolvable:$true] %s6276
      %s6278 = sshll.u32 %s4, 4
      %s6279 = int_to_ptr.hbm [resolvable:$true] %s6278
      %6284 = dma.vmem_to_hbm [thread:$0]  %s6277, 256, %s6279, [#allocation7], 128, 128, 8
    $region25: #{tpu_custom_call.1} parent=1 // pred_fallthru
      _
    // Predicated region
    $region26: #{tpu_custom_call.1} parent=1 // pred_check
      _
    $region27: #{tpu_custom_call.1} parent=1 // pred_check_branch
      %6286 = sbr.rel (0) target = $region29
    $region28: #{tpu_custom_call.1} parent=1 // pred_region
      %6288 = dma.done [#allocation7], 256
    $region29: #{tpu_custom_call.1} parent=1 // pred_fallthru
      _
    %6289 = vsyncpa [#allocation6], 1
    %6290 = vsyncpa [#allocation7], 1

</llo_original>
